<compile_context>
chip_gen: v6e
topology: v6e:2x2x1
jax: 0.10.0
libtpu: 0.0.40
codegen_flags: <defaults>
</compile_context>

<pallas_src>
import jax
import jax.numpy as jnp
from jax.experimental import pallas as pl
from jax.experimental.pallas import tpu as pltpu

IN_DIM = 25 * 25 * 3          # 1875
PAD_DIM = 15 * 128            # 1920  (feature dim padded to a multiple of 128)
H1 = 256
H2 = 16
LATENT = 2


def _round_up(x, m):
    return ((x + m - 1) // m) * m


def _autoencoder_kernel(x_ref,
                        w1_ref, b1_ref, w2_ref, b2_ref, w3_ref, b3_ref,
                        w4_ref, b4_ref, w5_ref, b5_ref, w6_ref, b6_ref,
                        lat_ref, out_ref):
    bf16 = jnp.bfloat16
    x = x_ref[...]                                                    # (TB, 1920) bf16

    # ----- encoder -----
    h = jnp.dot(x, w1_ref[...], preferred_element_type=jnp.float32) + b1_ref[...]
    h = jnp.maximum(h, 0.0).astype(bf16)                              # (TB, 256)
    h = jnp.dot(h, w2_ref[...], preferred_element_type=jnp.float32) + b2_ref[...]
    h = jnp.maximum(h, 0.0).astype(bf16)                              # (TB, 16)
    z = jnp.dot(h, w3_ref[...], preferred_element_type=jnp.float32) + b3_ref[...]
    lat_ref[...] = z                                                  # (TB, 2) f32

    # ----- decoder -----
    d = jnp.dot(z.astype(bf16), w4_ref[...], preferred_element_type=jnp.float32) + b4_ref[...]
    d = jnp.maximum(d, 0.0).astype(bf16)                              # (TB, 16)
    d = jnp.dot(d, w5_ref[...], preferred_element_type=jnp.float32) + b5_ref[...]
    d = jnp.maximum(d, 0.0).astype(bf16)                              # (TB, 256)
    out = jnp.dot(d, w6_ref[...], preferred_element_type=jnp.float32) + b6_ref[...]
    out_ref[...] = out                                                # (TB, 1920) f32


def init_params(key):
    """Deterministic init mimicking torch.nn.Linear default (U(-1/sqrt(fan_in), +))."""
    dims = [(IN_DIM, H1), (H1, H2), (H2, LATENT),     # encoder
            (LATENT, H2), (H2, H1), (H1, IN_DIM)]     # decoder
    params = []
    for (fan_in, fan_out) in dims:
        key, kw, kb = jax.random.split(key, 3)
        bound = 1.0 / jnp.sqrt(jnp.float32(fan_in))
        # weight stored as (in, out) == transposed torch layout
        w = jax.random.uniform(kw, (fan_in, fan_out), jnp.float32, -bound, bound)
        b = jax.random.uniform(kb, (1, fan_out), jnp.float32, -bound, bound)
        params += [w, b]
    return params


def autoencoder_forward(x_nchw, params):
    B = x_nchw.shape[0]
    bf16 = jnp.bfloat16
    x_flat = x_nchw.reshape(B, IN_DIM).astype(jnp.float32)   # torch.nn.Flatten (C*H*W order)

    # batch tile: 256 keeps the MXU M-dim full on v6e/v7x; small batches just
    # round up to the sublane granule (8).
    TB = 256 if B >= 256 else _round_up(B, 8)
    B_pad = _round_up(B, TB)
    nb = pl.cdiv(B_pad, TB)

    w1, b1, w2, b2, w3, b3, w4, b4, w5, b5, w6, b6 = params

    # ---- one-time padding / casting in the wrapper (not per grid step) ----
    x_p = (jnp.zeros((B_pad, PAD_DIM), jnp.float32)
              .at[:B, :IN_DIM].set(x_flat)).astype(bf16)
    w1_p = (jnp.zeros((PAD_DIM, H1), jnp.float32).at[:IN_DIM, :].set(w1)).astype(bf16)
    w6_p = (jnp.zeros((H1, PAD_DIM), jnp.float32).at[:, :IN_DIM].set(w6)).astype(bf16)
    b6_p = jnp.zeros((1, PAD_DIM), jnp.float32).at[:, :IN_DIM].set(b6)
    w2_b, w3_b, w4_b, w5_b = (w.astype(bf16) for w in (w2, w3, w4, w5))

    const = lambda i: (0, 0)          # weights/biases resident across grid steps
    in_specs = [
        pl.BlockSpec((TB, PAD_DIM), lambda i: (i, 0)),          # x
        pl.BlockSpec((PAD_DIM, H1), const),                     # w1
        pl.BlockSpec((1, H1), const),                           # b1
        pl.BlockSpec((H1, H2), const),                          # w2
        pl.BlockSpec((1, H2), const),                           # b2
        pl.BlockSpec((H2, LATENT), const),                      # w3
        pl.BlockSpec((1, LATENT), const),                       # b3
        pl.BlockSpec((LATENT, H2), const),                      # w4
        pl.BlockSpec((1, H2), const),                           # b4
        pl.BlockSpec((H2, H1), const),                          # w5
        pl.BlockSpec((1, H1), const),                           # b5
        pl.BlockSpec((H1, PAD_DIM), const),                     # w6
        pl.BlockSpec((1, PAD_DIM), const),                      # b6
    ]
    out_specs = (
        pl.BlockSpec((TB, LATENT), lambda i: (i, 0)),           # latent
        pl.BlockSpec((TB, PAD_DIM), lambda i: (i, 0)),          # reconstruction (lane-dense)
    )

    latent_p, recon_p = pl.pallas_call(
        _autoencoder_kernel,
        out_shape=(
            jax.ShapeDtypeStruct((B_pad, LATENT), jnp.float32),
            jax.ShapeDtypeStruct((B_pad, PAD_DIM), jnp.float32),
        ),
        grid_spec=pltpu.PrefetchScalarGridSpec(
            num_scalar_prefetch=0,
            grid=(nb,),
            in_specs=in_specs,
            out_specs=out_specs,
        ),
        compiler_params=pltpu.CompilerParams(
            dimension_semantics=("parallel",),
            vmem_limit_bytes=48 << 20,
        ),
    )(x_p, w1_p, b1, w2_b, b2, w3_b, b3, w4_b, b4, w5_b, b5, w6_p, b6_p)

    latent = latent_p[:B]
    recon = recon_p[:B, :IN_DIM].reshape(B, 3, 25, 25)   # FlattenTranspose((3, 25, 25))
    return latent, recon


if __name__ == "__main__":
    key = jax.random.PRNGKey(0)
    key, kx = jax.random.split(key)

    # Input shape implied by the module: (batch, 3, 25, 25) NCHW
    x = jax.random.normal(kx, (2, 3, 25, 25), dtype=jnp.float32)

    params = init_params(key)

    latent, recon = autoencoder_forward(x, params)
    jax.block_until_ready(recon)
    jax.block_until_ready(latent)

    # Pure-JAX reference of the same math (bf16 weights/activations, f32 accum).
    def ref(x_nchw, ps):
        w1, b1, w2, b2, w3, b3, w4, b4, w5, b5, w6, b6 = ps
        bf = jnp.bfloat16
        f32 = jnp.float32
        h = x_nchw.reshape(x_nchw.shape[0], -1).astype(bf)
        h = jnp.maximum(jnp.dot(h, w1.astype(bf), preferred_element_type=f32) + b1, 0.0)
        h = jnp.maximum(jnp.dot(h.astype(bf), w2.astype(bf), preferred_element_type=f32) + b2, 0.0)
        z = jnp.dot(h.astype(bf), w3.astype(bf), preferred_element_type=f32) + b3
        d = jnp.maximum(jnp.dot(z.astype(bf), w4.astype(bf), preferred_element_type=f32) + b4, 0.0)
        d = jnp.maximum(jnp.dot(d.astype(bf), w5.astype(bf), preferred_element_type=f32) + b5, 0.0)
        o = jnp.dot(d.astype(bf), w6.astype(bf), preferred_element_type=f32) + b6
        return z, o.reshape(x_nchw.shape[0], 3, 25, 25)

    z_ref, o_ref = ref(x, params)
    assert recon.shape == (2, 3, 25, 25) and latent.shape == (2, 2)
    assert jnp.allclose(latent, z_ref, atol=2e-2, rtol=2e-2)
    assert jnp.allclose(recon, o_ref, atol=2e-2, rtol=2e-2)

    print("KERNEL_OK")
</pallas_src>

<mosaic_0001>
module attributes {stable_mosaic.version = 11 : i64} {
  func.func @_autoencoder_kernel(%arg0: i32, %arg1: memref<8x1920xbf16, #tpu.memory_space<vmem>>, %arg2: memref<1920x256xbf16, #tpu.memory_space<vmem>>, %arg3: memref<1x256xf32, #tpu.memory_space<vmem>>, %arg4: memref<256x16xbf16, #tpu.memory_space<vmem>>, %arg5: memref<1x16xf32, #tpu.memory_space<vmem>>, %arg6: memref<16x2xbf16, #tpu.memory_space<vmem>>, %arg7: memref<1x2xf32, #tpu.memory_space<vmem>>, %arg8: memref<2x16xbf16, #tpu.memory_space<vmem>>, %arg9: memref<1x16xf32, #tpu.memory_space<vmem>>, %arg10: memref<16x256xbf16, #tpu.memory_space<vmem>>, %arg11: memref<1x256xf32, #tpu.memory_space<vmem>>, %arg12: memref<256x1920xbf16, #tpu.memory_space<vmem>>, %arg13: memref<1x1920xf32, #tpu.memory_space<vmem>>, %arg14: memref<8x2xf32, #tpu.memory_space<vmem>>, %arg15: memref<8x1920xf32, #tpu.memory_space<vmem>>) attributes {dimension_semantics = [#tpu.dimension_semantics<parallel>], iteration_bounds = array<i64: 1>, scalar_prefetch = 0 : i64, scratch_operands = 0 : i64, tpu.core_type = #tpu.core_type<tc>, window_params = [{transform_indices = @transform_0, window_bounds = array<i64: 8, 1920>}, {pipeline_mode = #tpu.pipeline_mode<synchronous>, transform_indices = @transform_1, window_bounds = array<i64: 1920, 256>}, {pipeline_mode = #tpu.pipeline_mode<synchronous>, transform_indices = @transform_2, window_bounds = array<i64: 1, 256>}, {pipeline_mode = #tpu.pipeline_mode<synchronous>, transform_indices = @transform_3, window_bounds = array<i64: 256, 16>}, {pipeline_mode = #tpu.pipeline_mode<synchronous>, transform_indices = @transform_4, window_bounds = array<i64: 1, 16>}, {pipeline_mode = #tpu.pipeline_mode<synchronous>, transform_indices = @transform_5, window_bounds = array<i64: 16, 2>}, {pipeline_mode = #tpu.pipeline_mode<synchronous>, transform_indices = @transform_6, window_bounds = array<i64: 1, 2>}, {pipeline_mode = #tpu.pipeline_mode<synchronous>, transform_indices = @transform_7, window_bounds = array<i64: 2, 16>}, {pipeline_mode = #tpu.pipeline_mode<synchronous>, transform_indices = @transform_8, window_bounds = array<i64: 1, 16>}, {pipeline_mode = #tpu.pipeline_mode<synchronous>, transform_indices = @transform_9, window_bounds = array<i64: 16, 256>}, {pipeline_mode = #tpu.pipeline_mode<synchronous>, transform_indices = @transform_10, window_bounds = array<i64: 1, 256>}, {pipeline_mode = #tpu.pipeline_mode<synchronous>, transform_indices = @transform_11, window_bounds = array<i64: 256, 1920>}, {pipeline_mode = #tpu.pipeline_mode<synchronous>, transform_indices = @transform_12, window_bounds = array<i64: 1, 1920>}, {transform_indices = @transform_13, window_bounds = array<i64: 8, 2>}, {transform_indices = @transform_14, window_bounds = array<i64: 8, 1920>}]} {
    %c0 = arith.constant 0 : index
    %c0_0 = arith.constant 0 : index
    %0 = vector.load %arg1[%c0, %c0_0] : memref<8x1920xbf16, #tpu.memory_space<vmem>>, vector<8x1920xbf16>
    %c0_1 = arith.constant 0 : index
    %c0_2 = arith.constant 0 : index
    %1 = vector.load %arg2[%c0_1, %c0_2] : memref<1920x256xbf16, #tpu.memory_space<vmem>>, vector<1920x256xbf16>
    %cst = arith.constant dense<0.000000e+00> : vector<8x256xf32>
    %2 = tpu.matmul %0, %1, %cst {dimension_numbers = #tpu.dot_dimension_numbers<[1], [0], [0], [1], [0, 0, 1, 1], [], []>} : vector<8x1920xbf16>, vector<1920x256xbf16>, vector<8x256xf32> -> vector<8x256xf32>
    %c0_3 = arith.constant 0 : index
    %c0_4 = arith.constant 0 : index
    %3 = vector.load %arg3[%c0_3, %c0_4] : memref<1x256xf32, #tpu.memory_space<vmem>>, vector<1x256xf32>
    %4 = vector.broadcast %3 : vector<1x256xf32> to vector<8x256xf32>
    %5 = arith.addf %2, %4 : vector<8x256xf32>
    %cst_5 = arith.constant 0.000000e+00 : f32
    %6 = vector.broadcast %cst_5 : f32 to vector<8x256xf32>
    %7 = arith.maximumf %5, %6 : vector<8x256xf32>
    %8 = arith.truncf %7 : vector<8x256xf32> to vector<8x256xbf16>
    %c0_6 = arith.constant 0 : index
    %c0_7 = arith.constant 0 : index
    %9 = vector.load %arg4[%c0_6, %c0_7] : memref<256x16xbf16, #tpu.memory_space<vmem>>, vector<256x16xbf16>
    %cst_8 = arith.constant dense<0.000000e+00> : vector<8x16xf32>
    %10 = tpu.matmul %8, %9, %cst_8 {dimension_numbers = #tpu.dot_dimension_numbers<[1], [0], [0], [1], [0, 0, 1, 1], [], []>} : vector<8x256xbf16>, vector<256x16xbf16>, vector<8x16xf32> -> vector<8x16xf32>
    %c0_9 = arith.constant 0 : index
    %c0_10 = arith.constant 0 : index
    %11 = vector.load %arg5[%c0_9, %c0_10] : memref<1x16xf32, #tpu.memory_space<vmem>>, vector<1x16xf32>
    %12 = vector.broadcast %11 : vector<1x16xf32> to vector<8x16xf32>
    %13 = arith.addf %10, %12 : vector<8x16xf32>
    %cst_11 = arith.constant 0.000000e+00 : f32
    %14 = vector.broadcast %cst_11 : f32 to vector<8x16xf32>
    %15 = arith.maximumf %13, %14 : vector<8x16xf32>
    %16 = arith.truncf %15 : vector<8x16xf32> to vector<8x16xbf16>
    %c0_12 = arith.constant 0 : index
    %c0_13 = arith.constant 0 : index
    %17 = vector.load %arg6[%c0_12, %c0_13] : memref<16x2xbf16, #tpu.memory_space<vmem>>, vector<16x2xbf16>
    %cst_14 = arith.constant dense<0.000000e+00> : vector<8x2xf32>
    %18 = tpu.matmul %16, %17, %cst_14 {dimension_numbers = #tpu.dot_dimension_numbers<[1], [0], [0], [1], [0, 0, 1, 1], [], []>} : vector<8x16xbf16>, vector<16x2xbf16>, vector<8x2xf32> -> vector<8x2xf32>
    %c0_15 = arith.constant 0 : index
    %c0_16 = arith.constant 0 : index
    %19 = vector.load %arg7[%c0_15, %c0_16] : memref<1x2xf32, #tpu.memory_space<vmem>>, vector<1x2xf32>
    %20 = vector.broadcast %19 : vector<1x2xf32> to vector<8x2xf32>
    %21 = arith.addf %18, %20 : vector<8x2xf32>
    %c0_17 = arith.constant 0 : index
    %c0_18 = arith.constant 0 : index
    %22 = vector.load %arg14[%c0_17, %c0_18] : memref<8x2xf32, #tpu.memory_space<vmem>>, vector<8x2xf32>
    tpu.vector_store %arg14[%c0_17, %c0_18], %21 {strides = array<i32>} : memref<8x2xf32, #tpu.memory_space<vmem>>, vector<8x2xf32>,
    %23 = arith.truncf %21 : vector<8x2xf32> to vector<8x2xbf16>
    %c0_19 = arith.constant 0 : index
    %c0_20 = arith.constant 0 : index
    %24 = vector.load %arg8[%c0_19, %c0_20] : memref<2x16xbf16, #tpu.memory_space<vmem>>, vector<2x16xbf16>
    %cst_21 = arith.constant dense<0.000000e+00> : vector<8x16xf32>
    %25 = tpu.matmul %23, %24, %cst_21 {dimension_numbers = #tpu.dot_dimension_numbers<[1], [0], [0], [1], [0, 0, 1, 1], [], []>} : vector<8x2xbf16>, vector<2x16xbf16>, vector<8x16xf32> -> vector<8x16xf32>
    %c0_22 = arith.constant 0 : index
    %c0_23 = arith.constant 0 : index
    %26 = vector.load %arg9[%c0_22, %c0_23] : memref<1x16xf32, #tpu.memory_space<vmem>>, vector<1x16xf32>
    %27 = vector.broadcast %26 : vector<1x16xf32> to vector<8x16xf32>
    %28 = arith.addf %25, %27 : vector<8x16xf32>
    %cst_24 = arith.constant 0.000000e+00 : f32
    %29 = vector.broadcast %cst_24 : f32 to vector<8x16xf32>
    %30 = arith.maximumf %28, %29 : vector<8x16xf32>
    %31 = arith.truncf %30 : vector<8x16xf32> to vector<8x16xbf16>
    %c0_25 = arith.constant 0 : index
    %c0_26 = arith.constant 0 : index
    %32 = vector.load %arg10[%c0_25, %c0_26] : memref<16x256xbf16, #tpu.memory_space<vmem>>, vector<16x256xbf16>
    %cst_27 = arith.constant dense<0.000000e+00> : vector<8x256xf32>
    %33 = tpu.matmul %31, %32, %cst_27 {dimension_numbers = #tpu.dot_dimension_numbers<[1], [0], [0], [1], [0, 0, 1, 1], [], []>} : vector<8x16xbf16>, vector<16x256xbf16>, vector<8x256xf32> -> vector<8x256xf32>
    %c0_28 = arith.constant 0 : index
    %c0_29 = arith.constant 0 : index
    %34 = vector.load %arg11[%c0_28, %c0_29] : memref<1x256xf32, #tpu.memory_space<vmem>>, vector<1x256xf32>
    %35 = vector.broadcast %34 : vector<1x256xf32> to vector<8x256xf32>
    %36 = arith.addf %33, %35 : vector<8x256xf32>
    %cst_30 = arith.constant 0.000000e+00 : f32
    %37 = vector.broadcast %cst_30 : f32 to vector<8x256xf32>
    %38 = arith.maximumf %36, %37 : vector<8x256xf32>
    %39 = arith.truncf %38 : vector<8x256xf32> to vector<8x256xbf16>
    %c0_31 = arith.constant 0 : index
    %c0_32 = arith.constant 0 : index
    %40 = vector.load %arg12[%c0_31, %c0_32] : memref<256x1920xbf16, #tpu.memory_space<vmem>>, vector<256x1920xbf16>
    %cst_33 = arith.constant dense<0.000000e+00> : vector<8x1920xf32>
    %41 = tpu.matmul %39, %40, %cst_33 {dimension_numbers = #tpu.dot_dimension_numbers<[1], [0], [0], [1], [0, 0, 1, 1], [], []>} : vector<8x256xbf16>, vector<256x1920xbf16>, vector<8x1920xf32> -> vector<8x1920xf32>
    %c0_34 = arith.constant 0 : index
    %c0_35 = arith.constant 0 : index
    %42 = vector.load %arg13[%c0_34, %c0_35] : memref<1x1920xf32, #tpu.memory_space<vmem>>, vector<1x1920xf32>
    %43 = vector.broadcast %42 : vector<1x1920xf32> to vector<8x1920xf32>
    %44 = arith.addf %41, %43 : vector<8x1920xf32>
    %c0_36 = arith.constant 0 : index
    %c0_37 = arith.constant 0 : index
    %45 = vector.load %arg15[%c0_36, %c0_37] : memref<8x1920xf32, #tpu.memory_space<vmem>>, vector<8x1920xf32>
    tpu.vector_store %arg15[%c0_36, %c0_37], %44 {strides = array<i32>} : memref<8x1920xf32, #tpu.memory_space<vmem>>, vector<8x1920xf32>,
    return
  }
  func.func @transform_0(%arg0: i32) -> (i32, i32) {
    %c0_i32 = arith.constant 0 : i32
    %c0_i32_0 = arith.constant 0 : i32
    return %arg0, %c0_i32 : i32, i32
  }
  func.func @transform_1(%arg0: i32) -> (i32, i32) {
    %c0_i32 = arith.constant 0 : i32
    %c0_i32_0 = arith.constant 0 : i32
    %c0_i32_1 = arith.constant 0 : i32
    return %c0_i32, %c0_i32_0 : i32, i32
  }
  func.func @transform_2(%arg0: i32) -> (i32, i32) {
    %c0_i32 = arith.constant 0 : i32
    %c0_i32_0 = arith.constant 0 : i32
    %c0_i32_1 = arith.constant 0 : i32
    return %c0_i32, %c0_i32_0 : i32, i32
  }
  func.func @transform_3(%arg0: i32) -> (i32, i32) {
    %c0_i32 = arith.constant 0 : i32
    %c0_i32_0 = arith.constant 0 : i32
    %c0_i32_1 = arith.constant 0 : i32
    return %c0_i32, %c0_i32_0 : i32, i32
  }
  func.func @transform_4(%arg0: i32) -> (i32, i32) {
    %c0_i32 = arith.constant 0 : i32
    %c0_i32_0 = arith.constant 0 : i32
    %c0_i32_1 = arith.constant 0 : i32
    return %c0_i32, %c0_i32_0 : i32, i32
  }
  func.func @transform_5(%arg0: i32) -> (i32, i32) {
    %c0_i32 = arith.constant 0 : i32
    %c0_i32_0 = arith.constant 0 : i32
    %c0_i32_1 = arith.constant 0 : i32
    return %c0_i32, %c0_i32_0 : i32, i32
  }
  func.func @transform_6(%arg0: i32) -> (i32, i32) {
    %c0_i32 = arith.constant 0 : i32
    %c0_i32_0 = arith.constant 0 : i32
    %c0_i32_1 = arith.constant 0 : i32
    return %c0_i32, %c0_i32_0 : i32, i32
  }
  func.func @transform_7(%arg0: i32) -> (i32, i32) {
    %c0_i32 = arith.constant 0 : i32
    %c0_i32_0 = arith.constant 0 : i32
    %c0_i32_1 = arith.constant 0 : i32
    return %c0_i32, %c0_i32_0 : i32, i32
  }
  func.func @transform_8(%arg0: i32) -> (i32, i32) {
    %c0_i32 = arith.constant 0 : i32
    %c0_i32_0 = arith.constant 0 : i32
    %c0_i32_1 = arith.constant 0 : i32
    return %c0_i32, %c0_i32_0 : i32, i32
  }
  func.func @transform_9(%arg0: i32) -> (i32, i32) {
    %c0_i32 = arith.constant 0 : i32
    %c0_i32_0 = arith.constant 0 : i32
    %c0_i32_1 = arith.constant 0 : i32
    return %c0_i32, %c0_i32_0 : i32, i32
  }
  func.func @transform_10(%arg0: i32) -> (i32, i32) {
    %c0_i32 = arith.constant 0 : i32
    %c0_i32_0 = arith.constant 0 : i32
    %c0_i32_1 = arith.constant 0 : i32
    return %c0_i32, %c0_i32_0 : i32, i32
  }
  func.func @transform_11(%arg0: i32) -> (i32, i32) {
    %c0_i32 = arith.constant 0 : i32
    %c0_i32_0 = arith.constant 0 : i32
    %c0_i32_1 = arith.constant 0 : i32
    return %c0_i32, %c0_i32_0 : i32, i32
  }
  func.func @transform_12(%arg0: i32) -> (i32, i32) {
    %c0_i32 = arith.constant 0 : i32
    %c0_i32_0 = arith.constant 0 : i32
    %c0_i32_1 = arith.constant 0 : i32
    return %c0_i32, %c0_i32_0 : i32, i32
  }
  func.func @transform_13(%arg0: i32) -> (i32, i32) {
    %c0_i32 = arith.constant 0 : i32
    %c0_i32_0 = arith.constant 0 : i32
    return %arg0, %c0_i32 : i32, i32
  }
  func.func @transform_14(%arg0: i32) -> (i32, i32) {
    %c0_i32 = arith.constant 0 : i32
    %c0_i32_0 = arith.constant 0 : i32
    return %arg0, %c0_i32 : i32, i32
  }
}

</mosaic_0001>

<llo_original>
// kernel: tpu_custom_call.1
$region0: #{tpu_custom_call.1}
  #allocation0 [shape = 'u32[]', space=smem, size = 0x4, offset = 0x4, fixed_abs, tag = 'smem constant byte address 0x4 - core index']
  #allocation1 [shape = 'u32[144,128]{1,0:T(1,128)}', space=vmem, size = 0x12000, scoped, tag = 'internal scratch']
  %s0 = inlined_call_operand.vmem [shape: bf16[8,1920], index: 0, kind: input, shape index: {}]
  %s1 = inlined_call_operand.hbm [shape: bf16[1920,256], index: 1, kind: input, shape index: {}]
  %s2 = inlined_call_operand.vmem [shape: f32[1,256], index: 2, kind: input, shape index: {}]
  %s3 = inlined_call_operand.vmem [shape: bf16[256,16], index: 3, kind: input, shape index: {}]
  %s4 = inlined_call_operand.vmem [shape: f32[1,16], index: 4, kind: input, shape index: {}]
  %s5 = inlined_call_operand.vmem [shape: bf16[16,2], index: 5, kind: input, shape index: {}]
  %s6 = inlined_call_operand.vmem [shape: f32[1,2], index: 6, kind: input, shape index: {}]
  %s7 = inlined_call_operand.vmem [shape: bf16[2,16], index: 7, kind: input, shape index: {}]
  %s8 = inlined_call_operand.vmem [shape: f32[1,16], index: 8, kind: input, shape index: {}]
  %s9 = inlined_call_operand.vmem [shape: bf16[16,256], index: 9, kind: input, shape index: {}]
  %s10 = inlined_call_operand.vmem [shape: f32[1,256], index: 10, kind: input, shape index: {}]
  %s11 = inlined_call_operand.hbm [shape: bf16[256,1920], index: 11, kind: input, shape index: {}]
  %s12 = inlined_call_operand.vmem [shape: f32[1,1920], index: 12, kind: input, shape index: {}]
  %s13 = inlined_call_operand.vmem [shape: f32[8,2], index: 13, kind: output, shape index: {0}]
  %s14 = inlined_call_operand.hbm [shape: f32[8,1920], index: 14, kind: output, shape index: {1}]
  %15 = xla_tuple %s13, %s14
  %s16 = sld [smem:[#allocation0]]
  $region78: #{tpu_custom_call.1} parent=0
    _
  %s18 = ssub.s32 1, %s16
  %s19 = scalar_select 0, %s18, %s16
  $region1: #{tpu_custom_call.1} parent=0
    #allocation2 [shape = 'u8[983040]{0}', space=vmem, size = 0xf0000, scoped, tag = 'input window, operand 1, single buffered']
    #allocation3 [shape = 's32[1]{0}', space=sflag, size = 0x4, scoped, tag = 'scoped memory for tpu_custom_call.1']
    #allocation4 [shape = 's32[1]{0}', space=sflag, size = 0x4, scoped, tag = 'scoped memory for tpu_custom_call.1']
    #allocation5 [shape = 'u8[983040]{0}', space=vmem, size = 0xf0000, scoped, tag = 'input window, operand 11, single buffered']
    #allocation6 [shape = 's32[1]{0}', space=sflag, size = 0x4, scoped, tag = 'scoped memory for tpu_custom_call.1']
    #allocation7 [shape = 'u8[61440]{0}', space=vmem, size = 0xf000, scoped, tag = 'output window, operand 1, single buffered']
    %20 = vsyncpa [#allocation3], 0
    %21 = vsyncpa [#allocation6], 0
    %22 = vsyncpa [#allocation4], 0
    // Predicated region
    $region2: #{tpu_custom_call.1} parent=1 // pred_check
      _
    $region3: #{tpu_custom_call.1} parent=1 // pred_check_branch
      %24 = sbr.rel (0) target = $region5
    $region4: #{tpu_custom_call.1} parent=1 // pred_region
      _
    $region5: #{tpu_custom_call.1} parent=1 // pred_fallthru
      _
    // Predicated region
    $region6: #{tpu_custom_call.1} parent=1 // pred_check
      _
    $region7: #{tpu_custom_call.1} parent=1 // pred_check_branch
      %26 = sbr.rel (0) target = $region9
    $region8: #{tpu_custom_call.1} parent=1 // pred_region
      %s28 = ssub.s32 30720, 30720
      %29 = vsyncadd [#allocation3], %s28
      %s30 = sshll.u32 [#allocation2], 4
      %s31 = int_to_ptr.vmem [resolvable:$true] %s30
      %36 = dma.hbm_to_vmem [thread:$0]  %s1, 30720, %s31, [#allocation3], 128, 128, 8
    $region9: #{tpu_custom_call.1} parent=1 // pred_fallthru
      _
    // Predicated region
    $region10: #{tpu_custom_call.1} parent=1 // pred_check
      _
    $region11: #{tpu_custom_call.1} parent=1 // pred_check_branch
      %38 = sbr.rel (0) target = $region13
    $region12: #{tpu_custom_call.1} parent=1 // pred_region
      _
    $region13: #{tpu_custom_call.1} parent=1 // pred_fallthru
      _
    // Predicated region
    $region14: #{tpu_custom_call.1} parent=1 // pred_check
      _
    $region15: #{tpu_custom_call.1} parent=1 // pred_check_branch
      %40 = sbr.rel (0) target = $region17
    $region16: #{tpu_custom_call.1} parent=1 // pred_region
      _
    $region17: #{tpu_custom_call.1} parent=1 // pred_fallthru
      _
    // Predicated region
    $region18: #{tpu_custom_call.1} parent=1 // pred_check
      _
    $region19: #{tpu_custom_call.1} parent=1 // pred_check_branch
      %42 = sbr.rel (0) target = $region21
    $region20: #{tpu_custom_call.1} parent=1 // pred_region
      _
    $region21: #{tpu_custom_call.1} parent=1 // pred_fallthru
      _
    // Predicated region
    $region22: #{tpu_custom_call.1} parent=1 // pred_check
      _
    $region23: #{tpu_custom_call.1} parent=1 // pred_check_branch
      %44 = sbr.rel (0) target = $region25
    $region24: #{tpu_custom_call.1} parent=1 // pred_region
      _
    $region25: #{tpu_custom_call.1} parent=1 // pred_fallthru
      _
    // Predicated region
    $region26: #{tpu_custom_call.1} parent=1 // pred_check
      _
    $region27: #{tpu_custom_call.1} parent=1 // pred_check_branch
      %46 = sbr.rel (0) target = $region29
    $region28: #{tpu_custom_call.1} parent=1 // pred_region
      _
    $region29: #{tpu_custom_call.1} parent=1 // pred_fallthru
      _
    // Predicated region
    $region30: #{tpu_custom_call.1} parent=1 // pred_check
      _
    $region31: #{tpu_custom_call.1} parent=1 // pred_check_branch
      %48 = sbr.rel (0) target = $region33
    $region32: #{tpu_custom_call.1} parent=1 // pred_region
      _
    $region33: #{tpu_custom_call.1} parent=1 // pred_fallthru
      _
    // Predicated region
    $region34: #{tpu_custom_call.1} parent=1 // pred_check
      _
    $region35: #{tpu_custom_call.1} parent=1 // pred_check_branch
      %50 = sbr.rel (0) target = $region37
    $region36: #{tpu_custom_call.1} parent=1 // pred_region
      _
    $region37: #{tpu_custom_call.1} parent=1 // pred_fallthru
      _
    // Predicated region
    $region38: #{tpu_custom_call.1} parent=1 // pred_check
      _
    $region39: #{tpu_custom_call.1} parent=1 // pred_check_branch
      %52 = sbr.rel (0) target = $region41
    $region40: #{tpu_custom_call.1} parent=1 // pred_region
      _
    $region41: #{tpu_custom_call.1} parent=1 // pred_fallthru
      _
    // Predicated region
    $region42: #{tpu_custom_call.1} parent=1 // pred_check
      _
    $region43: #{tpu_custom_call.1} parent=1 // pred_check_branch
      %54 = sbr.rel (0) target = $region45
    $region44: #{tpu_custom_call.1} parent=1 // pred_region
      _
    $region45: #{tpu_custom_call.1} parent=1 // pred_fallthru
      _
    // Predicated region
    $region46: #{tpu_custom_call.1} parent=1 // pred_check
      _
    $region47: #{tpu_custom_call.1} parent=1 // pred_check_branch
      %56 = sbr.rel (0) target = $region49
    $region48: #{tpu_custom_call.1} parent=1 // pred_region
      %s58 = ssub.s32 30720, 30720
      %59 = vsyncadd [#allocation6], %s58
      %s60 = sshll.u32 [#allocation5], 4
      %s61 = int_to_ptr.vmem [resolvable:$true] %s60
      %66 = dma.hbm_to_vmem [thread:$0]  %s11, 30720, %s61, [#allocation6], 960, 960, 60
    $region49: #{tpu_custom_call.1} parent=1 // pred_fallthru
      _
    // Predicated region
    $region50: #{tpu_custom_call.1} parent=1 // pred_check
      _
    $region51: #{tpu_custom_call.1} parent=1 // pred_check_branch
      %68 = sbr.rel (0) target = $region53
    $region52: #{tpu_custom_call.1} parent=1 // pred_region
      _
    $region53: #{tpu_custom_call.1} parent=1 // pred_fallthru
      _
    // Predicated region
    $region54: #{tpu_custom_call.1} parent=1 // pred_check
      _
    $region55: #{tpu_custom_call.1} parent=1 // pred_check_branch
      %70 = sbr.rel (0) target = $region57
    $region56: #{tpu_custom_call.1} parent=1 // pred_region
      %71 = dma.done [#allocation3], 30720
    $region57: #{tpu_custom_call.1} parent=1 // pred_fallthru
      _
    // Predicated region
    $region58: #{tpu_custom_call.1} parent=1 // pred_check
      _
    $region59: #{tpu_custom_call.1} parent=1 // pred_check_branch
      %73 = sbr.rel (0) target = $region61
    $region60: #{tpu_custom_call.1} parent=1 // pred_region
      %74 = dma.done [#allocation6], 30720
    $region61: #{tpu_custom_call.1} parent=1 // pred_fallthru
      _
    %v76 = vld [vmem:[%s0] sm:$0xff]
    %v77 = vld [vmem:[%s0 + $0x8] sm:$0xff]
    %v78 = vld [vmem:[%s0 + $0x10] sm:$0xff]
    %v79 = vld [vmem:[%s0 + $0x18] sm:$0xff]
    %v80 = vld [vmem:[%s0 + $0x20] sm:$0xff]
    %v81 = vld [vmem:[%s0 + $0x28] sm:$0xff]
    %v82 = vld [vmem:[%s0 + $0x30] sm:$0xff]
    %v83 = vld [vmem:[%s0 + $0x38] sm:$0xf]
    %v84 = vld [vmem:[#allocation2] sm:$0xff]
    %v85 = vld [vmem:[#allocation2 + $0x8] sm:$0xff]
    %v86 = vld [vmem:[#allocation2 + $0x10] sm:$0xff]
    %v87 = vld [vmem:[#allocation2 + $0x18] sm:$0xff]
    %v88 = vld [vmem:[#allocation2 + $0x20] sm:$0xff]
    %v89 = vld [vmem:[#allocation2 + $0x28] sm:$0xff]
    %v90 = vld [vmem:[#allocation2 + $0x30] sm:$0xff]
    %v91 = vld [vmem:[#allocation2 + $0x38] sm:$0xff]
    %v92 = vld [vmem:[#allocation2 + $0x40] sm:$0xff]
    %v93 = vld [vmem:[#allocation2 + $0x48] sm:$0xff]
    %v94 = vld [vmem:[#allocation2 + $0x50] sm:$0xff]
    %v95 = vld [vmem:[#allocation2 + $0x58] sm:$0xff]
    %v96 = vld [vmem:[#allocation2 + $0x60] sm:$0xff]
    %v97 = vld [vmem:[#allocation2 + $0x68] sm:$0xff]
    %v98 = vld [vmem:[#allocation2 + $0x70] sm:$0xff]
    %v99 = vld [vmem:[#allocation2 + $0x78] sm:$0xff]
    %v100 = vld [vmem:[#allocation2 + $0x80] sm:$0xff]
    %v101 = vld [vmem:[#allocation2 + $0x88] sm:$0xff]
    %v102 = vld [vmem:[#allocation2 + $0x90] sm:$0xff]
    %v103 = vld [vmem:[#allocation2 + $0x98] sm:$0xff]
    %v104 = vld [vmem:[#allocation2 + $0xa0] sm:$0xff]
    %v105 = vld [vmem:[#allocation2 + $0xa8] sm:$0xff]
    %v106 = vld [vmem:[#allocation2 + $0xb0] sm:$0xff]
    %v107 = vld [vmem:[#allocation2 + $0xb8] sm:$0xff]
    %v108 = vld [vmem:[#allocation2 + $0xc0] sm:$0xff]
    %v109 = vld [vmem:[#allocation2 + $0xc8] sm:$0xff]
    %v110 = vld [vmem:[#allocation2 + $0xd0] sm:$0xff]
    %v111 = vld [vmem:[#allocation2 + $0xd8] sm:$0xff]
    %v112 = vld [vmem:[#allocation2 + $0xe0] sm:$0xff]
    %v113 = vld [vmem:[#allocation2 + $0xe8] sm:$0xff]
    %v114 = vld [vmem:[#allocation2 + $0xf0] sm:$0xff]
    %v115 = vld [vmem:[#allocation2 + $0xf8] sm:$0xff]
    %v116 = vld [vmem:[#allocation2 + $0x100] sm:$0xff]
    %v117 = vld [vmem:[#allocation2 + $0x108] sm:$0xff]
    %v118 = vld [vmem:[#allocation2 + $0x110] sm:$0xff]
    %v119 = vld [vmem:[#allocation2 + $0x118] sm:$0xff]
    %v120 = vld [vmem:[#allocation2 + $0x120] sm:$0xff]
    %v121 = vld [vmem:[#allocation2 + $0x128] sm:$0xff]
    %v122 = vld [vmem:[#allocation2 + $0x130] sm:$0xff]
    %v123 = vld [vmem:[#allocation2 + $0x138] sm:$0xff]
    %v124 = vld [vmem:[#allocation2 + $0x140] sm:$0xff]
    %v125 = vld [vmem:[#allocation2 + $0x148] sm:$0xff]
    %v126 = vld [vmem:[#allocation2 + $0x150] sm:$0xff]
    %v127 = vld [vmem:[#allocation2 + $0x158] sm:$0xff]
    %v128 = vld [vmem:[#allocation2 + $0x160] sm:$0xff]
    %v129 = vld [vmem:[#allocation2 + $0x168] sm:$0xff]
    %v130 = vld [vmem:[#allocation2 + $0x170] sm:$0xff]
    %v131 = vld [vmem:[#allocation2 + $0x178] sm:$0xff]
    %v132 = vld [vmem:[#allocation2 + $0x180] sm:$0xff]
    %v133 = vld [vmem:[#allocation2 + $0x188] sm:$0xff]
    %v134 = vld [vmem:[#allocation2 + $0x190] sm:$0xff]
    %v135 = vld [vmem:[#allocation2 + $0x198] sm:$0xff]
    %v136 = vld [vmem:[#allocation2 + $0x1a0] sm:$0xff]
    %v137 = vld [vmem:[#allocation2 + $0x1a8] sm:$0xff]
    %v138 = vld [vmem:[#allocation2 + $0x1b0] sm:$0xff]
    %v139 = vld [vmem:[#allocation2 + $0x1b8] sm:$0xff]
    %v140 = vld [vmem:[#allocation2 + $0x1c0] sm:$0xff]
    %v141 = vld [vmem:[#allocation2 + $0x1c8] sm:$0xff]
    %v142 = vld [vmem:[#allocation2 + $0x1d0] sm:$0xff]
    %v143 = vld [vmem:[#allocation2 + $0x1d8] sm:$0xff]
    %v144 = vld [vmem:[#allocation2 + $0x1e0] sm:$0xff]
    %v145 = vld [vmem:[#allocation2 + $0x1e8] sm:$0xff]
    %v146 = vld [vmem:[#allocation2 + $0x1f0] sm:$0xff]
    %v147 = vld [vmem:[#allocation2 + $0x1f8] sm:$0xff]
    %v148 = vld [vmem:[#allocation2 + $0x200] sm:$0xff]
    %v149 = vld [vmem:[#allocation2 + $0x208] sm:$0xff]
    %v150 = vld [vmem:[#allocation2 + $0x210] sm:$0xff]
    %v151 = vld [vmem:[#allocation2 + $0x218] sm:$0xff]
    %v152 = vld [vmem:[#allocation2 + $0x220] sm:$0xff]
    %v153 = vld [vmem:[#allocation2 + $0x228] sm:$0xff]
    %v154 = vld [vmem:[#allocation2 + $0x230] sm:$0xff]
    %v155 = vld [vmem:[#allocation2 + $0x238] sm:$0xff]
    %v156 = vld [vmem:[#allocation2 + $0x240] sm:$0xff]
    %v157 = vld [vmem:[#allocation2 + $0x248] sm:$0xff]
    %v158 = vld [vmem:[#allocation2 + $0x250] sm:$0xff]
    %v159 = vld [vmem:[#allocation2 + $0x258] sm:$0xff]
    %v160 = vld [vmem:[#allocation2 + $0x260] sm:$0xff]
    %v161 = vld [vmem:[#allocation2 + $0x268] sm:$0xff]
    %v162 = vld [vmem:[#allocation2 + $0x270] sm:$0xff]
    %v163 = vld [vmem:[#allocation2 + $0x278] sm:$0xff]
    %v164 = vld [vmem:[#allocation2 + $0x280] sm:$0xff]
    %v165 = vld [vmem:[#allocation2 + $0x288] sm:$0xff]
    %v166 = vld [vmem:[#allocation2 + $0x290] sm:$0xff]
    %v167 = vld [vmem:[#allocation2 + $0x298] sm:$0xff]
    %v168 = vld [vmem:[#allocation2 + $0x2a0] sm:$0xff]
    %v169 = vld [vmem:[#allocation2 + $0x2a8] sm:$0xff]
    %v170 = vld [vmem:[#allocation2 + $0x2b0] sm:$0xff]
    %v171 = vld [vmem:[#allocation2 + $0x2b8] sm:$0xff]
    %v172 = vld [vmem:[#allocation2 + $0x2c0] sm:$0xff]
    %v173 = vld [vmem:[#allocation2 + $0x2c8] sm:$0xff]
    %v174 = vld [vmem:[#allocation2 + $0x2d0] sm:$0xff]
    %v175 = vld [vmem:[#allocation2 + $0x2d8] sm:$0xff]
    %v176 = vld [vmem:[#allocation2 + $0x2e0] sm:$0xff]
    %v177 = vld [vmem:[#allocation2 + $0x2e8] sm:$0xff]
    %v178 = vld [vmem:[#allocation2 + $0x2f0] sm:$0xff]
    %v179 = vld [vmem:[#allocation2 + $0x2f8] sm:$0xff]
    %v180 = vld [vmem:[#allocation2 + $0x300] sm:$0xff]
    %v181 = vld [vmem:[#allocation2 + $0x308] sm:$0xff]
    %v182 = vld [vmem:[#allocation2 + $0x310] sm:$0xff]
    %v183 = vld [vmem:[#allocation2 + $0x318] sm:$0xff]
    %v184 = vld [vmem:[#allocation2 + $0x320] sm:$0xff]
    %v185 = vld [vmem:[#allocation2 + $0x328] sm:$0xff]
    %v186 = vld [vmem:[#allocation2 + $0x330] sm:$0xff]
    %v187 = vld [vmem:[#allocation2 + $0x338] sm:$0xff]
    %v188 = vld [vmem:[#allocation2 + $0x340] sm:$0xff]
    %v189 = vld [vmem:[#allocation2 + $0x348] sm:$0xff]
    %v190 = vld [vmem:[#allocation2 + $0x350] sm:$0xff]
    %v191 = vld [vmem:[#allocation2 + $0x358] sm:$0xff]
    %v192 = vld [vmem:[#allocation2 + $0x360] sm:$0xff]
    %v193 = vld [vmem:[#allocation2 + $0x368] sm:$0xff]
    %v194 = vld [vmem:[#allocation2 + $0x370] sm:$0xff]
    %v195 = vld [vmem:[#allocation2 + $0x378] sm:$0xff]
    %v196 = vld [vmem:[#allocation2 + $0x380] sm:$0xff]
    %v197 = vld [vmem:[#allocation2 + $0x388] sm:$0xff]
    %v198 = vld [vmem:[#allocation2 + $0x390] sm:$0xff]
    %v199 = vld [vmem:[#allocation2 + $0x398] sm:$0xff]
    %v200 = vld [vmem:[#allocation2 + $0x3a0] sm:$0xff]
    %v201 = vld [vmem:[#allocation2 + $0x3a8] sm:$0xff]
    %v202 = vld [vmem:[#allocation2 + $0x3b0] sm:$0xff]
    %v203 = vld [vmem:[#allocation2 + $0x3b8] sm:$0xff]
    %v204 = vld [vmem:[#allocation2 + $0x3c0] sm:$0xff]
    %v205 = vld [vmem:[#allocation2 + $0x3c8] sm:$0xff]
    %v206 = vld [vmem:[#allocation2 + $0x3d0] sm:$0xff]
    %v207 = vld [vmem:[#allocation2 + $0x3d8] sm:$0xff]
    %v208 = vld [vmem:[#allocation2 + $0x3e0] sm:$0xff]
    %v209 = vld [vmem:[#allocation2 + $0x3e8] sm:$0xff]
    %v210 = vld [vmem:[#allocation2 + $0x3f0] sm:$0xff]
    %v211 = vld [vmem:[#allocation2 + $0x3f8] sm:$0xff]
    %v212 = vld [vmem:[#allocation2 + $0x400] sm:$0xff]
    %v213 = vld [vmem:[#allocation2 + $0x408] sm:$0xff]
    %v214 = vld [vmem:[#allocation2 + $0x410] sm:$0xff]
    %v215 = vld [vmem:[#allocation2 + $0x418] sm:$0xff]
    %v216 = vld [vmem:[#allocation2 + $0x420] sm:$0xff]
    %v217 = vld [vmem:[#allocation2 + $0x428] sm:$0xff]
    %v218 = vld [vmem:[#allocation2 + $0x430] sm:$0xff]
    %v219 = vld [vmem:[#allocation2 + $0x438] sm:$0xff]
    %v220 = vld [vmem:[#allocation2 + $0x440] sm:$0xff]
    %v221 = vld [vmem:[#allocation2 + $0x448] sm:$0xff]
    %v222 = vld [vmem:[#allocation2 + $0x450] sm:$0xff]
    %v223 = vld [vmem:[#allocation2 + $0x458] sm:$0xff]
    %v224 = vld [vmem:[#allocation2 + $0x460] sm:$0xff]
    %v225 = vld [vmem:[#allocation2 + $0x468] sm:$0xff]
    %v226 = vld [vmem:[#allocation2 + $0x470] sm:$0xff]
    %v227 = vld [vmem:[#allocation2 + $0x478] sm:$0xff]
    %v228 = vld [vmem:[#allocation2 + $0x480] sm:$0xff]
    %v229 = vld [vmem:[#allocation2 + $0x488] sm:$0xff]
    %v230 = vld [vmem:[#allocation2 + $0x490] sm:$0xff]
    %v231 = vld [vmem:[#allocation2 + $0x498] sm:$0xff]
    %v232 = vld [vmem:[#allocation2 + $0x4a0] sm:$0xff]
    %v233 = vld [vmem:[#allocation2 + $0x4a8] sm:$0xff]
    %v234 = vld [vmem:[#allocation2 + $0x4b0] sm:$0xff]
    %v235 = vld [vmem:[#allocation2 + $0x4b8] sm:$0xff]
    %v236 = vld [vmem:[#allocation2 + $0x4c0] sm:$0xff]
    %v237 = vld [vmem:[#allocation2 + $0x4c8] sm:$0xff]
    %v238 = vld [vmem:[#allocation2 + $0x4d0] sm:$0xff]
    %v239 = vld [vmem:[#allocation2 + $0x4d8] sm:$0xff]
    %v240 = vld [vmem:[#allocation2 + $0x4e0] sm:$0xff]
    %v241 = vld [vmem:[#allocation2 + $0x4e8] sm:$0xff]
    %v242 = vld [vmem:[#allocation2 + $0x4f0] sm:$0xff]
    %v243 = vld [vmem:[#allocation2 + $0x4f8] sm:$0xff]
    %v244 = vld [vmem:[#allocation2 + $0x500] sm:$0xff]
    %v245 = vld [vmem:[#allocation2 + $0x508] sm:$0xff]
    %v246 = vld [vmem:[#allocation2 + $0x510] sm:$0xff]
    %v247 = vld [vmem:[#allocation2 + $0x518] sm:$0xff]
    %v248 = vld [vmem:[#allocation2 + $0x520] sm:$0xff]
    %v249 = vld [vmem:[#allocation2 + $0x528] sm:$0xff]
    %v250 = vld [vmem:[#allocation2 + $0x530] sm:$0xff]
    %v251 = vld [vmem:[#allocation2 + $0x538] sm:$0xff]
    %v252 = vld [vmem:[#allocation2 + $0x540] sm:$0xff]
    %v253 = vld [vmem:[#allocation2 + $0x548] sm:$0xff]
    %v254 = vld [vmem:[#allocation2 + $0x550] sm:$0xff]
    %v255 = vld [vmem:[#allocation2 + $0x558] sm:$0xff]
    %v256 = vld [vmem:[#allocation2 + $0x560] sm:$0xff]
    %v257 = vld [vmem:[#allocation2 + $0x568] sm:$0xff]
    %v258 = vld [vmem:[#allocation2 + $0x570] sm:$0xff]
    %v259 = vld [vmem:[#allocation2 + $0x578] sm:$0xff]
    %v260 = vld [vmem:[#allocation2 + $0x580] sm:$0xff]
    %v261 = vld [vmem:[#allocation2 + $0x588] sm:$0xff]
    %v262 = vld [vmem:[#allocation2 + $0x590] sm:$0xff]
    %v263 = vld [vmem:[#allocation2 + $0x598] sm:$0xff]
    %v264 = vld [vmem:[#allocation2 + $0x5a0] sm:$0xff]
    %v265 = vld [vmem:[#allocation2 + $0x5a8] sm:$0xff]
    %v266 = vld [vmem:[#allocation2 + $0x5b0] sm:$0xff]
    %v267 = vld [vmem:[#allocation2 + $0x5b8] sm:$0xff]
    %v268 = vld [vmem:[#allocation2 + $0x5c0] sm:$0xff]
    %v269 = vld [vmem:[#allocation2 + $0x5c8] sm:$0xff]
    %v270 = vld [vmem:[#allocation2 + $0x5d0] sm:$0xff]
    %v271 = vld [vmem:[#allocation2 + $0x5d8] sm:$0xff]
    %v272 = vld [vmem:[#allocation2 + $0x5e0] sm:$0xff]
    %v273 = vld [vmem:[#allocation2 + $0x5e8] sm:$0xff]
    %v274 = vld [vmem:[#allocation2 + $0x5f0] sm:$0xff]
    %v275 = vld [vmem:[#allocation2 + $0x5f8] sm:$0xff]
    %v276 = vld [vmem:[#allocation2 + $0x600] sm:$0xff]
    %v277 = vld [vmem:[#allocation2 + $0x608] sm:$0xff]
    %v278 = vld [vmem:[#allocation2 + $0x610] sm:$0xff]
    %v279 = vld [vmem:[#allocation2 + $0x618] sm:$0xff]
    %v280 = vld [vmem:[#allocation2 + $0x620] sm:$0xff]
    %v281 = vld [vmem:[#allocation2 + $0x628] sm:$0xff]
    %v282 = vld [vmem:[#allocation2 + $0x630] sm:$0xff]
    %v283 = vld [vmem:[#allocation2 + $0x638] sm:$0xff]
    %v284 = vld [vmem:[#allocation2 + $0x640] sm:$0xff]
    %v285 = vld [vmem:[#allocation2 + $0x648] sm:$0xff]
    %v286 = vld [vmem:[#allocation2 + $0x650] sm:$0xff]
    %v287 = vld [vmem:[#allocation2 + $0x658] sm:$0xff]
    %v288 = vld [vmem:[#allocation2 + $0x660] sm:$0xff]
    %v289 = vld [vmem:[#allocation2 + $0x668] sm:$0xff]
    %v290 = vld [vmem:[#allocation2 + $0x670] sm:$0xff]
    %v291 = vld [vmem:[#allocation2 + $0x678] sm:$0xff]
    %v292 = vld [vmem:[#allocation2 + $0x680] sm:$0xff]
    %v293 = vld [vmem:[#allocation2 + $0x688] sm:$0xff]
    %v294 = vld [vmem:[#allocation2 + $0x690] sm:$0xff]
    %v295 = vld [vmem:[#allocation2 + $0x698] sm:$0xff]
    %v296 = vld [vmem:[#allocation2 + $0x6a0] sm:$0xff]
    %v297 = vld [vmem:[#allocation2 + $0x6a8] sm:$0xff]
    %v298 = vld [vmem:[#allocation2 + $0x6b0] sm:$0xff]
    %v299 = vld [vmem:[#allocation2 + $0x6b8] sm:$0xff]
    %v300 = vld [vmem:[#allocation2 + $0x6c0] sm:$0xff]
    %v301 = vld [vmem:[#allocation2 + $0x6c8] sm:$0xff]
    %v302 = vld [vmem:[#allocation2 + $0x6d0] sm:$0xff]
    %v303 = vld [vmem:[#allocation2 + $0x6d8] sm:$0xff]
    %v304 = vld [vmem:[#allocation2 + $0x6e0] sm:$0xff]
    %v305 = vld [vmem:[#allocation2 + $0x6e8] sm:$0xff]
    %v306 = vld [vmem:[#allocation2 + $0x6f0] sm:$0xff]
    %v307 = vld [vmem:[#allocation2 + $0x6f8] sm:$0xff]
    %v308 = vld [vmem:[#allocation2 + $0x700] sm:$0xff]
    %v309 = vld [vmem:[#allocation2 + $0x708] sm:$0xff]
    %v310 = vld [vmem:[#allocation2 + $0x710] sm:$0xff]
    %v311 = vld [vmem:[#allocation2 + $0x718] sm:$0xff]
    %v312 = vld [vmem:[#allocation2 + $0x720] sm:$0xff]
    %v313 = vld [vmem:[#allocation2 + $0x728] sm:$0xff]
    %v314 = vld [vmem:[#allocation2 + $0x730] sm:$0xff]
    %v315 = vld [vmem:[#allocation2 + $0x738] sm:$0xff]
    %v316 = vld [vmem:[#allocation2 + $0x740] sm:$0xff]
    %v317 = vld [vmem:[#allocation2 + $0x748] sm:$0xff]
    %v318 = vld [vmem:[#allocation2 + $0x750] sm:$0xff]
    %v319 = vld [vmem:[#allocation2 + $0x758] sm:$0xff]
    %v320 = vld [vmem:[#allocation2 + $0x760] sm:$0xff]
    %v321 = vld [vmem:[#allocation2 + $0x768] sm:$0xff]
    %v322 = vld [vmem:[#allocation2 + $0x770] sm:$0xff]
    %v323 = vld [vmem:[#allocation2 + $0x778] sm:$0xff]
    %v324 = vld [vmem:[%s2] sm:$0x3]
    %v326 = vlaneseq
    %v327 = vshrl.u32 %v326, 7
    %v328 = vsub.s32 0, %v327
    %v329 = vrot.slane %v324, %v328
    %v330 = vlaneseq
    %v331 = vshrl.u32 %v330, 7
    %v332 = vsub.s32 1, %v331
    %v333 = vrot.slane %v324, %v332
    %v344 = vunpack.c.l.b16 %v76
    %v345 = vunpack.c.h.b16 %v76
    %v346 = vunpack.c.l.b16 %v77
    %v347 = vunpack.c.h.b16 %v77
    %v348 = vunpack.c.l.b16 %v78
    %v349 = vunpack.c.h.b16 %v78
    %v350 = vunpack.c.l.b16 %v79
    %v351 = vunpack.c.h.b16 %v79
    %v352 = vunpack.c.l.b16 %v80
    %v353 = vunpack.c.h.b16 %v80
    %v354 = vunpack.c.l.b16 %v81
    %v355 = vunpack.c.h.b16 %v81
    %v356 = vunpack.c.l.b16 %v82
    %v357 = vunpack.c.h.b16 %v82
    %v358 = vunpack.c.l.b16 %v83
    %v359 = vpack.c.b16 %v344, %v344
    %v360 = vpack.c.b16 %v345, %v345
    %v361 = vpack.c.b16 %v346, %v346
    %v362 = vpack.c.b16 %v347, %v347
    %v363 = vpack.c.b16 %v348, %v348
    %v364 = vpack.c.b16 %v349, %v349
    %v365 = vpack.c.b16 %v350, %v350
    %v366 = vpack.c.b16 %v351, %v351
    %v367 = vpack.c.b16 %v352, %v352
    %v368 = vpack.c.b16 %v353, %v353
    %v369 = vpack.c.b16 %v354, %v354
    %v370 = vpack.c.b16 %v355, %v355
    %v371 = vpack.c.b16 %v356, %v356
    %v372 = vpack.c.b16 %v357, %v357
    %v373 = vpack.c.b16 %v358, %v358
    %v629 = vunpack.c.l.b16 %v84
    %v630 = vunpack.c.h.b16 %v84
    %v631 = vunpack.c.l.b16 %v85
    %v632 = vunpack.c.h.b16 %v85
    %v633 = vunpack.c.l.b16 %v86
    %v634 = vunpack.c.h.b16 %v86
    %v635 = vunpack.c.l.b16 %v87
    %v636 = vunpack.c.h.b16 %v87
    %v637 = vunpack.c.l.b16 %v88
    %v638 = vunpack.c.h.b16 %v88
    %v639 = vunpack.c.l.b16 %v89
    %v640 = vunpack.c.h.b16 %v89
    %v641 = vunpack.c.l.b16 %v90
    %v642 = vunpack.c.h.b16 %v90
    %v643 = vunpack.c.l.b16 %v91
    %v644 = vunpack.c.h.b16 %v91
    %v645 = vunpack.c.l.b16 %v92
    %v646 = vunpack.c.h.b16 %v92
    %v647 = vunpack.c.l.b16 %v93
    %v648 = vunpack.c.h.b16 %v93
    %v649 = vunpack.c.l.b16 %v94
    %v650 = vunpack.c.h.b16 %v94
    %v651 = vunpack.c.l.b16 %v95
    %v652 = vunpack.c.h.b16 %v95
    %v653 = vunpack.c.l.b16 %v96
    %v654 = vunpack.c.h.b16 %v96
    %v655 = vunpack.c.l.b16 %v97
    %v656 = vunpack.c.h.b16 %v97
    %v657 = vunpack.c.l.b16 %v98
    %v658 = vunpack.c.h.b16 %v98
    %v659 = vunpack.c.l.b16 %v99
    %v660 = vunpack.c.h.b16 %v99
    %v661 = vunpack.c.l.b16 %v100
    %v662 = vunpack.c.h.b16 %v100
    %v663 = vunpack.c.l.b16 %v101
    %v664 = vunpack.c.h.b16 %v101
    %v665 = vunpack.c.l.b16 %v102
    %v666 = vunpack.c.h.b16 %v102
    %v667 = vunpack.c.l.b16 %v103
    %v668 = vunpack.c.h.b16 %v103
    %v669 = vunpack.c.l.b16 %v104
    %v670 = vunpack.c.h.b16 %v104
    %v671 = vunpack.c.l.b16 %v105
    %v672 = vunpack.c.h.b16 %v105
    %v673 = vunpack.c.l.b16 %v106
    %v674 = vunpack.c.h.b16 %v106
    %v675 = vunpack.c.l.b16 %v107
    %v676 = vunpack.c.h.b16 %v107
    %v677 = vunpack.c.l.b16 %v108
    %v678 = vunpack.c.h.b16 %v108
    %v679 = vunpack.c.l.b16 %v109
    %v680 = vunpack.c.h.b16 %v109
    %v681 = vunpack.c.l.b16 %v110
    %v682 = vunpack.c.h.b16 %v110
    %v683 = vunpack.c.l.b16 %v111
    %v684 = vunpack.c.h.b16 %v111
    %v685 = vunpack.c.l.b16 %v112
    %v686 = vunpack.c.h.b16 %v112
    %v687 = vunpack.c.l.b16 %v113
    %v688 = vunpack.c.h.b16 %v113
    %v689 = vunpack.c.l.b16 %v114
    %v690 = vunpack.c.h.b16 %v114
    %v691 = vunpack.c.l.b16 %v115
    %v692 = vunpack.c.h.b16 %v115
    %v693 = vunpack.c.l.b16 %v116
    %v694 = vunpack.c.h.b16 %v116
    %v695 = vunpack.c.l.b16 %v117
    %v696 = vunpack.c.h.b16 %v117
    %v697 = vunpack.c.l.b16 %v118
    %v698 = vunpack.c.h.b16 %v118
    %v699 = vunpack.c.l.b16 %v119
    %v700 = vunpack.c.h.b16 %v119
    %v701 = vunpack.c.l.b16 %v120
    %v702 = vunpack.c.h.b16 %v120
    %v703 = vunpack.c.l.b16 %v121
    %v704 = vunpack.c.h.b16 %v121
    %v705 = vunpack.c.l.b16 %v122
    %v706 = vunpack.c.h.b16 %v122
    %v707 = vunpack.c.l.b16 %v123
    %v708 = vunpack.c.h.b16 %v123
    %v709 = vunpack.c.l.b16 %v124
    %v710 = vunpack.c.h.b16 %v124
    %v711 = vunpack.c.l.b16 %v125
    %v712 = vunpack.c.h.b16 %v125
    %v713 = vunpack.c.l.b16 %v126
    %v714 = vunpack.c.h.b16 %v126
    %v715 = vunpack.c.l.b16 %v127
    %v716 = vunpack.c.h.b16 %v127
    %v717 = vunpack.c.l.b16 %v128
    %v718 = vunpack.c.h.b16 %v128
    %v719 = vunpack.c.l.b16 %v129
    %v720 = vunpack.c.h.b16 %v129
    %v721 = vunpack.c.l.b16 %v130
    %v722 = vunpack.c.h.b16 %v130
    %v723 = vunpack.c.l.b16 %v131
    %v724 = vunpack.c.h.b16 %v131
    %v725 = vunpack.c.l.b16 %v132
    %v726 = vunpack.c.h.b16 %v132
    %v727 = vunpack.c.l.b16 %v133
    %v728 = vunpack.c.h.b16 %v133
    %v729 = vunpack.c.l.b16 %v134
    %v730 = vunpack.c.h.b16 %v134
    %v731 = vunpack.c.l.b16 %v135
    %v732 = vunpack.c.h.b16 %v135
    %v733 = vunpack.c.l.b16 %v136
    %v734 = vunpack.c.h.b16 %v136
    %v735 = vunpack.c.l.b16 %v137
    %v736 = vunpack.c.h.b16 %v137
    %v737 = vunpack.c.l.b16 %v138
    %v738 = vunpack.c.h.b16 %v138
    %v739 = vunpack.c.l.b16 %v139
    %v740 = vunpack.c.h.b16 %v139
    %v741 = vunpack.c.l.b16 %v140
    %v742 = vunpack.c.h.b16 %v140
    %v743 = vunpack.c.l.b16 %v141
    %v744 = vunpack.c.h.b16 %v141
    %v745 = vunpack.c.l.b16 %v142
    %v746 = vunpack.c.h.b16 %v142
    %v747 = vunpack.c.l.b16 %v143
    %v748 = vunpack.c.h.b16 %v143
    %v749 = vunpack.c.l.b16 %v144
    %v750 = vunpack.c.h.b16 %v144
    %v751 = vunpack.c.l.b16 %v145
    %v752 = vunpack.c.h.b16 %v145
    %v753 = vunpack.c.l.b16 %v146
    %v754 = vunpack.c.h.b16 %v146
    %v755 = vunpack.c.l.b16 %v147
    %v756 = vunpack.c.h.b16 %v147
    %v757 = vunpack.c.l.b16 %v148
    %v758 = vunpack.c.h.b16 %v148
    %v759 = vunpack.c.l.b16 %v149
    %v760 = vunpack.c.h.b16 %v149
    %v761 = vunpack.c.l.b16 %v150
    %v762 = vunpack.c.h.b16 %v150
    %v763 = vunpack.c.l.b16 %v151
    %v764 = vunpack.c.h.b16 %v151
    %v765 = vunpack.c.l.b16 %v152
    %v766 = vunpack.c.h.b16 %v152
    %v767 = vunpack.c.l.b16 %v153
    %v768 = vunpack.c.h.b16 %v153
    %v769 = vunpack.c.l.b16 %v154
    %v770 = vunpack.c.h.b16 %v154
    %v771 = vunpack.c.l.b16 %v155
    %v772 = vunpack.c.h.b16 %v155
    %v773 = vunpack.c.l.b16 %v156
    %v774 = vunpack.c.h.b16 %v156
    %v775 = vunpack.c.l.b16 %v157
    %v776 = vunpack.c.h.b16 %v157
    %v777 = vunpack.c.l.b16 %v158
    %v778 = vunpack.c.h.b16 %v158
    %v779 = vunpack.c.l.b16 %v159
    %v780 = vunpack.c.h.b16 %v159
    %v781 = vunpack.c.l.b16 %v160
    %v782 = vunpack.c.h.b16 %v160
    %v783 = vunpack.c.l.b16 %v161
    %v784 = vunpack.c.h.b16 %v161
    %v785 = vunpack.c.l.b16 %v162
    %v786 = vunpack.c.h.b16 %v162
    %v787 = vunpack.c.l.b16 %v163
    %v788 = vunpack.c.h.b16 %v163
    %v789 = vunpack.c.l.b16 %v164
    %v790 = vunpack.c.h.b16 %v164
    %v791 = vunpack.c.l.b16 %v165
    %v792 = vunpack.c.h.b16 %v165
    %v793 = vunpack.c.l.b16 %v166
    %v794 = vunpack.c.h.b16 %v166
    %v795 = vunpack.c.l.b16 %v167
    %v796 = vunpack.c.h.b16 %v167
    %v797 = vunpack.c.l.b16 %v168
    %v798 = vunpack.c.h.b16 %v168
    %v799 = vunpack.c.l.b16 %v169
    %v800 = vunpack.c.h.b16 %v169
    %v801 = vunpack.c.l.b16 %v170
    %v802 = vunpack.c.h.b16 %v170
    %v803 = vunpack.c.l.b16 %v171
    %v804 = vunpack.c.h.b16 %v171
    %v805 = vunpack.c.l.b16 %v172
    %v806 = vunpack.c.h.b16 %v172
    %v807 = vunpack.c.l.b16 %v173
    %v808 = vunpack.c.h.b16 %v173
    %v809 = vunpack.c.l.b16 %v174
    %v810 = vunpack.c.h.b16 %v174
    %v811 = vunpack.c.l.b16 %v175
    %v812 = vunpack.c.h.b16 %v175
    %v813 = vunpack.c.l.b16 %v176
    %v814 = vunpack.c.h.b16 %v176
    %v815 = vunpack.c.l.b16 %v177
    %v816 = vunpack.c.h.b16 %v177
    %v817 = vunpack.c.l.b16 %v178
    %v818 = vunpack.c.h.b16 %v178
    %v819 = vunpack.c.l.b16 %v179
    %v820 = vunpack.c.h.b16 %v179
    %v821 = vunpack.c.l.b16 %v180
    %v822 = vunpack.c.h.b16 %v180
    %v823 = vunpack.c.l.b16 %v181
    %v824 = vunpack.c.h.b16 %v181
    %v825 = vunpack.c.l.b16 %v182
    %v826 = vunpack.c.h.b16 %v182
    %v827 = vunpack.c.l.b16 %v183
    %v828 = vunpack.c.h.b16 %v183
    %v829 = vunpack.c.l.b16 %v184
    %v830 = vunpack.c.h.b16 %v184
    %v831 = vunpack.c.l.b16 %v185
    %v832 = vunpack.c.h.b16 %v185
    %v833 = vunpack.c.l.b16 %v186
    %v834 = vunpack.c.h.b16 %v186
    %v835 = vunpack.c.l.b16 %v187
    %v836 = vunpack.c.h.b16 %v187
    %v837 = vunpack.c.l.b16 %v188
    %v838 = vunpack.c.h.b16 %v188
    %v839 = vunpack.c.l.b16 %v189
    %v840 = vunpack.c.h.b16 %v189
    %v841 = vunpack.c.l.b16 %v190
    %v842 = vunpack.c.h.b16 %v190
    %v843 = vunpack.c.l.b16 %v191
    %v844 = vunpack.c.h.b16 %v191
    %v845 = vunpack.c.l.b16 %v192
    %v846 = vunpack.c.h.b16 %v192
    %v847 = vunpack.c.l.b16 %v193
    %v848 = vunpack.c.h.b16 %v193
    %v849 = vunpack.c.l.b16 %v194
    %v850 = vunpack.c.h.b16 %v194
    %v851 = vunpack.c.l.b16 %v195
    %v852 = vunpack.c.h.b16 %v195
    %v853 = vunpack.c.l.b16 %v196
    %v854 = vunpack.c.h.b16 %v196
    %v855 = vunpack.c.l.b16 %v197
    %v856 = vunpack.c.h.b16 %v197
    %v857 = vunpack.c.l.b16 %v198
    %v858 = vunpack.c.h.b16 %v198
    %v859 = vunpack.c.l.b16 %v199
    %v860 = vunpack.c.h.b16 %v199
    %v861 = vunpack.c.l.b16 %v200
    %v862 = vunpack.c.h.b16 %v200
    %v863 = vunpack.c.l.b16 %v201
    %v864 = vunpack.c.h.b16 %v201
    %v865 = vunpack.c.l.b16 %v202
    %v866 = vunpack.c.h.b16 %v202
    %v867 = vunpack.c.l.b16 %v203
    %v868 = vunpack.c.h.b16 %v203
    %v869 = vunpack.c.l.b16 %v204
    %v870 = vunpack.c.h.b16 %v204
    %v871 = vunpack.c.l.b16 %v205
    %v872 = vunpack.c.h.b16 %v205
    %v873 = vunpack.c.l.b16 %v206
    %v874 = vunpack.c.h.b16 %v206
    %v875 = vunpack.c.l.b16 %v207
    %v876 = vunpack.c.h.b16 %v207
    %v877 = vunpack.c.l.b16 %v208
    %v878 = vunpack.c.h.b16 %v208
    %v879 = vunpack.c.l.b16 %v209
    %v880 = vunpack.c.h.b16 %v209
    %v881 = vunpack.c.l.b16 %v210
    %v882 = vunpack.c.h.b16 %v210
    %v883 = vunpack.c.l.b16 %v211
    %v884 = vunpack.c.h.b16 %v211
    %v885 = vunpack.c.l.b16 %v212
    %v886 = vunpack.c.h.b16 %v212
    %v887 = vunpack.c.l.b16 %v213
    %v888 = vunpack.c.h.b16 %v213
    %v889 = vunpack.c.l.b16 %v214
    %v890 = vunpack.c.h.b16 %v214
    %v891 = vunpack.c.l.b16 %v215
    %v892 = vunpack.c.h.b16 %v215
    %v893 = vunpack.c.l.b16 %v216
    %v894 = vunpack.c.h.b16 %v216
    %v895 = vunpack.c.l.b16 %v217
    %v896 = vunpack.c.h.b16 %v217
    %v897 = vunpack.c.l.b16 %v218
    %v898 = vunpack.c.h.b16 %v218
    %v899 = vunpack.c.l.b16 %v219
    %v900 = vunpack.c.h.b16 %v219
    %v901 = vunpack.c.l.b16 %v220
    %v902 = vunpack.c.h.b16 %v220
    %v903 = vunpack.c.l.b16 %v221
    %v904 = vunpack.c.h.b16 %v221
    %v905 = vunpack.c.l.b16 %v222
    %v906 = vunpack.c.h.b16 %v222
    %v907 = vunpack.c.l.b16 %v223
    %v908 = vunpack.c.h.b16 %v223
    %v909 = vunpack.c.l.b16 %v224
    %v910 = vunpack.c.h.b16 %v224
    %v911 = vunpack.c.l.b16 %v225
    %v912 = vunpack.c.h.b16 %v225
    %v913 = vunpack.c.l.b16 %v226
    %v914 = vunpack.c.h.b16 %v226
    %v915 = vunpack.c.l.b16 %v227
    %v916 = vunpack.c.h.b16 %v227
    %v917 = vunpack.c.l.b16 %v228
    %v918 = vunpack.c.h.b16 %v228
    %v919 = vunpack.c.l.b16 %v229
    %v920 = vunpack.c.h.b16 %v229
    %v921 = vunpack.c.l.b16 %v230
    %v922 = vunpack.c.h.b16 %v230
    %v923 = vunpack.c.l.b16 %v231
    %v924 = vunpack.c.h.b16 %v231
    %v925 = vunpack.c.l.b16 %v232
    %v926 = vunpack.c.h.b16 %v232
    %v927 = vunpack.c.l.b16 %v233
    %v928 = vunpack.c.h.b16 %v233
    %v929 = vunpack.c.l.b16 %v234
    %v930 = vunpack.c.h.b16 %v234
    %v931 = vunpack.c.l.b16 %v235
    %v932 = vunpack.c.h.b16 %v235
    %v933 = vunpack.c.l.b16 %v236
    %v934 = vunpack.c.h.b16 %v236
    %v935 = vunpack.c.l.b16 %v237
    %v936 = vunpack.c.h.b16 %v237
    %v937 = vunpack.c.l.b16 %v238
    %v938 = vunpack.c.h.b16 %v238
    %v939 = vunpack.c.l.b16 %v239
    %v940 = vunpack.c.h.b16 %v239
    %v941 = vunpack.c.l.b16 %v240
    %v942 = vunpack.c.h.b16 %v240
    %v943 = vunpack.c.l.b16 %v241
    %v944 = vunpack.c.h.b16 %v241
    %v945 = vunpack.c.l.b16 %v242
    %v946 = vunpack.c.h.b16 %v242
    %v947 = vunpack.c.l.b16 %v243
    %v948 = vunpack.c.h.b16 %v243
    %v949 = vunpack.c.l.b16 %v244
    %v950 = vunpack.c.h.b16 %v244
    %v951 = vunpack.c.l.b16 %v245
    %v952 = vunpack.c.h.b16 %v245
    %v953 = vunpack.c.l.b16 %v246
    %v954 = vunpack.c.h.b16 %v246
    %v955 = vunpack.c.l.b16 %v247
    %v956 = vunpack.c.h.b16 %v247
    %v957 = vunpack.c.l.b16 %v248
    %v958 = vunpack.c.h.b16 %v248
    %v959 = vunpack.c.l.b16 %v249
    %v960 = vunpack.c.h.b16 %v249
    %v961 = vunpack.c.l.b16 %v250
    %v962 = vunpack.c.h.b16 %v250
    %v963 = vunpack.c.l.b16 %v251
    %v964 = vunpack.c.h.b16 %v251
    %v965 = vunpack.c.l.b16 %v252
    %v966 = vunpack.c.h.b16 %v252
    %v967 = vunpack.c.l.b16 %v253
    %v968 = vunpack.c.h.b16 %v253
    %v969 = vunpack.c.l.b16 %v254
    %v970 = vunpack.c.h.b16 %v254
    %v971 = vunpack.c.l.b16 %v255
    %v972 = vunpack.c.h.b16 %v255
    %v973 = vunpack.c.l.b16 %v256
    %v974 = vunpack.c.h.b16 %v256
    %v975 = vunpack.c.l.b16 %v257
    %v976 = vunpack.c.h.b16 %v257
    %v977 = vunpack.c.l.b16 %v258
    %v978 = vunpack.c.h.b16 %v258
    %v979 = vunpack.c.l.b16 %v259
    %v980 = vunpack.c.h.b16 %v259
    %v981 = vunpack.c.l.b16 %v260
    %v982 = vunpack.c.h.b16 %v260
    %v983 = vunpack.c.l.b16 %v261
    %v984 = vunpack.c.h.b16 %v261
    %v985 = vunpack.c.l.b16 %v262
    %v986 = vunpack.c.h.b16 %v262
    %v987 = vunpack.c.l.b16 %v263
    %v988 = vunpack.c.h.b16 %v263
    %v989 = vunpack.c.l.b16 %v264
    %v990 = vunpack.c.h.b16 %v264
    %v991 = vunpack.c.l.b16 %v265
    %v992 = vunpack.c.h.b16 %v265
    %v993 = vunpack.c.l.b16 %v266
    %v994 = vunpack.c.h.b16 %v266
    %v995 = vunpack.c.l.b16 %v267
    %v996 = vunpack.c.h.b16 %v267
    %v997 = vunpack.c.l.b16 %v268
    %v998 = vunpack.c.h.b16 %v268
    %v999 = vunpack.c.l.b16 %v269
    %v1000 = vunpack.c.h.b16 %v269
    %v1001 = vunpack.c.l.b16 %v270
    %v1002 = vunpack.c.h.b16 %v270
    %v1003 = vunpack.c.l.b16 %v271
    %v1004 = vunpack.c.h.b16 %v271
    %v1005 = vunpack.c.l.b16 %v272
    %v1006 = vunpack.c.h.b16 %v272
    %v1007 = vunpack.c.l.b16 %v273
    %v1008 = vunpack.c.h.b16 %v273
    %v1009 = vunpack.c.l.b16 %v274
    %v1010 = vunpack.c.h.b16 %v274
    %v1011 = vunpack.c.l.b16 %v275
    %v1012 = vunpack.c.h.b16 %v275
    %v1013 = vunpack.c.l.b16 %v276
    %v1014 = vunpack.c.h.b16 %v276
    %v1015 = vunpack.c.l.b16 %v277
    %v1016 = vunpack.c.h.b16 %v277
    %v1017 = vunpack.c.l.b16 %v278
    %v1018 = vunpack.c.h.b16 %v278
    %v1019 = vunpack.c.l.b16 %v279
    %v1020 = vunpack.c.h.b16 %v279
    %v1021 = vunpack.c.l.b16 %v280
    %v1022 = vunpack.c.h.b16 %v280
    %v1023 = vunpack.c.l.b16 %v281
    %v1024 = vunpack.c.h.b16 %v281
    %v1025 = vunpack.c.l.b16 %v282
    %v1026 = vunpack.c.h.b16 %v282
    %v1027 = vunpack.c.l.b16 %v283
    %v1028 = vunpack.c.h.b16 %v283
    %v1029 = vunpack.c.l.b16 %v284
    %v1030 = vunpack.c.h.b16 %v284
    %v1031 = vunpack.c.l.b16 %v285
    %v1032 = vunpack.c.h.b16 %v285
    %v1033 = vunpack.c.l.b16 %v286
    %v1034 = vunpack.c.h.b16 %v286
    %v1035 = vunpack.c.l.b16 %v287
    %v1036 = vunpack.c.h.b16 %v287
    %v1037 = vunpack.c.l.b16 %v288
    %v1038 = vunpack.c.h.b16 %v288
    %v1039 = vunpack.c.l.b16 %v289
    %v1040 = vunpack.c.h.b16 %v289
    %v1041 = vunpack.c.l.b16 %v290
    %v1042 = vunpack.c.h.b16 %v290
    %v1043 = vunpack.c.l.b16 %v291
    %v1044 = vunpack.c.h.b16 %v291
    %v1045 = vunpack.c.l.b16 %v292
    %v1046 = vunpack.c.h.b16 %v292
    %v1047 = vunpack.c.l.b16 %v293
    %v1048 = vunpack.c.h.b16 %v293
    %v1049 = vunpack.c.l.b16 %v294
    %v1050 = vunpack.c.h.b16 %v294
    %v1051 = vunpack.c.l.b16 %v295
    %v1052 = vunpack.c.h.b16 %v295
    %v1053 = vunpack.c.l.b16 %v296
    %v1054 = vunpack.c.h.b16 %v296
    %v1055 = vunpack.c.l.b16 %v297
    %v1056 = vunpack.c.h.b16 %v297
    %v1057 = vunpack.c.l.b16 %v298
    %v1058 = vunpack.c.h.b16 %v298
    %v1059 = vunpack.c.l.b16 %v299
    %v1060 = vunpack.c.h.b16 %v299
    %v1061 = vunpack.c.l.b16 %v300
    %v1062 = vunpack.c.h.b16 %v300
    %v1063 = vunpack.c.l.b16 %v301
    %v1064 = vunpack.c.h.b16 %v301
    %v1065 = vunpack.c.l.b16 %v302
    %v1066 = vunpack.c.h.b16 %v302
    %v1067 = vunpack.c.l.b16 %v303
    %v1068 = vunpack.c.h.b16 %v303
    %v1069 = vunpack.c.l.b16 %v304
    %v1070 = vunpack.c.h.b16 %v304
    %v1071 = vunpack.c.l.b16 %v305
    %v1072 = vunpack.c.h.b16 %v305
    %v1073 = vunpack.c.l.b16 %v306
    %v1074 = vunpack.c.h.b16 %v306
    %v1075 = vunpack.c.l.b16 %v307
    %v1076 = vunpack.c.h.b16 %v307
    %v1077 = vunpack.c.l.b16 %v308
    %v1078 = vunpack.c.h.b16 %v308
    %v1079 = vunpack.c.l.b16 %v309
    %v1080 = vunpack.c.h.b16 %v309
    %v1081 = vunpack.c.l.b16 %v310
    %v1082 = vunpack.c.h.b16 %v310
    %v1083 = vunpack.c.l.b16 %v311
    %v1084 = vunpack.c.h.b16 %v311
    %v1085 = vunpack.c.l.b16 %v312
    %v1086 = vunpack.c.h.b16 %v312
    %v1087 = vunpack.c.l.b16 %v313
    %v1088 = vunpack.c.h.b16 %v313
    %v1089 = vunpack.c.l.b16 %v314
    %v1090 = vunpack.c.h.b16 %v314
    %v1091 = vunpack.c.l.b16 %v315
    %v1092 = vunpack.c.h.b16 %v315
    %v1093 = vunpack.c.l.b16 %v316
    %v1094 = vunpack.c.h.b16 %v316
    %v1095 = vunpack.c.l.b16 %v317
    %v1096 = vunpack.c.h.b16 %v317
    %v1097 = vunpack.c.l.b16 %v318
    %v1098 = vunpack.c.h.b16 %v318
    %v1099 = vunpack.c.l.b16 %v319
    %v1100 = vunpack.c.h.b16 %v319
    %v1101 = vunpack.c.l.b16 %v320
    %v1102 = vunpack.c.h.b16 %v320
    %v1103 = vunpack.c.l.b16 %v321
    %v1104 = vunpack.c.h.b16 %v321
    %v1105 = vunpack.c.l.b16 %v322
    %v1106 = vunpack.c.h.b16 %v322
    %v1107 = vunpack.c.l.b16 %v323
    %v1108 = vunpack.c.h.b16 %v323
    %v1109 = vpack.c.b16 %v631, %v629
    %v1110 = vpack.c.b16 %v632, %v630
    %v1111 = vpack.c.b16 %v635, %v633
    %v1112 = vpack.c.b16 %v636, %v634
    %v1113 = vpack.c.b16 %v639, %v637
    %v1114 = vpack.c.b16 %v640, %v638
    %v1115 = vpack.c.b16 %v643, %v641
    %v1116 = vpack.c.b16 %v644, %v642
    %v1117 = vpack.c.b16 %v647, %v645
    %v1118 = vpack.c.b16 %v648, %v646
    %v1119 = vpack.c.b16 %v651, %v649
    %v1120 = vpack.c.b16 %v652, %v650
    %v1121 = vpack.c.b16 %v655, %v653
    %v1122 = vpack.c.b16 %v656, %v654
    %v1123 = vpack.c.b16 %v659, %v657
    %v1124 = vpack.c.b16 %v660, %v658
    %v1125 = vpack.c.b16 %v663, %v661
    %v1126 = vpack.c.b16 %v664, %v662
    %v1127 = vpack.c.b16 %v667, %v665
    %v1128 = vpack.c.b16 %v668, %v666
    %v1129 = vpack.c.b16 %v671, %v669
    %v1130 = vpack.c.b16 %v672, %v670
    %v1131 = vpack.c.b16 %v675, %v673
    %v1132 = vpack.c.b16 %v676, %v674
    %v1133 = vpack.c.b16 %v679, %v677
    %v1134 = vpack.c.b16 %v680, %v678
    %v1135 = vpack.c.b16 %v683, %v681
    %v1136 = vpack.c.b16 %v684, %v682
    %v1137 = vpack.c.b16 %v687, %v685
    %v1138 = vpack.c.b16 %v688, %v686
    %v1139 = vpack.c.b16 %v691, %v689
    %v1140 = vpack.c.b16 %v692, %v690
    %v1141 = vpack.c.b16 %v695, %v693
    %v1142 = vpack.c.b16 %v696, %v694
    %v1143 = vpack.c.b16 %v699, %v697
    %v1144 = vpack.c.b16 %v700, %v698
    %v1145 = vpack.c.b16 %v703, %v701
    %v1146 = vpack.c.b16 %v704, %v702
    %v1147 = vpack.c.b16 %v707, %v705
    %v1148 = vpack.c.b16 %v708, %v706
    %v1149 = vpack.c.b16 %v711, %v709
    %v1150 = vpack.c.b16 %v712, %v710
    %v1151 = vpack.c.b16 %v715, %v713
    %v1152 = vpack.c.b16 %v716, %v714
    %v1153 = vpack.c.b16 %v719, %v717
    %v1154 = vpack.c.b16 %v720, %v718
    %v1155 = vpack.c.b16 %v723, %v721
    %v1156 = vpack.c.b16 %v724, %v722
    %v1157 = vpack.c.b16 %v727, %v725
    %v1158 = vpack.c.b16 %v728, %v726
    %v1159 = vpack.c.b16 %v731, %v729
    %v1160 = vpack.c.b16 %v732, %v730
    %v1161 = vpack.c.b16 %v735, %v733
    %v1162 = vpack.c.b16 %v736, %v734
    %v1163 = vpack.c.b16 %v739, %v737
    %v1164 = vpack.c.b16 %v740, %v738
    %v1165 = vpack.c.b16 %v743, %v741
    %v1166 = vpack.c.b16 %v744, %v742
    %v1167 = vpack.c.b16 %v747, %v745
    %v1168 = vpack.c.b16 %v748, %v746
    %v1169 = vpack.c.b16 %v751, %v749
    %v1170 = vpack.c.b16 %v752, %v750
    %v1171 = vpack.c.b16 %v755, %v753
    %v1172 = vpack.c.b16 %v756, %v754
    %v1173 = vpack.c.b16 %v759, %v757
    %v1174 = vpack.c.b16 %v760, %v758
    %v1175 = vpack.c.b16 %v763, %v761
    %v1176 = vpack.c.b16 %v764, %v762
    %v1177 = vpack.c.b16 %v767, %v765
    %v1178 = vpack.c.b16 %v768, %v766
    %v1179 = vpack.c.b16 %v771, %v769
    %v1180 = vpack.c.b16 %v772, %v770
    %v1181 = vpack.c.b16 %v775, %v773
    %v1182 = vpack.c.b16 %v776, %v774
    %v1183 = vpack.c.b16 %v779, %v777
    %v1184 = vpack.c.b16 %v780, %v778
    %v1185 = vpack.c.b16 %v783, %v781
    %v1186 = vpack.c.b16 %v784, %v782
    %v1187 = vpack.c.b16 %v787, %v785
    %v1188 = vpack.c.b16 %v788, %v786
    %v1189 = vpack.c.b16 %v791, %v789
    %v1190 = vpack.c.b16 %v792, %v790
    %v1191 = vpack.c.b16 %v795, %v793
    %v1192 = vpack.c.b16 %v796, %v794
    %v1193 = vpack.c.b16 %v799, %v797
    %v1194 = vpack.c.b16 %v800, %v798
    %v1195 = vpack.c.b16 %v803, %v801
    %v1196 = vpack.c.b16 %v804, %v802
    %v1197 = vpack.c.b16 %v807, %v805
    %v1198 = vpack.c.b16 %v808, %v806
    %v1199 = vpack.c.b16 %v811, %v809
    %v1200 = vpack.c.b16 %v812, %v810
    %v1201 = vpack.c.b16 %v815, %v813
    %v1202 = vpack.c.b16 %v816, %v814
    %v1203 = vpack.c.b16 %v819, %v817
    %v1204 = vpack.c.b16 %v820, %v818
    %v1205 = vpack.c.b16 %v823, %v821
    %v1206 = vpack.c.b16 %v824, %v822
    %v1207 = vpack.c.b16 %v827, %v825
    %v1208 = vpack.c.b16 %v828, %v826
    %v1209 = vpack.c.b16 %v831, %v829
    %v1210 = vpack.c.b16 %v832, %v830
    %v1211 = vpack.c.b16 %v835, %v833
    %v1212 = vpack.c.b16 %v836, %v834
    %v1213 = vpack.c.b16 %v839, %v837
    %v1214 = vpack.c.b16 %v840, %v838
    %v1215 = vpack.c.b16 %v843, %v841
    %v1216 = vpack.c.b16 %v844, %v842
    %v1217 = vpack.c.b16 %v847, %v845
    %v1218 = vpack.c.b16 %v848, %v846
    %v1219 = vpack.c.b16 %v851, %v849
    %v1220 = vpack.c.b16 %v852, %v850
    %v1221 = vpack.c.b16 %v855, %v853
    %v1222 = vpack.c.b16 %v856, %v854
    %v1223 = vpack.c.b16 %v859, %v857
    %v1224 = vpack.c.b16 %v860, %v858
    %v1225 = vpack.c.b16 %v863, %v861
    %v1226 = vpack.c.b16 %v864, %v862
    %v1227 = vpack.c.b16 %v867, %v865
    %v1228 = vpack.c.b16 %v868, %v866
    %v1229 = vpack.c.b16 %v871, %v869
    %v1230 = vpack.c.b16 %v872, %v870
    %v1231 = vpack.c.b16 %v875, %v873
    %v1232 = vpack.c.b16 %v876, %v874
    %v1233 = vpack.c.b16 %v879, %v877
    %v1234 = vpack.c.b16 %v880, %v878
    %v1235 = vpack.c.b16 %v883, %v881
    %v1236 = vpack.c.b16 %v884, %v882
    %v1237 = vpack.c.b16 %v887, %v885
    %v1238 = vpack.c.b16 %v888, %v886
    %v1239 = vpack.c.b16 %v891, %v889
    %v1240 = vpack.c.b16 %v892, %v890
    %v1241 = vpack.c.b16 %v895, %v893
    %v1242 = vpack.c.b16 %v896, %v894
    %v1243 = vpack.c.b16 %v899, %v897
    %v1244 = vpack.c.b16 %v900, %v898
    %v1245 = vpack.c.b16 %v903, %v901
    %v1246 = vpack.c.b16 %v904, %v902
    %v1247 = vpack.c.b16 %v907, %v905
    %v1248 = vpack.c.b16 %v908, %v906
    %v1249 = vpack.c.b16 %v911, %v909
    %v1250 = vpack.c.b16 %v912, %v910
    %v1251 = vpack.c.b16 %v915, %v913
    %v1252 = vpack.c.b16 %v916, %v914
    %v1253 = vpack.c.b16 %v919, %v917
    %v1254 = vpack.c.b16 %v920, %v918
    %v1255 = vpack.c.b16 %v923, %v921
    %v1256 = vpack.c.b16 %v924, %v922
    %v1257 = vpack.c.b16 %v927, %v925
    %v1258 = vpack.c.b16 %v928, %v926
    %v1259 = vpack.c.b16 %v931, %v929
    %v1260 = vpack.c.b16 %v932, %v930
    %v1261 = vpack.c.b16 %v935, %v933
    %v1262 = vpack.c.b16 %v936, %v934
    %v1263 = vpack.c.b16 %v939, %v937
    %v1264 = vpack.c.b16 %v940, %v938
    %v1265 = vpack.c.b16 %v943, %v941
    %v1266 = vpack.c.b16 %v944, %v942
    %v1267 = vpack.c.b16 %v947, %v945
    %v1268 = vpack.c.b16 %v948, %v946
    %v1269 = vpack.c.b16 %v951, %v949
    %v1270 = vpack.c.b16 %v952, %v950
    %v1271 = vpack.c.b16 %v955, %v953
    %v1272 = vpack.c.b16 %v956, %v954
    %v1273 = vpack.c.b16 %v959, %v957
    %v1274 = vpack.c.b16 %v960, %v958
    %v1275 = vpack.c.b16 %v963, %v961
    %v1276 = vpack.c.b16 %v964, %v962
    %v1277 = vpack.c.b16 %v967, %v965
    %v1278 = vpack.c.b16 %v968, %v966
    %v1279 = vpack.c.b16 %v971, %v969
    %v1280 = vpack.c.b16 %v972, %v970
    %v1281 = vpack.c.b16 %v975, %v973
    %v1282 = vpack.c.b16 %v976, %v974
    %v1283 = vpack.c.b16 %v979, %v977
    %v1284 = vpack.c.b16 %v980, %v978
    %v1285 = vpack.c.b16 %v983, %v981
    %v1286 = vpack.c.b16 %v984, %v982
    %v1287 = vpack.c.b16 %v987, %v985
    %v1288 = vpack.c.b16 %v988, %v986
    %v1289 = vpack.c.b16 %v991, %v989
    %v1290 = vpack.c.b16 %v992, %v990
    %v1291 = vpack.c.b16 %v995, %v993
    %v1292 = vpack.c.b16 %v996, %v994
    %v1293 = vpack.c.b16 %v999, %v997
    %v1294 = vpack.c.b16 %v1000, %v998
    %v1295 = vpack.c.b16 %v1003, %v1001
    %v1296 = vpack.c.b16 %v1004, %v1002
    %v1297 = vpack.c.b16 %v1007, %v1005
    %v1298 = vpack.c.b16 %v1008, %v1006
    %v1299 = vpack.c.b16 %v1011, %v1009
    %v1300 = vpack.c.b16 %v1012, %v1010
    %v1301 = vpack.c.b16 %v1015, %v1013
    %v1302 = vpack.c.b16 %v1016, %v1014
    %v1303 = vpack.c.b16 %v1019, %v1017
    %v1304 = vpack.c.b16 %v1020, %v1018
    %v1305 = vpack.c.b16 %v1023, %v1021
    %v1306 = vpack.c.b16 %v1024, %v1022
    %v1307 = vpack.c.b16 %v1027, %v1025
    %v1308 = vpack.c.b16 %v1028, %v1026
    %v1309 = vpack.c.b16 %v1031, %v1029
    %v1310 = vpack.c.b16 %v1032, %v1030
    %v1311 = vpack.c.b16 %v1035, %v1033
    %v1312 = vpack.c.b16 %v1036, %v1034
    %v1313 = vpack.c.b16 %v1039, %v1037
    %v1314 = vpack.c.b16 %v1040, %v1038
    %v1315 = vpack.c.b16 %v1043, %v1041
    %v1316 = vpack.c.b16 %v1044, %v1042
    %v1317 = vpack.c.b16 %v1047, %v1045
    %v1318 = vpack.c.b16 %v1048, %v1046
    %v1319 = vpack.c.b16 %v1051, %v1049
    %v1320 = vpack.c.b16 %v1052, %v1050
    %v1321 = vpack.c.b16 %v1055, %v1053
    %v1322 = vpack.c.b16 %v1056, %v1054
    %v1323 = vpack.c.b16 %v1059, %v1057
    %v1324 = vpack.c.b16 %v1060, %v1058
    %v1325 = vpack.c.b16 %v1063, %v1061
    %v1326 = vpack.c.b16 %v1064, %v1062
    %v1327 = vpack.c.b16 %v1067, %v1065
    %v1328 = vpack.c.b16 %v1068, %v1066
    %v1329 = vpack.c.b16 %v1071, %v1069
    %v1330 = vpack.c.b16 %v1072, %v1070
    %v1331 = vpack.c.b16 %v1075, %v1073
    %v1332 = vpack.c.b16 %v1076, %v1074
    %v1333 = vpack.c.b16 %v1079, %v1077
    %v1334 = vpack.c.b16 %v1080, %v1078
    %v1335 = vpack.c.b16 %v1083, %v1081
    %v1336 = vpack.c.b16 %v1084, %v1082
    %v1337 = vpack.c.b16 %v1087, %v1085
    %v1338 = vpack.c.b16 %v1088, %v1086
    %v1339 = vpack.c.b16 %v1091, %v1089
    %v1340 = vpack.c.b16 %v1092, %v1090
    %v1341 = vpack.c.b16 %v1095, %v1093
    %v1342 = vpack.c.b16 %v1096, %v1094
    %v1343 = vpack.c.b16 %v1099, %v1097
    %v1344 = vpack.c.b16 %v1100, %v1098
    %v1345 = vpack.c.b16 %v1103, %v1101
    %v1346 = vpack.c.b16 %v1104, %v1102
    %v1347 = vpack.c.b16 %v1107, %v1105
    %v1348 = vpack.c.b16 %v1108, %v1106
    %1589 = vmatprep.subr.bf16.mxu0 %v1124
    %1590 = vmatpush1.bf16.msra.mxu0 %v1123
    %1591 = vmatprep.subr.bf16.mxu0 %v1122
    %1592 = vmatpush1.bf16.msra.mxu0 %v1121
    %1593 = vmatprep.subr.bf16.mxu0 %v1120
    %1594 = vmatpush1.bf16.msra.mxu0 %v1119
    %1595 = vmatprep.subr.bf16.mxu0 %v1118
    %1596 = vmatpush1.bf16.msra.mxu0 %v1117
    %1597 = vmatprep.subr.bf16.mxu0 %v1116
    %1598 = vmatpush1.bf16.msra.mxu0 %v1115
    %1599 = vmatprep.subr.bf16.mxu0 %v1114
    %1600 = vmatpush1.bf16.msra.mxu0 %v1113
    %1601 = vmatprep.subr.bf16.mxu0 %v1112
    %1602 = vmatpush1.bf16.msra.mxu0 %v1111
    %1603 = vmatprep.subr.bf16.mxu0 %v1110
    %1604 = vmatpush1.bf16.msra.mxu0 %v1109
    %1605 = vmatprep.subr.bf16.mxu0 %v1140
    %1606 = vmatpush2.bf16.msra.mxu0 %v1139
    %1607 = vmatprep.subr.bf16.mxu0 %v1138
    %1608 = vmatpush2.bf16.msra.mxu0 %v1137
    %1609 = vmatprep.subr.bf16.mxu0 %v1136
    %1610 = vmatpush2.bf16.msra.mxu0 %v1135
    %1611 = vmatprep.subr.bf16.mxu0 %v1134
    %1612 = vmatpush2.bf16.msra.mxu0 %v1133
    %1613 = vmatprep.subr.bf16.mxu0 %v1132
    %1614 = vmatpush2.bf16.msra.mxu0 %v1131
    %1615 = vmatprep.subr.bf16.mxu0 %v1130
    %1616 = vmatpush2.bf16.msra.mxu0 %v1129
    %1617 = vmatprep.subr.bf16.mxu0 %v1128
    %1618 = vmatpush2.bf16.msra.mxu0 %v1127
    %1619 = vmatprep.subr.bf16.mxu0 %v1126
    %1620 = vmatpush2.bf16.msra.mxu0 %v1125
    %1621 = vmatprep.mubr.bf16.mxu0 %v360
    %1622 = vmatmul.mubr.bf16.gmra.mxu0 %v359
    %v1623 = vpop.f32.mrf.mxu0
    %v1624 = vadd.f32 %v329, %v1623
    %v1625 = vpop.f32.mrf.mxu0
    %v1626 = vadd.f32 %v333, %v1625
    %v1627 = vpop.f32.mrf.mxu0
    %v1628 = vpop.f32.mrf.mxu0
    %1629 = vdwg.mxu0
    %1630 = vmatprep.subr.bf16.mxu0 %v1156
    %1631 = vmatpush1.bf16.msra.mxu0 %v1155
    %1632 = vmatprep.subr.bf16.mxu0 %v1154
    %1633 = vmatpush1.bf16.msra.mxu0 %v1153
    %1634 = vmatprep.subr.bf16.mxu0 %v1152
    %1635 = vmatpush1.bf16.msra.mxu0 %v1151
    %1636 = vmatprep.subr.bf16.mxu0 %v1150
    %1637 = vmatpush1.bf16.msra.mxu0 %v1149
    %1638 = vmatprep.subr.bf16.mxu0 %v1148
    %1639 = vmatpush1.bf16.msra.mxu0 %v1147
    %1640 = vmatprep.subr.bf16.mxu0 %v1146
    %1641 = vmatpush1.bf16.msra.mxu0 %v1145
    %1642 = vmatprep.subr.bf16.mxu0 %v1144
    %1643 = vmatpush1.bf16.msra.mxu0 %v1143
    %1644 = vmatprep.subr.bf16.mxu0 %v1142
    %1645 = vmatpush1.bf16.msra.mxu0 %v1141
    %1646 = vmatprep.subr.bf16.mxu0 %v1172
    %1647 = vmatpush2.bf16.msra.mxu0 %v1171
    %1648 = vmatprep.subr.bf16.mxu0 %v1170
    %1649 = vmatpush2.bf16.msra.mxu0 %v1169
    %1650 = vmatprep.subr.bf16.mxu0 %v1168
    %1651 = vmatpush2.bf16.msra.mxu0 %v1167
    %1652 = vmatprep.subr.bf16.mxu0 %v1166
    %1653 = vmatpush2.bf16.msra.mxu0 %v1165
    %1654 = vmatprep.subr.bf16.mxu0 %v1164
    %1655 = vmatpush2.bf16.msra.mxu0 %v1163
    %1656 = vmatprep.subr.bf16.mxu0 %v1162
    %1657 = vmatpush2.bf16.msra.mxu0 %v1161
    %1658 = vmatprep.subr.bf16.mxu0 %v1160
    %1659 = vmatpush2.bf16.msra.mxu0 %v1159
    %1660 = vmatprep.subr.bf16.mxu0 %v1158
    %1661 = vmatpush2.bf16.msra.mxu0 %v1157
    %1662 = vmatprep.mubr.bf16.mxu0 %v362
    %1663 = vmatmul.mubr.bf16.gmra.mxu0 %v361
    %v1664 = vpop.f32.mrf.mxu0
    %v1665 = vadd.f32 %v1624, %v1664
    %v1666 = vpop.f32.mrf.mxu0
    %v1667 = vadd.f32 %v1626, %v1666
    %v1668 = vpop.f32.mrf.mxu0
    %v1669 = vpop.f32.mrf.mxu0
    %1670 = vdwg.mxu0
    %1671 = vmatprep.subr.bf16.mxu0 %v1188
    %1672 = vmatpush1.bf16.msra.mxu0 %v1187
    %1673 = vmatprep.subr.bf16.mxu0 %v1186
    %1674 = vmatpush1.bf16.msra.mxu0 %v1185
    %1675 = vmatprep.subr.bf16.mxu0 %v1184
    %1676 = vmatpush1.bf16.msra.mxu0 %v1183
    %1677 = vmatprep.subr.bf16.mxu0 %v1182
    %1678 = vmatpush1.bf16.msra.mxu0 %v1181
    %1679 = vmatprep.subr.bf16.mxu0 %v1180
    %1680 = vmatpush1.bf16.msra.mxu0 %v1179
    %1681 = vmatprep.subr.bf16.mxu0 %v1178
    %1682 = vmatpush1.bf16.msra.mxu0 %v1177
    %1683 = vmatprep.subr.bf16.mxu0 %v1176
    %1684 = vmatpush1.bf16.msra.mxu0 %v1175
    %1685 = vmatprep.subr.bf16.mxu0 %v1174
    %1686 = vmatpush1.bf16.msra.mxu0 %v1173
    %1687 = vmatprep.subr.bf16.mxu0 %v1204
    %1688 = vmatpush2.bf16.msra.mxu0 %v1203
    %1689 = vmatprep.subr.bf16.mxu0 %v1202
    %1690 = vmatpush2.bf16.msra.mxu0 %v1201
    %1691 = vmatprep.subr.bf16.mxu0 %v1200
    %1692 = vmatpush2.bf16.msra.mxu0 %v1199
    %1693 = vmatprep.subr.bf16.mxu0 %v1198
    %1694 = vmatpush2.bf16.msra.mxu0 %v1197
    %1695 = vmatprep.subr.bf16.mxu0 %v1196
    %1696 = vmatpush2.bf16.msra.mxu0 %v1195
    %1697 = vmatprep.subr.bf16.mxu0 %v1194
    %1698 = vmatpush2.bf16.msra.mxu0 %v1193
    %1699 = vmatprep.subr.bf16.mxu0 %v1192
    %1700 = vmatpush2.bf16.msra.mxu0 %v1191
    %1701 = vmatprep.subr.bf16.mxu0 %v1190
    %1702 = vmatpush2.bf16.msra.mxu0 %v1189
    %1703 = vmatprep.mubr.bf16.mxu0 %v364
    %1704 = vmatmul.mubr.bf16.gmra.mxu0 %v363
    %v1705 = vpop.f32.mrf.mxu0
    %v1706 = vadd.f32 %v1665, %v1705
    %v1707 = vpop.f32.mrf.mxu0
    %v1708 = vadd.f32 %v1667, %v1707
    %v1709 = vpop.f32.mrf.mxu0
    %v1710 = vpop.f32.mrf.mxu0
    %1711 = vdwg.mxu0
    %1712 = vmatprep.subr.bf16.mxu0 %v1220
    %1713 = vmatpush1.bf16.msra.mxu0 %v1219
    %1714 = vmatprep.subr.bf16.mxu0 %v1218
    %1715 = vmatpush1.bf16.msra.mxu0 %v1217
    %1716 = vmatprep.subr.bf16.mxu0 %v1216
    %1717 = vmatpush1.bf16.msra.mxu0 %v1215
    %1718 = vmatprep.subr.bf16.mxu0 %v1214
    %1719 = vmatpush1.bf16.msra.mxu0 %v1213
    %1720 = vmatprep.subr.bf16.mxu0 %v1212
    %1721 = vmatpush1.bf16.msra.mxu0 %v1211
    %1722 = vmatprep.subr.bf16.mxu0 %v1210
    %1723 = vmatpush1.bf16.msra.mxu0 %v1209
    %1724 = vmatprep.subr.bf16.mxu0 %v1208
    %1725 = vmatpush1.bf16.msra.mxu0 %v1207
    %1726 = vmatprep.subr.bf16.mxu0 %v1206
    %1727 = vmatpush1.bf16.msra.mxu0 %v1205
    %1728 = vmatprep.subr.bf16.mxu0 %v1236
    %1729 = vmatpush2.bf16.msra.mxu0 %v1235
    %1730 = vmatprep.subr.bf16.mxu0 %v1234
    %1731 = vmatpush2.bf16.msra.mxu0 %v1233
    %1732 = vmatprep.subr.bf16.mxu0 %v1232
    %1733 = vmatpush2.bf16.msra.mxu0 %v1231
    %1734 = vmatprep.subr.bf16.mxu0 %v1230
    %1735 = vmatpush2.bf16.msra.mxu0 %v1229
    %1736 = vmatprep.subr.bf16.mxu0 %v1228
    %1737 = vmatpush2.bf16.msra.mxu0 %v1227
    %1738 = vmatprep.subr.bf16.mxu0 %v1226
    %1739 = vmatpush2.bf16.msra.mxu0 %v1225
    %1740 = vmatprep.subr.bf16.mxu0 %v1224
    %1741 = vmatpush2.bf16.msra.mxu0 %v1223
    %1742 = vmatprep.subr.bf16.mxu0 %v1222
    %1743 = vmatpush2.bf16.msra.mxu0 %v1221
    %1744 = vmatprep.mubr.bf16.mxu0 %v366
    %1745 = vmatmul.mubr.bf16.gmra.mxu0 %v365
    %v1746 = vpop.f32.mrf.mxu0
    %v1747 = vadd.f32 %v1706, %v1746
    %v1748 = vpop.f32.mrf.mxu0
    %v1749 = vadd.f32 %v1708, %v1748
    %v1750 = vpop.f32.mrf.mxu0
    %v1751 = vpop.f32.mrf.mxu0
    %1752 = vdwg.mxu0
    %1753 = vmatprep.subr.bf16.mxu0 %v1252
    %1754 = vmatpush1.bf16.msra.mxu0 %v1251
    %1755 = vmatprep.subr.bf16.mxu0 %v1250
    %1756 = vmatpush1.bf16.msra.mxu0 %v1249
    %1757 = vmatprep.subr.bf16.mxu0 %v1248
    %1758 = vmatpush1.bf16.msra.mxu0 %v1247
    %1759 = vmatprep.subr.bf16.mxu0 %v1246
    %1760 = vmatpush1.bf16.msra.mxu0 %v1245
    %1761 = vmatprep.subr.bf16.mxu0 %v1244
    %1762 = vmatpush1.bf16.msra.mxu0 %v1243
    %1763 = vmatprep.subr.bf16.mxu0 %v1242
    %1764 = vmatpush1.bf16.msra.mxu0 %v1241
    %1765 = vmatprep.subr.bf16.mxu0 %v1240
    %1766 = vmatpush1.bf16.msra.mxu0 %v1239
    %1767 = vmatprep.subr.bf16.mxu0 %v1238
    %1768 = vmatpush1.bf16.msra.mxu0 %v1237
    %1769 = vmatprep.subr.bf16.mxu0 %v1268
    %1770 = vmatpush2.bf16.msra.mxu0 %v1267
    %1771 = vmatprep.subr.bf16.mxu0 %v1266
    %1772 = vmatpush2.bf16.msra.mxu0 %v1265
    %1773 = vmatprep.subr.bf16.mxu0 %v1264
    %1774 = vmatpush2.bf16.msra.mxu0 %v1263
    %1775 = vmatprep.subr.bf16.mxu0 %v1262
    %1776 = vmatpush2.bf16.msra.mxu0 %v1261
    %1777 = vmatprep.subr.bf16.mxu0 %v1260
    %1778 = vmatpush2.bf16.msra.mxu0 %v1259
    %1779 = vmatprep.subr.bf16.mxu0 %v1258
    %1780 = vmatpush2.bf16.msra.mxu0 %v1257
    %1781 = vmatprep.subr.bf16.mxu0 %v1256
    %1782 = vmatpush2.bf16.msra.mxu0 %v1255
    %1783 = vmatprep.subr.bf16.mxu0 %v1254
    %1784 = vmatpush2.bf16.msra.mxu0 %v1253
    %1785 = vmatprep.mubr.bf16.mxu0 %v368
    %1786 = vmatmul.mubr.bf16.gmra.mxu0 %v367
    %v1787 = vpop.f32.mrf.mxu0
    %v1788 = vadd.f32 %v1747, %v1787
    %v1789 = vpop.f32.mrf.mxu0
    %v1790 = vadd.f32 %v1749, %v1789
    %v1791 = vpop.f32.mrf.mxu0
    %v1792 = vpop.f32.mrf.mxu0
    %1793 = vdwg.mxu0
    %1794 = vmatprep.subr.bf16.mxu0 %v1284
    %1795 = vmatpush1.bf16.msra.mxu0 %v1283
    %1796 = vmatprep.subr.bf16.mxu0 %v1282
    %1797 = vmatpush1.bf16.msra.mxu0 %v1281
    %1798 = vmatprep.subr.bf16.mxu0 %v1280
    %1799 = vmatpush1.bf16.msra.mxu0 %v1279
    %1800 = vmatprep.subr.bf16.mxu0 %v1278
    %1801 = vmatpush1.bf16.msra.mxu0 %v1277
    %1802 = vmatprep.subr.bf16.mxu0 %v1276
    %1803 = vmatpush1.bf16.msra.mxu0 %v1275
    %1804 = vmatprep.subr.bf16.mxu0 %v1274
    %1805 = vmatpush1.bf16.msra.mxu0 %v1273
    %1806 = vmatprep.subr.bf16.mxu0 %v1272
    %1807 = vmatpush1.bf16.msra.mxu0 %v1271
    %1808 = vmatprep.subr.bf16.mxu0 %v1270
    %1809 = vmatpush1.bf16.msra.mxu0 %v1269
    %1810 = vmatprep.subr.bf16.mxu0 %v1300
    %1811 = vmatpush2.bf16.msra.mxu0 %v1299
    %1812 = vmatprep.subr.bf16.mxu0 %v1298
    %1813 = vmatpush2.bf16.msra.mxu0 %v1297
    %1814 = vmatprep.subr.bf16.mxu0 %v1296
    %1815 = vmatpush2.bf16.msra.mxu0 %v1295
    %1816 = vmatprep.subr.bf16.mxu0 %v1294
    %1817 = vmatpush2.bf16.msra.mxu0 %v1293
    %1818 = vmatprep.subr.bf16.mxu0 %v1292
    %1819 = vmatpush2.bf16.msra.mxu0 %v1291
    %1820 = vmatprep.subr.bf16.mxu0 %v1290
    %1821 = vmatpush2.bf16.msra.mxu0 %v1289
    %1822 = vmatprep.subr.bf16.mxu0 %v1288
    %1823 = vmatpush2.bf16.msra.mxu0 %v1287
    %1824 = vmatprep.subr.bf16.mxu0 %v1286
    %1825 = vmatpush2.bf16.msra.mxu0 %v1285
    %1826 = vmatprep.mubr.bf16.mxu0 %v370
    %1827 = vmatmul.mubr.bf16.gmra.mxu0 %v369
    %v1828 = vpop.f32.mrf.mxu0
    %v1829 = vadd.f32 %v1788, %v1828
    %v1830 = vpop.f32.mrf.mxu0
    %v1831 = vadd.f32 %v1790, %v1830
    %v1832 = vpop.f32.mrf.mxu0
    %v1833 = vpop.f32.mrf.mxu0
    %1834 = vdwg.mxu0
    %1835 = vmatprep.subr.bf16.mxu0 %v1316
    %1836 = vmatpush1.bf16.msra.mxu0 %v1315
    %1837 = vmatprep.subr.bf16.mxu0 %v1314
    %1838 = vmatpush1.bf16.msra.mxu0 %v1313
    %1839 = vmatprep.subr.bf16.mxu0 %v1312
    %1840 = vmatpush1.bf16.msra.mxu0 %v1311
    %1841 = vmatprep.subr.bf16.mxu0 %v1310
    %1842 = vmatpush1.bf16.msra.mxu0 %v1309
    %1843 = vmatprep.subr.bf16.mxu0 %v1308
    %1844 = vmatpush1.bf16.msra.mxu0 %v1307
    %1845 = vmatprep.subr.bf16.mxu0 %v1306
    %1846 = vmatpush1.bf16.msra.mxu0 %v1305
    %1847 = vmatprep.subr.bf16.mxu0 %v1304
    %1848 = vmatpush1.bf16.msra.mxu0 %v1303
    %1849 = vmatprep.subr.bf16.mxu0 %v1302
    %1850 = vmatpush1.bf16.msra.mxu0 %v1301
    %1851 = vmatprep.subr.bf16.mxu0 %v1332
    %1852 = vmatpush2.bf16.msra.mxu0 %v1331
    %1853 = vmatprep.subr.bf16.mxu0 %v1330
    %1854 = vmatpush2.bf16.msra.mxu0 %v1329
    %1855 = vmatprep.subr.bf16.mxu0 %v1328
    %1856 = vmatpush2.bf16.msra.mxu0 %v1327
    %1857 = vmatprep.subr.bf16.mxu0 %v1326
    %1858 = vmatpush2.bf16.msra.mxu0 %v1325
    %1859 = vmatprep.subr.bf16.mxu0 %v1324
    %1860 = vmatpush2.bf16.msra.mxu0 %v1323
    %1861 = vmatprep.subr.bf16.mxu0 %v1322
    %1862 = vmatpush2.bf16.msra.mxu0 %v1321
    %1863 = vmatprep.subr.bf16.mxu0 %v1320
    %1864 = vmatpush2.bf16.msra.mxu0 %v1319
    %1865 = vmatprep.subr.bf16.mxu0 %v1318
    %1866 = vmatpush2.bf16.msra.mxu0 %v1317
    %1867 = vmatprep.mubr.bf16.mxu0 %v372
    %1868 = vmatmul.mubr.bf16.gmra.mxu0 %v371
    %v1869 = vpop.f32.mrf.mxu0
    %v1870 = vadd.f32 %v1829, %v1869
    %v1871 = vpop.f32.mrf.mxu0
    %v1872 = vadd.f32 %v1831, %v1871
    %v1873 = vpop.f32.mrf.mxu0
    %v1874 = vpop.f32.mrf.mxu0
    %1875 = vdwg.mxu0
    %1876 = vmatprep.subr.bf16.mxu0 %v1348
    %1877 = vmatpush1.bf16.msra.mxu0 %v1347
    %1878 = vmatprep.subr.bf16.mxu0 %v1346
    %1879 = vmatpush1.bf16.msra.mxu0 %v1345
    %1880 = vmatprep.subr.bf16.mxu0 %v1344
    %1881 = vmatpush1.bf16.msra.mxu0 %v1343
    %1882 = vmatprep.subr.bf16.mxu0 %v1342
    %1883 = vmatpush1.bf16.msra.mxu0 %v1341
    %1884 = vmatprep.subr.bf16.mxu0 %v1340
    %1885 = vmatpush1.bf16.msra.mxu0 %v1339
    %1886 = vmatprep.subr.bf16.mxu0 %v1338
    %1887 = vmatpush1.bf16.msra.mxu0 %v1337
    %1888 = vmatprep.subr.bf16.mxu0 %v1336
    %1889 = vmatpush1.bf16.msra.mxu0 %v1335
    %1890 = vmatprep.subr.bf16.mxu0 %v1334
    %1891 = vmatpush1.bf16.msra.mxu0 %v1333
    %1892 = vmatprep.subr.bf16.mxu0 0
    %1893 = vmatpush2.bf16.msra.mxu0 0
    %1894 = vmatprep.subr.bf16.mxu0 0
    %1895 = vmatpush2.bf16.msra.mxu0 0
    %1896 = vmatprep.subr.bf16.mxu0 0
    %1897 = vmatpush2.bf16.msra.mxu0 0
    %1898 = vmatprep.subr.bf16.mxu0 0
    %1899 = vmatpush2.bf16.msra.mxu0 0
    %1900 = vmatprep.subr.bf16.mxu0 0
    %1901 = vmatpush2.bf16.msra.mxu0 0
    %1902 = vmatprep.subr.bf16.mxu0 0
    %1903 = vmatpush2.bf16.msra.mxu0 0
    %1904 = vmatprep.subr.bf16.mxu0 0
    %1905 = vmatpush2.bf16.msra.mxu0 0
    %1906 = vmatprep.subr.bf16.mxu0 0
    %1907 = vmatpush2.bf16.msra.mxu0 0
    %1908 = vmatprep.mubr.bf16.mxu0 0
    %1909 = vmatmul.mubr.bf16.gmra.mxu0 %v373
    %v1910 = vpop.f32.mrf.mxu0
    %v1911 = vadd.f32 %v1870, %v1910
    %v1912 = vpop.f32.mrf.mxu0
    %v1913 = vadd.f32 %v1872, %v1912
    %v1914 = vpop.f32.mrf.mxu0
    %v1915 = vpop.f32.mrf.mxu0
    %1916 = vdwg.mxu0
    %v1917 = vmax.f32 %v1911, 0.0
    %v1918 = vmax.f32 %v1913, 0.0
    %v1919 = vpack.c.bf16 %v1917, %v1917
    %v1920 = vpack.c.bf16 %v1918, %v1918
    %v1921 = vld [vmem:[%s3] sm:$0xf]
    %v1922 = vld [vmem:[%s3 + $0x4] sm:$0xf]
    %v1923 = vld [vmem:[%s3 + $0x8] sm:$0xf]
    %v1924 = vld [vmem:[%s3 + $0xc] sm:$0xf]
    %v1925 = vld [vmem:[%s3 + $0x10] sm:$0xf]
    %v1926 = vld [vmem:[%s3 + $0x14] sm:$0xf]
    %v1927 = vld [vmem:[%s3 + $0x18] sm:$0xf]
    %v1928 = vld [vmem:[%s3 + $0x1c] sm:$0xf]
    %v1929 = vld [vmem:[%s3 + $0x20] sm:$0xf]
    %v1930 = vld [vmem:[%s3 + $0x24] sm:$0xf]
    %v1931 = vld [vmem:[%s3 + $0x28] sm:$0xf]
    %v1932 = vld [vmem:[%s3 + $0x2c] sm:$0xf]
    %v1933 = vld [vmem:[%s3 + $0x30] sm:$0xf]
    %v1934 = vld [vmem:[%s3 + $0x34] sm:$0xf]
    %v1935 = vld [vmem:[%s3 + $0x38] sm:$0xf]
    %v1936 = vld [vmem:[%s3 + $0x3c] sm:$0xf]
    %v1937 = vld [vmem:[%s3 + $0x40] sm:$0xf]
    %v1938 = vld [vmem:[%s3 + $0x44] sm:$0xf]
    %v1939 = vld [vmem:[%s3 + $0x48] sm:$0xf]
    %v1940 = vld [vmem:[%s3 + $0x4c] sm:$0xf]
    %v1941 = vld [vmem:[%s3 + $0x50] sm:$0xf]
    %v1942 = vld [vmem:[%s3 + $0x54] sm:$0xf]
    %v1943 = vld [vmem:[%s3 + $0x58] sm:$0xf]
    %v1944 = vld [vmem:[%s3 + $0x5c] sm:$0xf]
    %v1945 = vld [vmem:[%s3 + $0x60] sm:$0xf]
    %v1946 = vld [vmem:[%s3 + $0x64] sm:$0xf]
    %v1947 = vld [vmem:[%s3 + $0x68] sm:$0xf]
    %v1948 = vld [vmem:[%s3 + $0x6c] sm:$0xf]
    %v1949 = vld [vmem:[%s3 + $0x70] sm:$0xf]
    %v1950 = vld [vmem:[%s3 + $0x74] sm:$0xf]
    %v1951 = vld [vmem:[%s3 + $0x78] sm:$0xf]
    %v1952 = vld [vmem:[%s3 + $0x7c] sm:$0xf]
    %v1953 = vld [vmem:[%s4] sm:$0x1]
    %v1955 = vlaneseq
    %v1956 = vshrl.u32 %v1955, 7
    %v1957 = vsub.s32 0, %v1956
    %v1958 = vrot.slane %v1953, %v1957
    %v1992 = vunpack.c.l.b16 %v1921
    %v1993 = vunpack.c.l.b16 %v1922
    %v1994 = vunpack.c.l.b16 %v1923
    %v1995 = vunpack.c.l.b16 %v1924
    %v1996 = vunpack.c.l.b16 %v1925
    %v1997 = vunpack.c.l.b16 %v1926
    %v1998 = vunpack.c.l.b16 %v1927
    %v1999 = vunpack.c.l.b16 %v1928
    %v2000 = vunpack.c.l.b16 %v1929
    %v2001 = vunpack.c.l.b16 %v1930
    %v2002 = vunpack.c.l.b16 %v1931
    %v2003 = vunpack.c.l.b16 %v1932
    %v2004 = vunpack.c.l.b16 %v1933
    %v2005 = vunpack.c.l.b16 %v1934
    %v2006 = vunpack.c.l.b16 %v1935
    %v2007 = vunpack.c.l.b16 %v1936
    %v2008 = vunpack.c.l.b16 %v1937
    %v2009 = vunpack.c.l.b16 %v1938
    %v2010 = vunpack.c.l.b16 %v1939
    %v2011 = vunpack.c.l.b16 %v1940
    %v2012 = vunpack.c.l.b16 %v1941
    %v2013 = vunpack.c.l.b16 %v1942
    %v2014 = vunpack.c.l.b16 %v1943
    %v2015 = vunpack.c.l.b16 %v1944
    %v2016 = vunpack.c.l.b16 %v1945
    %v2017 = vunpack.c.l.b16 %v1946
    %v2018 = vunpack.c.l.b16 %v1947
    %v2019 = vunpack.c.l.b16 %v1948
    %v2020 = vunpack.c.l.b16 %v1949
    %v2021 = vunpack.c.l.b16 %v1950
    %v2022 = vunpack.c.l.b16 %v1951
    %v2023 = vunpack.c.l.b16 %v1952
    %v2024 = vpack.c.b16 %v1993, %v1992
    %v2025 = vpack.c.b16 %v1995, %v1994
    %v2026 = vpack.c.b16 %v1997, %v1996
    %v2027 = vpack.c.b16 %v1999, %v1998
    %v2028 = vpack.c.b16 %v2001, %v2000
    %v2029 = vpack.c.b16 %v2003, %v2002
    %v2030 = vpack.c.b16 %v2005, %v2004
    %v2031 = vpack.c.b16 %v2007, %v2006
    %v2032 = vpack.c.b16 %v2009, %v2008
    %v2033 = vpack.c.b16 %v2011, %v2010
    %v2034 = vpack.c.b16 %v2013, %v2012
    %v2035 = vpack.c.b16 %v2015, %v2014
    %v2036 = vpack.c.b16 %v2017, %v2016
    %v2037 = vpack.c.b16 %v2019, %v2018
    %v2038 = vpack.c.b16 %v2021, %v2020
    %v2039 = vpack.c.b16 %v2023, %v2022
    %2056 = vmatprep.subr.bf16.mxu0 0
    %2057 = vmatpush1.bf16.msra.mxu0 %v2031
    %2058 = vmatprep.subr.bf16.mxu0 0
    %2059 = vmatpush1.bf16.msra.mxu0 %v2030
    %2060 = vmatprep.subr.bf16.mxu0 0
    %2061 = vmatpush1.bf16.msra.mxu0 %v2029
    %2062 = vmatprep.subr.bf16.mxu0 0
    %2063 = vmatpush1.bf16.msra.mxu0 %v2028
    %2064 = vmatprep.subr.bf16.mxu0 0
    %2065 = vmatpush1.bf16.msra.mxu0 %v2027
    %2066 = vmatprep.subr.bf16.mxu0 0
    %2067 = vmatpush1.bf16.msra.mxu0 %v2026
    %2068 = vmatprep.subr.bf16.mxu0 0
    %2069 = vmatpush1.bf16.msra.mxu0 %v2025
    %2070 = vmatprep.subr.bf16.mxu0 0
    %2071 = vmatpush1.bf16.msra.mxu0 %v2024
    %2072 = vmatprep.subr.bf16.mxu0 0
    %2073 = vmatpush2.bf16.msra.mxu0 %v2039
    %2074 = vmatprep.subr.bf16.mxu0 0
    %2075 = vmatpush2.bf16.msra.mxu0 %v2038
    %2076 = vmatprep.subr.bf16.mxu0 0
    %2077 = vmatpush2.bf16.msra.mxu0 %v2037
    %2078 = vmatprep.subr.bf16.mxu0 0
    %2079 = vmatpush2.bf16.msra.mxu0 %v2036
    %2080 = vmatprep.subr.bf16.mxu0 0
    %2081 = vmatpush2.bf16.msra.mxu0 %v2035
    %2082 = vmatprep.subr.bf16.mxu0 0
    %2083 = vmatpush2.bf16.msra.mxu0 %v2034
    %2084 = vmatprep.subr.bf16.mxu0 0
    %2085 = vmatpush2.bf16.msra.mxu0 %v2033
    %2086 = vmatprep.subr.bf16.mxu0 0
    %2087 = vmatpush2.bf16.msra.mxu0 %v2032
    %2088 = vmatprep.mubr.bf16.mxu0 %v1920
    %2089 = vmatmul.mubr.bf16.gmra.mxu0 %v1919
    %v2090 = vpop.f32.mrf.mxu0
    %v2091 = vadd.f32 %v1958, %v2090
    %v2092 = vpop.f32.mrf.mxu0
    %v2093 = vpop.f32.mrf.mxu0
    %v2094 = vpop.f32.mrf.mxu0
    %2095 = vdwg.mxu0
    %v2096 = vmax.f32 %v2091, 0.0
    %v2097 = vpack.c.bf16 %v2096, %v2096
    %v2098 = vld [vmem:[%s5] sm:$0xf]
    %v2099 = vld [vmem:[%s5 + $0x4] sm:$0xf]
    %v2100 = vld [vmem:[%s6] sm:$0x1]
    %v2102 = vlaneseq
    %v2103 = vshrl.u32 %v2102, 7
    %v2104 = vsub.s32 0, %v2103
    %v2105 = vrot.slane %v2100, %v2104
    %v2109 = vunpack.c.l.b16 %v2098
    %v2110 = vunpack.c.l.b16 %v2099
    %v2111 = vpack.c.b16 %v2110, %v2109
    %vm2113 = vcmask 130048
    %v2115 = vsel %vm2113, %v2097, 0
    %2117 = vmatprep.subr.bf16.mxu0 0
    %2118 = vmatpush1.bf16.msra.mxu0 0
    %2119 = vmatprep.subr.bf16.mxu0 0
    %2120 = vmatpush1.bf16.msra.mxu0 0
    %2121 = vmatprep.subr.bf16.mxu0 0
    %2122 = vmatpush1.bf16.msra.mxu0 0
    %2123 = vmatprep.subr.bf16.mxu0 0
    %2124 = vmatpush1.bf16.msra.mxu0 0
    %2125 = vmatprep.subr.bf16.mxu0 0
    %2126 = vmatpush1.bf16.msra.mxu0 0
    %2127 = vmatprep.subr.bf16.mxu0 0
    %2128 = vmatpush1.bf16.msra.mxu0 0
    %2129 = vmatprep.subr.bf16.mxu0 0
    %2130 = vmatpush1.bf16.msra.mxu0 0
    %2131 = vmatprep.subr.bf16.mxu0 0
    %2132 = vmatpush1.bf16.msra.mxu0 %v2111
    %2133 = vmatprep.subr.bf16.mxu0 0
    %2134 = vmatpush2.bf16.msra.mxu0 0
    %2135 = vmatprep.subr.bf16.mxu0 0
    %2136 = vmatpush2.bf16.msra.mxu0 0
    %2137 = vmatprep.subr.bf16.mxu0 0
    %2138 = vmatpush2.bf16.msra.mxu0 0
    %2139 = vmatprep.subr.bf16.mxu0 0
    %2140 = vmatpush2.bf16.msra.mxu0 0
    %2141 = vmatprep.subr.bf16.mxu0 0
    %2142 = vmatpush2.bf16.msra.mxu0 0
    %2143 = vmatprep.subr.bf16.mxu0 0
    %2144 = vmatpush2.bf16.msra.mxu0 0
    %2145 = vmatprep.subr.bf16.mxu0 0
    %2146 = vmatpush2.bf16.msra.mxu0 0
    %2147 = vmatprep.subr.bf16.mxu0 0
    %2148 = vmatpush2.bf16.msra.mxu0 0
    %2149 = vmatprep.mubr.bf16.mxu0 0
    %2150 = vmatmul.mubr.bf16.gmra.mxu0 %v2115
    %v2151 = vpop.f32.mrf.mxu0
    %v2152 = vadd.f32 %v2105, %v2151
    %v2153 = vpop.f32.mrf.mxu0
    %v2154 = vpop.f32.mrf.mxu0
    %v2155 = vpop.f32.mrf.mxu0
    %2156 = vdwg.mxu0
    %vm2157 = vcmask 15360
    %2158 = vst.msk [vmem:[%s13] sm:$0xff] %vm2157, %v2152
    %v2159 = vpack.c.bf16 %v2152, %v2152
    %v2160 = vld [vmem:[%s7] sm:$0x1]
    %v2161 = vld [vmem:[%s8] sm:$0x1]
    %v2163 = vlaneseq
    %v2164 = vshrl.u32 %v2163, 7
    %v2165 = vsub.s32 0, %v2164
    %v2166 = vrot.slane %v2161, %v2165
    %v2169 = vsel %vm2157, %v2159, 0
    %vm2171 = vcmask 1040384
    %v2173 = vsel %vm2171, %v2160, 0
    %2175 = vmatprep.subr.bf16.mxu0 0
    %2176 = vmatpush1.bf16.msra.mxu0 0
    %2177 = vmatprep.subr.bf16.mxu0 0
    %2178 = vmatpush1.bf16.msra.mxu0 0
    %2179 = vmatprep.subr.bf16.mxu0 0
    %2180 = vmatpush1.bf16.msra.mxu0 0
    %2181 = vmatprep.subr.bf16.mxu0 0
    %2182 = vmatpush1.bf16.msra.mxu0 0
    %2183 = vmatprep.subr.bf16.mxu0 0
    %2184 = vmatpush1.bf16.msra.mxu0 0
    %2185 = vmatprep.subr.bf16.mxu0 0
    %2186 = vmatpush1.bf16.msra.mxu0 0
    %2187 = vmatprep.subr.bf16.mxu0 0
    %2188 = vmatpush1.bf16.msra.mxu0 0
    %2189 = vmatprep.subr.bf16.mxu0 0
    %2190 = vmatpush1.bf16.msra.mxu0 %v2173
    %2191 = vmatprep.subr.bf16.mxu0 0
    %2192 = vmatpush2.bf16.msra.mxu0 0
    %2193 = vmatprep.subr.bf16.mxu0 0
    %2194 = vmatpush2.bf16.msra.mxu0 0
    %2195 = vmatprep.subr.bf16.mxu0 0
    %2196 = vmatpush2.bf16.msra.mxu0 0
    %2197 = vmatprep.subr.bf16.mxu0 0
    %2198 = vmatpush2.bf16.msra.mxu0 0
    %2199 = vmatprep.subr.bf16.mxu0 0
    %2200 = vmatpush2.bf16.msra.mxu0 0
    %2201 = vmatprep.subr.bf16.mxu0 0
    %2202 = vmatpush2.bf16.msra.mxu0 0
    %2203 = vmatprep.subr.bf16.mxu0 0
    %2204 = vmatpush2.bf16.msra.mxu0 0
    %2205 = vmatprep.subr.bf16.mxu0 0
    %2206 = vmatpush2.bf16.msra.mxu0 0
    %2207 = vmatprep.mubr.bf16.mxu0 0
    %2208 = vmatmul.mubr.bf16.gmra.mxu0 %v2169
    %v2209 = vpop.f32.mrf.mxu0
    %v2210 = vadd.f32 %v2166, %v2209
    %v2211 = vpop.f32.mrf.mxu0
    %v2212 = vpop.f32.mrf.mxu0
    %v2213 = vpop.f32.mrf.mxu0
    %2214 = vdwg.mxu0
    %v2215 = vmax.f32 %v2210, 0.0
    %v2216 = vpack.c.bf16 %v2215, %v2215
    %v2217 = vld [vmem:[%s9] sm:$0xff]
    %v2218 = vld [vmem:[%s9 + $0x8] sm:$0xff]
    %v2219 = vld [vmem:[%s10] sm:$0x3]
    %v2221 = vlaneseq
    %v2222 = vshrl.u32 %v2221, 7
    %v2223 = vsub.s32 0, %v2222
    %v2224 = vrot.slane %v2219, %v2223
    %v2225 = vlaneseq
    %v2226 = vshrl.u32 %v2225, 7
    %v2227 = vsub.s32 1, %v2226
    %v2228 = vrot.slane %v2219, %v2227
    %v2233 = vunpack.c.l.b16 %v2217
    %v2234 = vunpack.c.h.b16 %v2217
    %v2235 = vunpack.c.l.b16 %v2218
    %v2236 = vunpack.c.h.b16 %v2218
    %v2237 = vpack.c.b16 %v2235, %v2233
    %v2238 = vpack.c.b16 %v2236, %v2234
    %v2242 = vsel %vm2113, %v2216, 0
    %2244 = vmatprep.subr.bf16.mxu0 0
    %2245 = vmatpush1.bf16.msra.mxu0 0
    %2246 = vmatprep.subr.bf16.mxu0 0
    %2247 = vmatpush1.bf16.msra.mxu0 0
    %2248 = vmatprep.subr.bf16.mxu0 0
    %2249 = vmatpush1.bf16.msra.mxu0 0
    %2250 = vmatprep.subr.bf16.mxu0 0
    %2251 = vmatpush1.bf16.msra.mxu0 0
    %2252 = vmatprep.subr.bf16.mxu0 0
    %2253 = vmatpush1.bf16.msra.mxu0 0
    %2254 = vmatprep.subr.bf16.mxu0 0
    %2255 = vmatpush1.bf16.msra.mxu0 0
    %2256 = vmatprep.subr.bf16.mxu0 0
    %2257 = vmatpush1.bf16.msra.mxu0 0
    %2258 = vmatprep.subr.bf16.mxu0 %v2238
    %2259 = vmatpush1.bf16.msra.mxu0 %v2237
    %2260 = vmatprep.subr.bf16.mxu0 0
    %2261 = vmatpush2.bf16.msra.mxu0 0
    %2262 = vmatprep.subr.bf16.mxu0 0
    %2263 = vmatpush2.bf16.msra.mxu0 0
    %2264 = vmatprep.subr.bf16.mxu0 0
    %2265 = vmatpush2.bf16.msra.mxu0 0
    %2266 = vmatprep.subr.bf16.mxu0 0
    %2267 = vmatpush2.bf16.msra.mxu0 0
    %2268 = vmatprep.subr.bf16.mxu0 0
    %2269 = vmatpush2.bf16.msra.mxu0 0
    %2270 = vmatprep.subr.bf16.mxu0 0
    %2271 = vmatpush2.bf16.msra.mxu0 0
    %2272 = vmatprep.subr.bf16.mxu0 0
    %2273 = vmatpush2.bf16.msra.mxu0 0
    %2274 = vmatprep.subr.bf16.mxu0 0
    %2275 = vmatpush2.bf16.msra.mxu0 0
    %2276 = vmatprep.mubr.bf16.mxu0 0
    %2277 = vmatmul.mubr.bf16.gmra.mxu0 %v2242
    %v2278 = vpop.f32.mrf.mxu0
    %v2279 = vadd.f32 %v2224, %v2278
    %v2280 = vpop.f32.mrf.mxu0
    %v2281 = vadd.f32 %v2228, %v2280
    %v2282 = vpop.f32.mrf.mxu0
    %v2283 = vpop.f32.mrf.mxu0
    %2284 = vdwg.mxu0
    %v2285 = vmax.f32 %v2279, 0.0
    %v2286 = vmax.f32 %v2281, 0.0
    %v2287 = vpack.c.bf16 %v2285, %v2285
    %v2288 = vpack.c.bf16 %v2286, %v2286
    %v2289 = vld [vmem:[#allocation5] sm:$0xff]
    %v2290 = vld [vmem:[#allocation5 + $0x8] sm:$0xff]
    %v2291 = vld [vmem:[#allocation5 + $0x10] sm:$0xff]
    %v2292 = vld [vmem:[#allocation5 + $0x18] sm:$0xff]
    %v2293 = vld [vmem:[#allocation5 + $0x20] sm:$0xff]
    %v2294 = vld [vmem:[#allocation5 + $0x28] sm:$0xff]
    %v2295 = vld [vmem:[#allocation5 + $0x30] sm:$0xff]
    %v2296 = vld [vmem:[#allocation5 + $0x38] sm:$0xf]
    %v2297 = vld [vmem:[#allocation5 + $0x3c] sm:$0xff]
    %v2298 = vld [vmem:[#allocation5 + $0x44] sm:$0xff]
    %v2299 = vld [vmem:[#allocation5 + $0x4c] sm:$0xff]
    %v2300 = vld [vmem:[#allocation5 + $0x54] sm:$0xff]
    %v2301 = vld [vmem:[#allocation5 + $0x5c] sm:$0xff]
    %v2302 = vld [vmem:[#allocation5 + $0x64] sm:$0xff]
    %v2303 = vld [vmem:[#allocation5 + $0x6c] sm:$0xff]
    %v2304 = vld [vmem:[#allocation5 + $0x74] sm:$0xf]
    %v2305 = vld [vmem:[#allocation5 + $0x78] sm:$0xff]
    %v2306 = vld [vmem:[#allocation5 + $0x80] sm:$0xff]
    %v2307 = vld [vmem:[#allocation5 + $0x88] sm:$0xff]
    %v2308 = vld [vmem:[#allocation5 + $0x90] sm:$0xff]
    %v2309 = vld [vmem:[#allocation5 + $0x98] sm:$0xff]
    %v2310 = vld [vmem:[#allocation5 + $0xa0] sm:$0xff]
    %v2311 = vld [vmem:[#allocation5 + $0xa8] sm:$0xff]
    %v2312 = vld [vmem:[#allocation5 + $0xb0] sm:$0xf]
    %v2313 = vld [vmem:[#allocation5 + $0xb4] sm:$0xff]
    %v2314 = vld [vmem:[#allocation5 + $0xbc] sm:$0xff]
    %v2315 = vld [vmem:[#allocation5 + $0xc4] sm:$0xff]
    %v2316 = vld [vmem:[#allocation5 + $0xcc] sm:$0xff]
    %v2317 = vld [vmem:[#allocation5 + $0xd4] sm:$0xff]
    %v2318 = vld [vmem:[#allocation5 + $0xdc] sm:$0xff]
    %v2319 = vld [vmem:[#allocation5 + $0xe4] sm:$0xff]
    %v2320 = vld [vmem:[#allocation5 + $0xec] sm:$0xf]
    %v2321 = vld [vmem:[#allocation5 + $0xf0] sm:$0xff]
    %v2322 = vld [vmem:[#allocation5 + $0xf8] sm:$0xff]
    %v2323 = vld [vmem:[#allocation5 + $0x100] sm:$0xff]
    %v2324 = vld [vmem:[#allocation5 + $0x108] sm:$0xff]
    %v2325 = vld [vmem:[#allocation5 + $0x110] sm:$0xff]
    %v2326 = vld [vmem:[#allocation5 + $0x118] sm:$0xff]
    %v2327 = vld [vmem:[#allocation5 + $0x120] sm:$0xff]
    %v2328 = vld [vmem:[#allocation5 + $0x128] sm:$0xf]
    %v2329 = vld [vmem:[#allocation5 + $0x12c] sm:$0xff]
    %v2330 = vld [vmem:[#allocation5 + $0x134] sm:$0xff]
    %v2331 = vld [vmem:[#allocation5 + $0x13c] sm:$0xff]
    %v2332 = vld [vmem:[#allocation5 + $0x144] sm:$0xff]
    %v2333 = vld [vmem:[#allocation5 + $0x14c] sm:$0xff]
    %v2334 = vld [vmem:[#allocation5 + $0x154] sm:$0xff]
    %v2335 = vld [vmem:[#allocation5 + $0x15c] sm:$0xff]
    %v2336 = vld [vmem:[#allocation5 + $0x164] sm:$0xf]
    %v2337 = vld [vmem:[#allocation5 + $0x168] sm:$0xff]
    %v2338 = vld [vmem:[#allocation5 + $0x170] sm:$0xff]
    %v2339 = vld [vmem:[#allocation5 + $0x178] sm:$0xff]
    %v2340 = vld [vmem:[#allocation5 + $0x180] sm:$0xff]
    %v2341 = vld [vmem:[#allocation5 + $0x188] sm:$0xff]
    %v2342 = vld [vmem:[#allocation5 + $0x190] sm:$0xff]
    %v2343 = vld [vmem:[#allocation5 + $0x198] sm:$0xff]
    %v2344 = vld [vmem:[#allocation5 + $0x1a0] sm:$0xf]
    %v2345 = vld [vmem:[#allocation5 + $0x1a4] sm:$0xff]
    %v2346 = vld [vmem:[#allocation5 + $0x1ac] sm:$0xff]
    %v2347 = vld [vmem:[#allocation5 + $0x1b4] sm:$0xff]
    %v2348 = vld [vmem:[#allocation5 + $0x1bc] sm:$0xff]
    %v2349 = vld [vmem:[#allocation5 + $0x1c4] sm:$0xff]
    %v2350 = vld [vmem:[#allocation5 + $0x1cc] sm:$0xff]
    %v2351 = vld [vmem:[#allocation5 + $0x1d4] sm:$0xff]
    %v2352 = vld [vmem:[#allocation5 + $0x1dc] sm:$0xf]
    %v2353 = vld [vmem:[#allocation5 + $0x1e0] sm:$0xff]
    %v2354 = vld [vmem:[#allocation5 + $0x1e8] sm:$0xff]
    %v2355 = vld [vmem:[#allocation5 + $0x1f0] sm:$0xff]
    %v2356 = vld [vmem:[#allocation5 + $0x1f8] sm:$0xff]
    %v2357 = vld [vmem:[#allocation5 + $0x200] sm:$0xff]
    %v2358 = vld [vmem:[#allocation5 + $0x208] sm:$0xff]
    %v2359 = vld [vmem:[#allocation5 + $0x210] sm:$0xff]
    %v2360 = vld [vmem:[#allocation5 + $0x218] sm:$0xf]
    %v2361 = vld [vmem:[#allocation5 + $0x21c] sm:$0xff]
    %v2362 = vld [vmem:[#allocation5 + $0x224] sm:$0xff]
    %v2363 = vld [vmem:[#allocation5 + $0x22c] sm:$0xff]
    %v2364 = vld [vmem:[#allocation5 + $0x234] sm:$0xff]
    %v2365 = vld [vmem:[#allocation5 + $0x23c] sm:$0xff]
    %v2366 = vld [vmem:[#allocation5 + $0x244] sm:$0xff]
    %v2367 = vld [vmem:[#allocation5 + $0x24c] sm:$0xff]
    %v2368 = vld [vmem:[#allocation5 + $0x254] sm:$0xf]
    %v2369 = vld [vmem:[#allocation5 + $0x258] sm:$0xff]
    %v2370 = vld [vmem:[#allocation5 + $0x260] sm:$0xff]
    %v2371 = vld [vmem:[#allocation5 + $0x268] sm:$0xff]
    %v2372 = vld [vmem:[#allocation5 + $0x270] sm:$0xff]
    %v2373 = vld [vmem:[#allocation5 + $0x278] sm:$0xff]
    %v2374 = vld [vmem:[#allocation5 + $0x280] sm:$0xff]
    %v2375 = vld [vmem:[#allocation5 + $0x288] sm:$0xff]
    %v2376 = vld [vmem:[#allocation5 + $0x290] sm:$0xf]
    %v2377 = vld [vmem:[#allocation5 + $0x294] sm:$0xff]
    %v2378 = vld [vmem:[#allocation5 + $0x29c] sm:$0xff]
    %v2379 = vld [vmem:[#allocation5 + $0x2a4] sm:$0xff]
    %v2380 = vld [vmem:[#allocation5 + $0x2ac] sm:$0xff]
    %v2381 = vld [vmem:[#allocation5 + $0x2b4] sm:$0xff]
    %v2382 = vld [vmem:[#allocation5 + $0x2bc] sm:$0xff]
    %v2383 = vld [vmem:[#allocation5 + $0x2c4] sm:$0xff]
    %v2384 = vld [vmem:[#allocation5 + $0x2cc] sm:$0xf]
    %v2385 = vld [vmem:[#allocation5 + $0x2d0] sm:$0xff]
    %v2386 = vld [vmem:[#allocation5 + $0x2d8] sm:$0xff]
    %v2387 = vld [vmem:[#allocation5 + $0x2e0] sm:$0xff]
    %v2388 = vld [vmem:[#allocation5 + $0x2e8] sm:$0xff]
    %v2389 = vld [vmem:[#allocation5 + $0x2f0] sm:$0xff]
    %v2390 = vld [vmem:[#allocation5 + $0x2f8] sm:$0xff]
    %v2391 = vld [vmem:[#allocation5 + $0x300] sm:$0xff]
    %v2392 = vld [vmem:[#allocation5 + $0x308] sm:$0xf]
    %v2393 = vld [vmem:[#allocation5 + $0x30c] sm:$0xff]
    %v2394 = vld [vmem:[#allocation5 + $0x314] sm:$0xff]
    %v2395 = vld [vmem:[#allocation5 + $0x31c] sm:$0xff]
    %v2396 = vld [vmem:[#allocation5 + $0x324] sm:$0xff]
    %v2397 = vld [vmem:[#allocation5 + $0x32c] sm:$0xff]
    %v2398 = vld [vmem:[#allocation5 + $0x334] sm:$0xff]
    %v2399 = vld [vmem:[#allocation5 + $0x33c] sm:$0xff]
    %v2400 = vld [vmem:[#allocation5 + $0x344] sm:$0xf]
    %v2401 = vld [vmem:[#allocation5 + $0x348] sm:$0xff]
    %v2402 = vld [vmem:[#allocation5 + $0x350] sm:$0xff]
    %v2403 = vld [vmem:[#allocation5 + $0x358] sm:$0xff]
    %v2404 = vld [vmem:[#allocation5 + $0x360] sm:$0xff]
    %v2405 = vld [vmem:[#allocation5 + $0x368] sm:$0xff]
    %v2406 = vld [vmem:[#allocation5 + $0x370] sm:$0xff]
    %v2407 = vld [vmem:[#allocation5 + $0x378] sm:$0xff]
    %v2408 = vld [vmem:[#allocation5 + $0x380] sm:$0xf]
    %v2409 = vld [vmem:[#allocation5 + $0x384] sm:$0xff]
    %v2410 = vld [vmem:[#allocation5 + $0x38c] sm:$0xff]
    %v2411 = vld [vmem:[#allocation5 + $0x394] sm:$0xff]
    %v2412 = vld [vmem:[#allocation5 + $0x39c] sm:$0xff]
    %v2413 = vld [vmem:[#allocation5 + $0x3a4] sm:$0xff]
    %v2414 = vld [vmem:[#allocation5 + $0x3ac] sm:$0xff]
    %v2415 = vld [vmem:[#allocation5 + $0x3b4] sm:$0xff]
    %v2416 = vld [vmem:[#allocation5 + $0x3bc] sm:$0xf]
    %v2417 = vld [vmem:[#allocation5 + $0x3c0] sm:$0xff]
    %v2418 = vld [vmem:[#allocation5 + $0x3c8] sm:$0xff]
    %v2419 = vld [vmem:[#allocation5 + $0x3d0] sm:$0xff]
    %v2420 = vld [vmem:[#allocation5 + $0x3d8] sm:$0xff]
    %v2421 = vld [vmem:[#allocation5 + $0x3e0] sm:$0xff]
    %v2422 = vld [vmem:[#allocation5 + $0x3e8] sm:$0xff]
    %v2423 = vld [vmem:[#allocation5 + $0x3f0] sm:$0xff]
    %v2424 = vld [vmem:[#allocation5 + $0x3f8] sm:$0xf]
    %v2425 = vld [vmem:[#allocation5 + $0x3fc] sm:$0xff]
    %v2426 = vld [vmem:[#allocation5 + $0x404] sm:$0xff]
    %v2427 = vld [vmem:[#allocation5 + $0x40c] sm:$0xff]
    %v2428 = vld [vmem:[#allocation5 + $0x414] sm:$0xff]
    %v2429 = vld [vmem:[#allocation5 + $0x41c] sm:$0xff]
    %v2430 = vld [vmem:[#allocation5 + $0x424] sm:$0xff]
    %v2431 = vld [vmem:[#allocation5 + $0x42c] sm:$0xff]
    %v2432 = vld [vmem:[#allocation5 + $0x434] sm:$0xf]
    %v2433 = vld [vmem:[#allocation5 + $0x438] sm:$0xff]
    %v2434 = vld [vmem:[#allocation5 + $0x440] sm:$0xff]
    %v2435 = vld [vmem:[#allocation5 + $0x448] sm:$0xff]
    %v2436 = vld [vmem:[#allocation5 + $0x450] sm:$0xff]
    %v2437 = vld [vmem:[#allocation5 + $0x458] sm:$0xff]
    %v2438 = vld [vmem:[#allocation5 + $0x460] sm:$0xff]
    %v2439 = vld [vmem:[#allocation5 + $0x468] sm:$0xff]
    %v2440 = vld [vmem:[#allocation5 + $0x470] sm:$0xf]
    %v2441 = vld [vmem:[#allocation5 + $0x474] sm:$0xff]
    %v2442 = vld [vmem:[#allocation5 + $0x47c] sm:$0xff]
    %v2443 = vld [vmem:[#allocation5 + $0x484] sm:$0xff]
    %v2444 = vld [vmem:[#allocation5 + $0x48c] sm:$0xff]
    %v2445 = vld [vmem:[#allocation5 + $0x494] sm:$0xff]
    %v2446 = vld [vmem:[#allocation5 + $0x49c] sm:$0xff]
    %v2447 = vld [vmem:[#allocation5 + $0x4a4] sm:$0xff]
    %v2448 = vld [vmem:[#allocation5 + $0x4ac] sm:$0xf]
    %v2449 = vld [vmem:[#allocation5 + $0x4b0] sm:$0xff]
    %v2450 = vld [vmem:[#allocation5 + $0x4b8] sm:$0xff]
    %v2451 = vld [vmem:[#allocation5 + $0x4c0] sm:$0xff]
    %v2452 = vld [vmem:[#allocation5 + $0x4c8] sm:$0xff]
    %v2453 = vld [vmem:[#allocation5 + $0x4d0] sm:$0xff]
    %v2454 = vld [vmem:[#allocation5 + $0x4d8] sm:$0xff]
    %v2455 = vld [vmem:[#allocation5 + $0x4e0] sm:$0xff]
    %v2456 = vld [vmem:[#allocation5 + $0x4e8] sm:$0xf]
    %v2457 = vld [vmem:[#allocation5 + $0x4ec] sm:$0xff]
    %v2458 = vld [vmem:[#allocation5 + $0x4f4] sm:$0xff]
    %v2459 = vld [vmem:[#allocation5 + $0x4fc] sm:$0xff]
    %v2460 = vld [vmem:[#allocation5 + $0x504] sm:$0xff]
    %v2461 = vld [vmem:[#allocation5 + $0x50c] sm:$0xff]
    %v2462 = vld [vmem:[#allocation5 + $0x514] sm:$0xff]
    %v2463 = vld [vmem:[#allocation5 + $0x51c] sm:$0xff]
    %v2464 = vld [vmem:[#allocation5 + $0x524] sm:$0xf]
    %v2465 = vld [vmem:[#allocation5 + $0x528] sm:$0xff]
    %v2466 = vld [vmem:[#allocation5 + $0x530] sm:$0xff]
    %v2467 = vld [vmem:[#allocation5 + $0x538] sm:$0xff]
    %v2468 = vld [vmem:[#allocation5 + $0x540] sm:$0xff]
    %v2469 = vld [vmem:[#allocation5 + $0x548] sm:$0xff]
    %v2470 = vld [vmem:[#allocation5 + $0x550] sm:$0xff]
    %v2471 = vld [vmem:[#allocation5 + $0x558] sm:$0xff]
    %v2472 = vld [vmem:[#allocation5 + $0x560] sm:$0xf]
    %v2473 = vld [vmem:[#allocation5 + $0x564] sm:$0xff]
    %v2474 = vld [vmem:[#allocation5 + $0x56c] sm:$0xff]
    %v2475 = vld [vmem:[#allocation5 + $0x574] sm:$0xff]
    %v2476 = vld [vmem:[#allocation5 + $0x57c] sm:$0xff]
    %v2477 = vld [vmem:[#allocation5 + $0x584] sm:$0xff]
    %v2478 = vld [vmem:[#allocation5 + $0x58c] sm:$0xff]
    %v2479 = vld [vmem:[#allocation5 + $0x594] sm:$0xff]
    %v2480 = vld [vmem:[#allocation5 + $0x59c] sm:$0xf]
    %v2481 = vld [vmem:[#allocation5 + $0x5a0] sm:$0xff]
    %v2482 = vld [vmem:[#allocation5 + $0x5a8] sm:$0xff]
    %v2483 = vld [vmem:[#allocation5 + $0x5b0] sm:$0xff]
    %v2484 = vld [vmem:[#allocation5 + $0x5b8] sm:$0xff]
    %v2485 = vld [vmem:[#allocation5 + $0x5c0] sm:$0xff]
    %v2486 = vld [vmem:[#allocation5 + $0x5c8] sm:$0xff]
    %v2487 = vld [vmem:[#allocation5 + $0x5d0] sm:$0xff]
    %v2488 = vld [vmem:[#allocation5 + $0x5d8] sm:$0xf]
    %v2489 = vld [vmem:[#allocation5 + $0x5dc] sm:$0xff]
    %v2490 = vld [vmem:[#allocation5 + $0x5e4] sm:$0xff]
    %v2491 = vld [vmem:[#allocation5 + $0x5ec] sm:$0xff]
    %v2492 = vld [vmem:[#allocation5 + $0x5f4] sm:$0xff]
    %v2493 = vld [vmem:[#allocation5 + $0x5fc] sm:$0xff]
    %v2494 = vld [vmem:[#allocation5 + $0x604] sm:$0xff]
    %v2495 = vld [vmem:[#allocation5 + $0x60c] sm:$0xff]
    %v2496 = vld [vmem:[#allocation5 + $0x614] sm:$0xf]
    %v2497 = vld [vmem:[#allocation5 + $0x618] sm:$0xff]
    %v2498 = vld [vmem:[#allocation5 + $0x620] sm:$0xff]
    %v2499 = vld [vmem:[#allocation5 + $0x628] sm:$0xff]
    %v2500 = vld [vmem:[#allocation5 + $0x630] sm:$0xff]
    %v2501 = vld [vmem:[#allocation5 + $0x638] sm:$0xff]
    %v2502 = vld [vmem:[#allocation5 + $0x640] sm:$0xff]
    %v2503 = vld [vmem:[#allocation5 + $0x648] sm:$0xff]
    %v2504 = vld [vmem:[#allocation5 + $0x650] sm:$0xf]
    %v2505 = vld [vmem:[#allocation5 + $0x654] sm:$0xff]
    %v2506 = vld [vmem:[#allocation5 + $0x65c] sm:$0xff]
    %v2507 = vld [vmem:[#allocation5 + $0x664] sm:$0xff]
    %v2508 = vld [vmem:[#allocation5 + $0x66c] sm:$0xff]
    %v2509 = vld [vmem:[#allocation5 + $0x674] sm:$0xff]
    %v2510 = vld [vmem:[#allocation5 + $0x67c] sm:$0xff]
    %v2511 = vld [vmem:[#allocation5 + $0x684] sm:$0xff]
    %v2512 = vld [vmem:[#allocation5 + $0x68c] sm:$0xf]
    %v2513 = vld [vmem:[#allocation5 + $0x690] sm:$0xff]
    %v2514 = vld [vmem:[#allocation5 + $0x698] sm:$0xff]
    %v2515 = vld [vmem:[#allocation5 + $0x6a0] sm:$0xff]
    %v2516 = vld [vmem:[#allocation5 + $0x6a8] sm:$0xff]
    %v2517 = vld [vmem:[#allocation5 + $0x6b0] sm:$0xff]
    %v2518 = vld [vmem:[#allocation5 + $0x6b8] sm:$0xff]
    %v2519 = vld [vmem:[#allocation5 + $0x6c0] sm:$0xff]
    %v2520 = vld [vmem:[#allocation5 + $0x6c8] sm:$0xf]
    %v2521 = vld [vmem:[#allocation5 + $0x6cc] sm:$0xff]
    %v2522 = vld [vmem:[#allocation5 + $0x6d4] sm:$0xff]
    %v2523 = vld [vmem:[#allocation5 + $0x6dc] sm:$0xff]
    %v2524 = vld [vmem:[#allocation5 + $0x6e4] sm:$0xff]
    %v2525 = vld [vmem:[#allocation5 + $0x6ec] sm:$0xff]
    %v2526 = vld [vmem:[#allocation5 + $0x6f4] sm:$0xff]
    %v2527 = vld [vmem:[#allocation5 + $0x6fc] sm:$0xff]
    %v2528 = vld [vmem:[#allocation5 + $0x704] sm:$0xf]
    %v2529 = vld [vmem:[#allocation5 + $0x708] sm:$0xff]
    %v2530 = vld [vmem:[#allocation5 + $0x710] sm:$0xff]
    %v2531 = vld [vmem:[#allocation5 + $0x718] sm:$0xff]
    %v2532 = vld [vmem:[#allocation5 + $0x720] sm:$0xff]
    %v2533 = vld [vmem:[#allocation5 + $0x728] sm:$0xff]
    %v2534 = vld [vmem:[#allocation5 + $0x730] sm:$0xff]
    %v2535 = vld [vmem:[#allocation5 + $0x738] sm:$0xff]
    %v2536 = vld [vmem:[#allocation5 + $0x740] sm:$0xf]
    %v2537 = vld [vmem:[#allocation5 + $0x744] sm:$0xff]
    %v2538 = vld [vmem:[#allocation5 + $0x74c] sm:$0xff]
    %v2539 = vld [vmem:[#allocation5 + $0x754] sm:$0xff]
    %v2540 = vld [vmem:[#allocation5 + $0x75c] sm:$0xff]
    %v2541 = vld [vmem:[#allocation5 + $0x764] sm:$0xff]
    %v2542 = vld [vmem:[#allocation5 + $0x76c] sm:$0xff]
    %v2543 = vld [vmem:[#allocation5 + $0x774] sm:$0xff]
    %v2544 = vld [vmem:[#allocation5 + $0x77c] sm:$0xf]
    %v2545 = vld [vmem:[%s12] sm:$0xff]
    %v2546 = vld [vmem:[%s12 + $0x8] sm:$0xff]
    %v2549 = vlaneseq
    %v2550 = vshrl.u32 %v2549, 7
    %v2551 = vsub.s32 0, %v2550
    %v2552 = vrot.slane %v2545, %v2551
    %v2553 = vlaneseq
    %v2554 = vshrl.u32 %v2553, 7
    %v2555 = vsub.s32 1, %v2554
    %v2556 = vrot.slane %v2545, %v2555
    %v2557 = vlaneseq
    %v2558 = vshrl.u32 %v2557, 7
    %v2559 = vsub.s32 2, %v2558
    %v2560 = vrot.slane %v2545, %v2559
    %v2561 = vlaneseq
    %v2562 = vshrl.u32 %v2561, 7
    %v2563 = vsub.s32 3, %v2562
    %v2564 = vrot.slane %v2545, %v2563
    %v2565 = vlaneseq
    %v2566 = vshrl.u32 %v2565, 7
    %v2567 = vsub.s32 4, %v2566
    %v2568 = vrot.slane %v2545, %v2567
    %v2569 = vlaneseq
    %v2570 = vshrl.u32 %v2569, 7
    %v2571 = vsub.s32 5, %v2570
    %v2572 = vrot.slane %v2545, %v2571
    %v2573 = vlaneseq
    %v2574 = vshrl.u32 %v2573, 7
    %v2575 = vsub.s32 6, %v2574
    %v2576 = vrot.slane %v2545, %v2575
    %v2577 = vlaneseq
    %v2578 = vshrl.u32 %v2577, 7
    %v2579 = vsub.s32 7, %v2578
    %v2580 = vrot.slane %v2545, %v2579
    %v2581 = vlaneseq
    %v2582 = vshrl.u32 %v2581, 7
    %v2583 = vsub.s32 0, %v2582
    %v2584 = vrot.slane %v2546, %v2583
    %v2585 = vlaneseq
    %v2586 = vshrl.u32 %v2585, 7
    %v2587 = vsub.s32 1, %v2586
    %v2588 = vrot.slane %v2546, %v2587
    %v2589 = vlaneseq
    %v2590 = vshrl.u32 %v2589, 7
    %v2591 = vsub.s32 2, %v2590
    %v2592 = vrot.slane %v2546, %v2591
    %v2593 = vlaneseq
    %v2594 = vshrl.u32 %v2593, 7
    %v2595 = vsub.s32 3, %v2594
    %v2596 = vrot.slane %v2546, %v2595
    %v2597 = vlaneseq
    %v2598 = vshrl.u32 %v2597, 7
    %v2599 = vsub.s32 4, %v2598
    %v2600 = vrot.slane %v2546, %v2599
    %v2601 = vlaneseq
    %v2602 = vshrl.u32 %v2601, 7
    %v2603 = vsub.s32 5, %v2602
    %v2604 = vrot.slane %v2546, %v2603
    %v2605 = vlaneseq
    %v2606 = vshrl.u32 %v2605, 7
    %v2607 = vsub.s32 6, %v2606
    %v2608 = vrot.slane %v2546, %v2607
    %v2880 = vunpack.c.l.b16 %v2289
    %v2881 = vunpack.c.h.b16 %v2289
    %v2882 = vunpack.c.l.b16 %v2290
    %v2883 = vunpack.c.h.b16 %v2290
    %v2884 = vunpack.c.l.b16 %v2291
    %v2885 = vunpack.c.h.b16 %v2291
    %v2886 = vunpack.c.l.b16 %v2292
    %v2887 = vunpack.c.h.b16 %v2292
    %v2888 = vunpack.c.l.b16 %v2293
    %v2889 = vunpack.c.h.b16 %v2293
    %v2890 = vunpack.c.l.b16 %v2294
    %v2891 = vunpack.c.h.b16 %v2294
    %v2892 = vunpack.c.l.b16 %v2295
    %v2893 = vunpack.c.h.b16 %v2295
    %v2894 = vunpack.c.l.b16 %v2296
    %v2895 = vunpack.c.l.b16 %v2297
    %v2896 = vunpack.c.h.b16 %v2297
    %v2897 = vunpack.c.l.b16 %v2298
    %v2898 = vunpack.c.h.b16 %v2298
    %v2899 = vunpack.c.l.b16 %v2299
    %v2900 = vunpack.c.h.b16 %v2299
    %v2901 = vunpack.c.l.b16 %v2300
    %v2902 = vunpack.c.h.b16 %v2300
    %v2903 = vunpack.c.l.b16 %v2301
    %v2904 = vunpack.c.h.b16 %v2301
    %v2905 = vunpack.c.l.b16 %v2302
    %v2906 = vunpack.c.h.b16 %v2302
    %v2907 = vunpack.c.l.b16 %v2303
    %v2908 = vunpack.c.h.b16 %v2303
    %v2909 = vunpack.c.l.b16 %v2304
    %v2910 = vunpack.c.l.b16 %v2305
    %v2911 = vunpack.c.h.b16 %v2305
    %v2912 = vunpack.c.l.b16 %v2306
    %v2913 = vunpack.c.h.b16 %v2306
    %v2914 = vunpack.c.l.b16 %v2307
    %v2915 = vunpack.c.h.b16 %v2307
    %v2916 = vunpack.c.l.b16 %v2308
    %v2917 = vunpack.c.h.b16 %v2308
    %v2918 = vunpack.c.l.b16 %v2309
    %v2919 = vunpack.c.h.b16 %v2309
    %v2920 = vunpack.c.l.b16 %v2310
    %v2921 = vunpack.c.h.b16 %v2310
    %v2922 = vunpack.c.l.b16 %v2311
    %v2923 = vunpack.c.h.b16 %v2311
    %v2924 = vunpack.c.l.b16 %v2312
    %v2925 = vunpack.c.l.b16 %v2313
    %v2926 = vunpack.c.h.b16 %v2313
    %v2927 = vunpack.c.l.b16 %v2314
    %v2928 = vunpack.c.h.b16 %v2314
    %v2929 = vunpack.c.l.b16 %v2315
    %v2930 = vunpack.c.h.b16 %v2315
    %v2931 = vunpack.c.l.b16 %v2316
    %v2932 = vunpack.c.h.b16 %v2316
    %v2933 = vunpack.c.l.b16 %v2317
    %v2934 = vunpack.c.h.b16 %v2317
    %v2935 = vunpack.c.l.b16 %v2318
    %v2936 = vunpack.c.h.b16 %v2318
    %v2937 = vunpack.c.l.b16 %v2319
    %v2938 = vunpack.c.h.b16 %v2319
    %v2939 = vunpack.c.l.b16 %v2320
    %v2940 = vunpack.c.l.b16 %v2321
    %v2941 = vunpack.c.h.b16 %v2321
    %v2942 = vunpack.c.l.b16 %v2322
    %v2943 = vunpack.c.h.b16 %v2322
    %v2944 = vunpack.c.l.b16 %v2323
    %v2945 = vunpack.c.h.b16 %v2323
    %v2946 = vunpack.c.l.b16 %v2324
    %v2947 = vunpack.c.h.b16 %v2324
    %v2948 = vunpack.c.l.b16 %v2325
    %v2949 = vunpack.c.h.b16 %v2325
    %v2950 = vunpack.c.l.b16 %v2326
    %v2951 = vunpack.c.h.b16 %v2326
    %v2952 = vunpack.c.l.b16 %v2327
    %v2953 = vunpack.c.h.b16 %v2327
    %v2954 = vunpack.c.l.b16 %v2328
    %v2955 = vunpack.c.l.b16 %v2329
    %v2956 = vunpack.c.h.b16 %v2329
    %v2957 = vunpack.c.l.b16 %v2330
    %v2958 = vunpack.c.h.b16 %v2330
    %v2959 = vunpack.c.l.b16 %v2331
    %v2960 = vunpack.c.h.b16 %v2331
    %v2961 = vunpack.c.l.b16 %v2332
    %v2962 = vunpack.c.h.b16 %v2332
    %v2963 = vunpack.c.l.b16 %v2333
    %v2964 = vunpack.c.h.b16 %v2333
    %v2965 = vunpack.c.l.b16 %v2334
    %v2966 = vunpack.c.h.b16 %v2334
    %v2967 = vunpack.c.l.b16 %v2335
    %v2968 = vunpack.c.h.b16 %v2335
    %v2969 = vunpack.c.l.b16 %v2336
    %v2970 = vunpack.c.l.b16 %v2337
    %v2971 = vunpack.c.h.b16 %v2337
    %v2972 = vunpack.c.l.b16 %v2338
    %v2973 = vunpack.c.h.b16 %v2338
    %v2974 = vunpack.c.l.b16 %v2339
    %v2975 = vunpack.c.h.b16 %v2339
    %v2976 = vunpack.c.l.b16 %v2340
    %v2977 = vunpack.c.h.b16 %v2340
    %v2978 = vunpack.c.l.b16 %v2341
    %v2979 = vunpack.c.h.b16 %v2341
    %v2980 = vunpack.c.l.b16 %v2342
    %v2981 = vunpack.c.h.b16 %v2342
    %v2982 = vunpack.c.l.b16 %v2343
    %v2983 = vunpack.c.h.b16 %v2343
    %v2984 = vunpack.c.l.b16 %v2344
    %v2985 = vunpack.c.l.b16 %v2345
    %v2986 = vunpack.c.h.b16 %v2345
    %v2987 = vunpack.c.l.b16 %v2346
    %v2988 = vunpack.c.h.b16 %v2346
    %v2989 = vunpack.c.l.b16 %v2347
    %v2990 = vunpack.c.h.b16 %v2347
    %v2991 = vunpack.c.l.b16 %v2348
    %v2992 = vunpack.c.h.b16 %v2348
    %v2993 = vunpack.c.l.b16 %v2349
    %v2994 = vunpack.c.h.b16 %v2349
    %v2995 = vunpack.c.l.b16 %v2350
    %v2996 = vunpack.c.h.b16 %v2350
    %v2997 = vunpack.c.l.b16 %v2351
    %v2998 = vunpack.c.h.b16 %v2351
    %v2999 = vunpack.c.l.b16 %v2352
    %v3000 = vunpack.c.l.b16 %v2353
    %v3001 = vunpack.c.h.b16 %v2353
    %v3002 = vunpack.c.l.b16 %v2354
    %v3003 = vunpack.c.h.b16 %v2354
    %v3004 = vunpack.c.l.b16 %v2355
    %v3005 = vunpack.c.h.b16 %v2355
    %v3006 = vunpack.c.l.b16 %v2356
    %v3007 = vunpack.c.h.b16 %v2356
    %v3008 = vunpack.c.l.b16 %v2357
    %v3009 = vunpack.c.h.b16 %v2357
    %v3010 = vunpack.c.l.b16 %v2358
    %v3011 = vunpack.c.h.b16 %v2358
    %v3012 = vunpack.c.l.b16 %v2359
    %v3013 = vunpack.c.h.b16 %v2359
    %v3014 = vunpack.c.l.b16 %v2360
    %v3015 = vunpack.c.l.b16 %v2361
    %v3016 = vunpack.c.h.b16 %v2361
    %v3017 = vunpack.c.l.b16 %v2362
    %v3018 = vunpack.c.h.b16 %v2362
    %v3019 = vunpack.c.l.b16 %v2363
    %v3020 = vunpack.c.h.b16 %v2363
    %v3021 = vunpack.c.l.b16 %v2364
    %v3022 = vunpack.c.h.b16 %v2364
    %v3023 = vunpack.c.l.b16 %v2365
    %v3024 = vunpack.c.h.b16 %v2365
    %v3025 = vunpack.c.l.b16 %v2366
    %v3026 = vunpack.c.h.b16 %v2366
    %v3027 = vunpack.c.l.b16 %v2367
    %v3028 = vunpack.c.h.b16 %v2367
    %v3029 = vunpack.c.l.b16 %v2368
    %v3030 = vunpack.c.l.b16 %v2369
    %v3031 = vunpack.c.h.b16 %v2369
    %v3032 = vunpack.c.l.b16 %v2370
    %v3033 = vunpack.c.h.b16 %v2370
    %v3034 = vunpack.c.l.b16 %v2371
    %v3035 = vunpack.c.h.b16 %v2371
    %v3036 = vunpack.c.l.b16 %v2372
    %v3037 = vunpack.c.h.b16 %v2372
    %v3038 = vunpack.c.l.b16 %v2373
    %v3039 = vunpack.c.h.b16 %v2373
    %v3040 = vunpack.c.l.b16 %v2374
    %v3041 = vunpack.c.h.b16 %v2374
    %v3042 = vunpack.c.l.b16 %v2375
    %v3043 = vunpack.c.h.b16 %v2375
    %v3044 = vunpack.c.l.b16 %v2376
    %v3045 = vunpack.c.l.b16 %v2377
    %v3046 = vunpack.c.h.b16 %v2377
    %v3047 = vunpack.c.l.b16 %v2378
    %v3048 = vunpack.c.h.b16 %v2378
    %v3049 = vunpack.c.l.b16 %v2379
    %v3050 = vunpack.c.h.b16 %v2379
    %v3051 = vunpack.c.l.b16 %v2380
    %v3052 = vunpack.c.h.b16 %v2380
    %v3053 = vunpack.c.l.b16 %v2381
    %v3054 = vunpack.c.h.b16 %v2381
    %v3055 = vunpack.c.l.b16 %v2382
    %v3056 = vunpack.c.h.b16 %v2382
    %v3057 = vunpack.c.l.b16 %v2383
    %v3058 = vunpack.c.h.b16 %v2383
    %v3059 = vunpack.c.l.b16 %v2384
    %v3060 = vunpack.c.l.b16 %v2385
    %v3061 = vunpack.c.h.b16 %v2385
    %v3062 = vunpack.c.l.b16 %v2386
    %v3063 = vunpack.c.h.b16 %v2386
    %v3064 = vunpack.c.l.b16 %v2387
    %v3065 = vunpack.c.h.b16 %v2387
    %v3066 = vunpack.c.l.b16 %v2388
    %v3067 = vunpack.c.h.b16 %v2388
    %v3068 = vunpack.c.l.b16 %v2389
    %v3069 = vunpack.c.h.b16 %v2389
    %v3070 = vunpack.c.l.b16 %v2390
    %v3071 = vunpack.c.h.b16 %v2390
    %v3072 = vunpack.c.l.b16 %v2391
    %v3073 = vunpack.c.h.b16 %v2391
    %v3074 = vunpack.c.l.b16 %v2392
    %v3075 = vunpack.c.l.b16 %v2393
    %v3076 = vunpack.c.h.b16 %v2393
    %v3077 = vunpack.c.l.b16 %v2394
    %v3078 = vunpack.c.h.b16 %v2394
    %v3079 = vunpack.c.l.b16 %v2395
    %v3080 = vunpack.c.h.b16 %v2395
    %v3081 = vunpack.c.l.b16 %v2396
    %v3082 = vunpack.c.h.b16 %v2396
    %v3083 = vunpack.c.l.b16 %v2397
    %v3084 = vunpack.c.h.b16 %v2397
    %v3085 = vunpack.c.l.b16 %v2398
    %v3086 = vunpack.c.h.b16 %v2398
    %v3087 = vunpack.c.l.b16 %v2399
    %v3088 = vunpack.c.h.b16 %v2399
    %v3089 = vunpack.c.l.b16 %v2400
    %v3090 = vunpack.c.l.b16 %v2401
    %v3091 = vunpack.c.h.b16 %v2401
    %v3092 = vunpack.c.l.b16 %v2402
    %v3093 = vunpack.c.h.b16 %v2402
    %v3094 = vunpack.c.l.b16 %v2403
    %v3095 = vunpack.c.h.b16 %v2403
    %v3096 = vunpack.c.l.b16 %v2404
    %v3097 = vunpack.c.h.b16 %v2404
    %v3098 = vunpack.c.l.b16 %v2405
    %v3099 = vunpack.c.h.b16 %v2405
    %v3100 = vunpack.c.l.b16 %v2406
    %v3101 = vunpack.c.h.b16 %v2406
    %v3102 = vunpack.c.l.b16 %v2407
    %v3103 = vunpack.c.h.b16 %v2407
    %v3104 = vunpack.c.l.b16 %v2408
    %v3105 = vunpack.c.l.b16 %v2409
    %v3106 = vunpack.c.h.b16 %v2409
    %v3107 = vunpack.c.l.b16 %v2410
    %v3108 = vunpack.c.h.b16 %v2410
    %v3109 = vunpack.c.l.b16 %v2411
    %v3110 = vunpack.c.h.b16 %v2411
    %v3111 = vunpack.c.l.b16 %v2412
    %v3112 = vunpack.c.h.b16 %v2412
    %v3113 = vunpack.c.l.b16 %v2413
    %v3114 = vunpack.c.h.b16 %v2413
    %v3115 = vunpack.c.l.b16 %v2414
    %v3116 = vunpack.c.h.b16 %v2414
    %v3117 = vunpack.c.l.b16 %v2415
    %v3118 = vunpack.c.h.b16 %v2415
    %v3119 = vunpack.c.l.b16 %v2416
    %v3120 = vunpack.c.l.b16 %v2417
    %v3121 = vunpack.c.h.b16 %v2417
    %v3122 = vunpack.c.l.b16 %v2418
    %v3123 = vunpack.c.h.b16 %v2418
    %v3124 = vunpack.c.l.b16 %v2419
    %v3125 = vunpack.c.h.b16 %v2419
    %v3126 = vunpack.c.l.b16 %v2420
    %v3127 = vunpack.c.h.b16 %v2420
    %v3128 = vunpack.c.l.b16 %v2421
    %v3129 = vunpack.c.h.b16 %v2421
    %v3130 = vunpack.c.l.b16 %v2422
    %v3131 = vunpack.c.h.b16 %v2422
    %v3132 = vunpack.c.l.b16 %v2423
    %v3133 = vunpack.c.h.b16 %v2423
    %v3134 = vunpack.c.l.b16 %v2424
    %v3135 = vunpack.c.l.b16 %v2425
    %v3136 = vunpack.c.h.b16 %v2425
    %v3137 = vunpack.c.l.b16 %v2426
    %v3138 = vunpack.c.h.b16 %v2426
    %v3139 = vunpack.c.l.b16 %v2427
    %v3140 = vunpack.c.h.b16 %v2427
    %v3141 = vunpack.c.l.b16 %v2428
    %v3142 = vunpack.c.h.b16 %v2428
    %v3143 = vunpack.c.l.b16 %v2429
    %v3144 = vunpack.c.h.b16 %v2429
    %v3145 = vunpack.c.l.b16 %v2430
    %v3146 = vunpack.c.h.b16 %v2430
    %v3147 = vunpack.c.l.b16 %v2431
    %v3148 = vunpack.c.h.b16 %v2431
    %v3149 = vunpack.c.l.b16 %v2432
    %v3150 = vunpack.c.l.b16 %v2433
    %v3151 = vunpack.c.h.b16 %v2433
    %v3152 = vunpack.c.l.b16 %v2434
    %v3153 = vunpack.c.h.b16 %v2434
    %v3154 = vunpack.c.l.b16 %v2435
    %v3155 = vunpack.c.h.b16 %v2435
    %v3156 = vunpack.c.l.b16 %v2436
    %v3157 = vunpack.c.h.b16 %v2436
    %v3158 = vunpack.c.l.b16 %v2437
    %v3159 = vunpack.c.h.b16 %v2437
    %v3160 = vunpack.c.l.b16 %v2438
    %v3161 = vunpack.c.h.b16 %v2438
    %v3162 = vunpack.c.l.b16 %v2439
    %v3163 = vunpack.c.h.b16 %v2439
    %v3164 = vunpack.c.l.b16 %v2440
    %v3165 = vunpack.c.l.b16 %v2441
    %v3166 = vunpack.c.h.b16 %v2441
    %v3167 = vunpack.c.l.b16 %v2442
    %v3168 = vunpack.c.h.b16 %v2442
    %v3169 = vunpack.c.l.b16 %v2443
    %v3170 = vunpack.c.h.b16 %v2443
    %v3171 = vunpack.c.l.b16 %v2444
    %v3172 = vunpack.c.h.b16 %v2444
    %v3173 = vunpack.c.l.b16 %v2445
    %v3174 = vunpack.c.h.b16 %v2445
    %v3175 = vunpack.c.l.b16 %v2446
    %v3176 = vunpack.c.h.b16 %v2446
    %v3177 = vunpack.c.l.b16 %v2447
    %v3178 = vunpack.c.h.b16 %v2447
    %v3179 = vunpack.c.l.b16 %v2448
    %v3180 = vunpack.c.l.b16 %v2449
    %v3181 = vunpack.c.h.b16 %v2449
    %v3182 = vunpack.c.l.b16 %v2450
    %v3183 = vunpack.c.h.b16 %v2450
    %v3184 = vunpack.c.l.b16 %v2451
    %v3185 = vunpack.c.h.b16 %v2451
    %v3186 = vunpack.c.l.b16 %v2452
    %v3187 = vunpack.c.h.b16 %v2452
    %v3188 = vunpack.c.l.b16 %v2453
    %v3189 = vunpack.c.h.b16 %v2453
    %v3190 = vunpack.c.l.b16 %v2454
    %v3191 = vunpack.c.h.b16 %v2454
    %v3192 = vunpack.c.l.b16 %v2455
    %v3193 = vunpack.c.h.b16 %v2455
    %v3194 = vunpack.c.l.b16 %v2456
    %v3195 = vunpack.c.l.b16 %v2457
    %v3196 = vunpack.c.h.b16 %v2457
    %v3197 = vunpack.c.l.b16 %v2458
    %v3198 = vunpack.c.h.b16 %v2458
    %v3199 = vunpack.c.l.b16 %v2459
    %v3200 = vunpack.c.h.b16 %v2459
    %v3201 = vunpack.c.l.b16 %v2460
    %v3202 = vunpack.c.h.b16 %v2460
    %v3203 = vunpack.c.l.b16 %v2461
    %v3204 = vunpack.c.h.b16 %v2461
    %v3205 = vunpack.c.l.b16 %v2462
    %v3206 = vunpack.c.h.b16 %v2462
    %v3207 = vunpack.c.l.b16 %v2463
    %v3208 = vunpack.c.h.b16 %v2463
    %v3209 = vunpack.c.l.b16 %v2464
    %v3210 = vunpack.c.l.b16 %v2465
    %v3211 = vunpack.c.h.b16 %v2465
    %v3212 = vunpack.c.l.b16 %v2466
    %v3213 = vunpack.c.h.b16 %v2466
    %v3214 = vunpack.c.l.b16 %v2467
    %v3215 = vunpack.c.h.b16 %v2467
    %v3216 = vunpack.c.l.b16 %v2468
    %v3217 = vunpack.c.h.b16 %v2468
    %v3218 = vunpack.c.l.b16 %v2469
    %v3219 = vunpack.c.h.b16 %v2469
    %v3220 = vunpack.c.l.b16 %v2470
    %v3221 = vunpack.c.h.b16 %v2470
    %v3222 = vunpack.c.l.b16 %v2471
    %v3223 = vunpack.c.h.b16 %v2471
    %v3224 = vunpack.c.l.b16 %v2472
    %v3225 = vunpack.c.l.b16 %v2473
    %v3226 = vunpack.c.h.b16 %v2473
    %v3227 = vunpack.c.l.b16 %v2474
    %v3228 = vunpack.c.h.b16 %v2474
    %v3229 = vunpack.c.l.b16 %v2475
    %v3230 = vunpack.c.h.b16 %v2475
    %v3231 = vunpack.c.l.b16 %v2476
    %v3232 = vunpack.c.h.b16 %v2476
    %v3233 = vunpack.c.l.b16 %v2477
    %v3234 = vunpack.c.h.b16 %v2477
    %v3235 = vunpack.c.l.b16 %v2478
    %v3236 = vunpack.c.h.b16 %v2478
    %v3237 = vunpack.c.l.b16 %v2479
    %v3238 = vunpack.c.h.b16 %v2479
    %v3239 = vunpack.c.l.b16 %v2480
    %v3240 = vunpack.c.l.b16 %v2481
    %v3241 = vunpack.c.h.b16 %v2481
    %v3242 = vunpack.c.l.b16 %v2482
    %v3243 = vunpack.c.h.b16 %v2482
    %v3244 = vunpack.c.l.b16 %v2483
    %v3245 = vunpack.c.h.b16 %v2483
    %v3246 = vunpack.c.l.b16 %v2484
    %v3247 = vunpack.c.h.b16 %v2484
    %v3248 = vunpack.c.l.b16 %v2485
    %v3249 = vunpack.c.h.b16 %v2485
    %v3250 = vunpack.c.l.b16 %v2486
    %v3251 = vunpack.c.h.b16 %v2486
    %v3252 = vunpack.c.l.b16 %v2487
    %v3253 = vunpack.c.h.b16 %v2487
    %v3254 = vunpack.c.l.b16 %v2488
    %v3255 = vunpack.c.l.b16 %v2489
    %v3256 = vunpack.c.h.b16 %v2489
    %v3257 = vunpack.c.l.b16 %v2490
    %v3258 = vunpack.c.h.b16 %v2490
    %v3259 = vunpack.c.l.b16 %v2491
    %v3260 = vunpack.c.h.b16 %v2491
    %v3261 = vunpack.c.l.b16 %v2492
    %v3262 = vunpack.c.h.b16 %v2492
    %v3263 = vunpack.c.l.b16 %v2493
    %v3264 = vunpack.c.h.b16 %v2493
    %v3265 = vunpack.c.l.b16 %v2494
    %v3266 = vunpack.c.h.b16 %v2494
    %v3267 = vunpack.c.l.b16 %v2495
    %v3268 = vunpack.c.h.b16 %v2495
    %v3269 = vunpack.c.l.b16 %v2496
    %v3270 = vunpack.c.l.b16 %v2497
    %v3271 = vunpack.c.h.b16 %v2497
    %v3272 = vunpack.c.l.b16 %v2498
    %v3273 = vunpack.c.h.b16 %v2498
    %v3274 = vunpack.c.l.b16 %v2499
    %v3275 = vunpack.c.h.b16 %v2499
    %v3276 = vunpack.c.l.b16 %v2500
    %v3277 = vunpack.c.h.b16 %v2500
    %v3278 = vunpack.c.l.b16 %v2501
    %v3279 = vunpack.c.h.b16 %v2501
    %v3280 = vunpack.c.l.b16 %v2502
    %v3281 = vunpack.c.h.b16 %v2502
    %v3282 = vunpack.c.l.b16 %v2503
    %v3283 = vunpack.c.h.b16 %v2503
    %v3284 = vunpack.c.l.b16 %v2504
    %v3285 = vunpack.c.l.b16 %v2505
    %v3286 = vunpack.c.h.b16 %v2505
    %v3287 = vunpack.c.l.b16 %v2506
    %v3288 = vunpack.c.h.b16 %v2506
    %v3289 = vunpack.c.l.b16 %v2507
    %v3290 = vunpack.c.h.b16 %v2507
    %v3291 = vunpack.c.l.b16 %v2508
    %v3292 = vunpack.c.h.b16 %v2508
    %v3293 = vunpack.c.l.b16 %v2509
    %v3294 = vunpack.c.h.b16 %v2509
    %v3295 = vunpack.c.l.b16 %v2510
    %v3296 = vunpack.c.h.b16 %v2510
    %v3297 = vunpack.c.l.b16 %v2511
    %v3298 = vunpack.c.h.b16 %v2511
    %v3299 = vunpack.c.l.b16 %v2512
    %v3300 = vunpack.c.l.b16 %v2513
    %v3301 = vunpack.c.h.b16 %v2513
    %v3302 = vunpack.c.l.b16 %v2514
    %v3303 = vunpack.c.h.b16 %v2514
    %v3304 = vunpack.c.l.b16 %v2515
    %v3305 = vunpack.c.h.b16 %v2515
    %v3306 = vunpack.c.l.b16 %v2516
    %v3307 = vunpack.c.h.b16 %v2516
    %v3308 = vunpack.c.l.b16 %v2517
    %v3309 = vunpack.c.h.b16 %v2517
    %v3310 = vunpack.c.l.b16 %v2518
    %v3311 = vunpack.c.h.b16 %v2518
    %v3312 = vunpack.c.l.b16 %v2519
    %v3313 = vunpack.c.h.b16 %v2519
    %v3314 = vunpack.c.l.b16 %v2520
    %v3315 = vunpack.c.l.b16 %v2521
    %v3316 = vunpack.c.h.b16 %v2521
    %v3317 = vunpack.c.l.b16 %v2522
    %v3318 = vunpack.c.h.b16 %v2522
    %v3319 = vunpack.c.l.b16 %v2523
    %v3320 = vunpack.c.h.b16 %v2523
    %v3321 = vunpack.c.l.b16 %v2524
    %v3322 = vunpack.c.h.b16 %v2524
    %v3323 = vunpack.c.l.b16 %v2525
    %v3324 = vunpack.c.h.b16 %v2525
    %v3325 = vunpack.c.l.b16 %v2526
    %v3326 = vunpack.c.h.b16 %v2526
    %v3327 = vunpack.c.l.b16 %v2527
    %v3328 = vunpack.c.h.b16 %v2527
    %v3329 = vunpack.c.l.b16 %v2528
    %v3330 = vunpack.c.l.b16 %v2529
    %v3331 = vunpack.c.h.b16 %v2529
    %v3332 = vunpack.c.l.b16 %v2530
    %v3333 = vunpack.c.h.b16 %v2530
    %v3334 = vunpack.c.l.b16 %v2531
    %v3335 = vunpack.c.h.b16 %v2531
    %v3336 = vunpack.c.l.b16 %v2532
    %v3337 = vunpack.c.h.b16 %v2532
    %v3338 = vunpack.c.l.b16 %v2533
    %v3339 = vunpack.c.h.b16 %v2533
    %v3340 = vunpack.c.l.b16 %v2534
    %v3341 = vunpack.c.h.b16 %v2534
    %v3342 = vunpack.c.l.b16 %v2535
    %v3343 = vunpack.c.h.b16 %v2535
    %v3344 = vunpack.c.l.b16 %v2536
    %v3345 = vunpack.c.l.b16 %v2537
    %v3346 = vunpack.c.h.b16 %v2537
    %v3347 = vunpack.c.l.b16 %v2538
    %v3348 = vunpack.c.h.b16 %v2538
    %v3349 = vunpack.c.l.b16 %v2539
    %v3350 = vunpack.c.h.b16 %v2539
    %v3351 = vunpack.c.l.b16 %v2540
    %v3352 = vunpack.c.h.b16 %v2540
    %v3353 = vunpack.c.l.b16 %v2541
    %v3354 = vunpack.c.h.b16 %v2541
    %v3355 = vunpack.c.l.b16 %v2542
    %v3356 = vunpack.c.h.b16 %v2542
    %v3357 = vunpack.c.l.b16 %v2543
    %v3358 = vunpack.c.h.b16 %v2543
    %v3359 = vunpack.c.l.b16 %v2544
    %v3360 = vpack.c.b16 %v2895, %v2880
    %v3361 = vpack.c.b16 %v2896, %v2881
    %v3362 = vpack.c.b16 %v2897, %v2882
    %v3363 = vpack.c.b16 %v2898, %v2883
    %v3364 = vpack.c.b16 %v2899, %v2884
    %v3365 = vpack.c.b16 %v2900, %v2885
    %v3366 = vpack.c.b16 %v2901, %v2886
    %v3367 = vpack.c.b16 %v2902, %v2887
    %v3368 = vpack.c.b16 %v2903, %v2888
    %v3369 = vpack.c.b16 %v2904, %v2889
    %v3370 = vpack.c.b16 %v2905, %v2890
    %v3371 = vpack.c.b16 %v2906, %v2891
    %v3372 = vpack.c.b16 %v2907, %v2892
    %v3373 = vpack.c.b16 %v2908, %v2893
    %v3374 = vpack.c.b16 %v2909, %v2894
    %v3375 = vpack.c.b16 %v2925, %v2910
    %v3376 = vpack.c.b16 %v2926, %v2911
    %v3377 = vpack.c.b16 %v2927, %v2912
    %v3378 = vpack.c.b16 %v2928, %v2913
    %v3379 = vpack.c.b16 %v2929, %v2914
    %v3380 = vpack.c.b16 %v2930, %v2915
    %v3381 = vpack.c.b16 %v2931, %v2916
    %v3382 = vpack.c.b16 %v2932, %v2917
    %v3383 = vpack.c.b16 %v2933, %v2918
    %v3384 = vpack.c.b16 %v2934, %v2919
    %v3385 = vpack.c.b16 %v2935, %v2920
    %v3386 = vpack.c.b16 %v2936, %v2921
    %v3387 = vpack.c.b16 %v2937, %v2922
    %v3388 = vpack.c.b16 %v2938, %v2923
    %v3389 = vpack.c.b16 %v2939, %v2924
    %v3390 = vpack.c.b16 %v2955, %v2940
    %v3391 = vpack.c.b16 %v2956, %v2941
    %v3392 = vpack.c.b16 %v2957, %v2942
    %v3393 = vpack.c.b16 %v2958, %v2943
    %v3394 = vpack.c.b16 %v2959, %v2944
    %v3395 = vpack.c.b16 %v2960, %v2945
    %v3396 = vpack.c.b16 %v2961, %v2946
    %v3397 = vpack.c.b16 %v2962, %v2947
    %v3398 = vpack.c.b16 %v2963, %v2948
    %v3399 = vpack.c.b16 %v2964, %v2949
    %v3400 = vpack.c.b16 %v2965, %v2950
    %v3401 = vpack.c.b16 %v2966, %v2951
    %v3402 = vpack.c.b16 %v2967, %v2952
    %v3403 = vpack.c.b16 %v2968, %v2953
    %v3404 = vpack.c.b16 %v2969, %v2954
    %v3405 = vpack.c.b16 %v2985, %v2970
    %v3406 = vpack.c.b16 %v2986, %v2971
    %v3407 = vpack.c.b16 %v2987, %v2972
    %v3408 = vpack.c.b16 %v2988, %v2973
    %v3409 = vpack.c.b16 %v2989, %v2974
    %v3410 = vpack.c.b16 %v2990, %v2975
    %v3411 = vpack.c.b16 %v2991, %v2976
    %v3412 = vpack.c.b16 %v2992, %v2977
    %v3413 = vpack.c.b16 %v2993, %v2978
    %v3414 = vpack.c.b16 %v2994, %v2979
    %v3415 = vpack.c.b16 %v2995, %v2980
    %v3416 = vpack.c.b16 %v2996, %v2981
    %v3417 = vpack.c.b16 %v2997, %v2982
    %v3418 = vpack.c.b16 %v2998, %v2983
    %v3419 = vpack.c.b16 %v2999, %v2984
    %v3420 = vpack.c.b16 %v3015, %v3000
    %v3421 = vpack.c.b16 %v3016, %v3001
    %v3422 = vpack.c.b16 %v3017, %v3002
    %v3423 = vpack.c.b16 %v3018, %v3003
    %v3424 = vpack.c.b16 %v3019, %v3004
    %v3425 = vpack.c.b16 %v3020, %v3005
    %v3426 = vpack.c.b16 %v3021, %v3006
    %v3427 = vpack.c.b16 %v3022, %v3007
    %v3428 = vpack.c.b16 %v3023, %v3008
    %v3429 = vpack.c.b16 %v3024, %v3009
    %v3430 = vpack.c.b16 %v3025, %v3010
    %v3431 = vpack.c.b16 %v3026, %v3011
    %v3432 = vpack.c.b16 %v3027, %v3012
    %v3433 = vpack.c.b16 %v3028, %v3013
    %v3434 = vpack.c.b16 %v3029, %v3014
    %v3435 = vpack.c.b16 %v3045, %v3030
    %v3436 = vpack.c.b16 %v3046, %v3031
    %v3437 = vpack.c.b16 %v3047, %v3032
    %v3438 = vpack.c.b16 %v3048, %v3033
    %v3439 = vpack.c.b16 %v3049, %v3034
    %v3440 = vpack.c.b16 %v3050, %v3035
    %v3441 = vpack.c.b16 %v3051, %v3036
    %v3442 = vpack.c.b16 %v3052, %v3037
    %v3443 = vpack.c.b16 %v3053, %v3038
    %v3444 = vpack.c.b16 %v3054, %v3039
    %v3445 = vpack.c.b16 %v3055, %v3040
    %v3446 = vpack.c.b16 %v3056, %v3041
    %v3447 = vpack.c.b16 %v3057, %v3042
    %v3448 = vpack.c.b16 %v3058, %v3043
    %v3449 = vpack.c.b16 %v3059, %v3044
    %v3450 = vpack.c.b16 %v3075, %v3060
    %v3451 = vpack.c.b16 %v3076, %v3061
    %v3452 = vpack.c.b16 %v3077, %v3062
    %v3453 = vpack.c.b16 %v3078, %v3063
    %v3454 = vpack.c.b16 %v3079, %v3064
    %v3455 = vpack.c.b16 %v3080, %v3065
    %v3456 = vpack.c.b16 %v3081, %v3066
    %v3457 = vpack.c.b16 %v3082, %v3067
    %v3458 = vpack.c.b16 %v3083, %v3068
    %v3459 = vpack.c.b16 %v3084, %v3069
    %v3460 = vpack.c.b16 %v3085, %v3070
    %v3461 = vpack.c.b16 %v3086, %v3071
    %v3462 = vpack.c.b16 %v3087, %v3072
    %v3463 = vpack.c.b16 %v3088, %v3073
    %v3464 = vpack.c.b16 %v3089, %v3074
    %v3465 = vpack.c.b16 %v3105, %v3090
    %v3466 = vpack.c.b16 %v3106, %v3091
    %v3467 = vpack.c.b16 %v3107, %v3092
    %v3468 = vpack.c.b16 %v3108, %v3093
    %v3469 = vpack.c.b16 %v3109, %v3094
    %v3470 = vpack.c.b16 %v3110, %v3095
    %v3471 = vpack.c.b16 %v3111, %v3096
    %v3472 = vpack.c.b16 %v3112, %v3097
    %v3473 = vpack.c.b16 %v3113, %v3098
    %v3474 = vpack.c.b16 %v3114, %v3099
    %v3475 = vpack.c.b16 %v3115, %v3100
    %v3476 = vpack.c.b16 %v3116, %v3101
    %v3477 = vpack.c.b16 %v3117, %v3102
    %v3478 = vpack.c.b16 %v3118, %v3103
    %v3479 = vpack.c.b16 %v3119, %v3104
    %v3480 = vpack.c.b16 %v3135, %v3120
    %v3481 = vpack.c.b16 %v3136, %v3121
    %v3482 = vpack.c.b16 %v3137, %v3122
    %v3483 = vpack.c.b16 %v3138, %v3123
    %v3484 = vpack.c.b16 %v3139, %v3124
    %v3485 = vpack.c.b16 %v3140, %v3125
    %v3486 = vpack.c.b16 %v3141, %v3126
    %v3487 = vpack.c.b16 %v3142, %v3127
    %v3488 = vpack.c.b16 %v3143, %v3128
    %v3489 = vpack.c.b16 %v3144, %v3129
    %v3490 = vpack.c.b16 %v3145, %v3130
    %v3491 = vpack.c.b16 %v3146, %v3131
    %v3492 = vpack.c.b16 %v3147, %v3132
    %v3493 = vpack.c.b16 %v3148, %v3133
    %v3494 = vpack.c.b16 %v3149, %v3134
    %v3495 = vpack.c.b16 %v3165, %v3150
    %v3496 = vpack.c.b16 %v3166, %v3151
    %v3497 = vpack.c.b16 %v3167, %v3152
    %v3498 = vpack.c.b16 %v3168, %v3153
    %v3499 = vpack.c.b16 %v3169, %v3154
    %v3500 = vpack.c.b16 %v3170, %v3155
    %v3501 = vpack.c.b16 %v3171, %v3156
    %v3502 = vpack.c.b16 %v3172, %v3157
    %v3503 = vpack.c.b16 %v3173, %v3158
    %v3504 = vpack.c.b16 %v3174, %v3159
    %v3505 = vpack.c.b16 %v3175, %v3160
    %v3506 = vpack.c.b16 %v3176, %v3161
    %v3507 = vpack.c.b16 %v3177, %v3162
    %v3508 = vpack.c.b16 %v3178, %v3163
    %v3509 = vpack.c.b16 %v3179, %v3164
    %v3510 = vpack.c.b16 %v3195, %v3180
    %v3511 = vpack.c.b16 %v3196, %v3181
    %v3512 = vpack.c.b16 %v3197, %v3182
    %v3513 = vpack.c.b16 %v3198, %v3183
    %v3514 = vpack.c.b16 %v3199, %v3184
    %v3515 = vpack.c.b16 %v3200, %v3185
    %v3516 = vpack.c.b16 %v3201, %v3186
    %v3517 = vpack.c.b16 %v3202, %v3187
    %v3518 = vpack.c.b16 %v3203, %v3188
    %v3519 = vpack.c.b16 %v3204, %v3189
    %v3520 = vpack.c.b16 %v3205, %v3190
    %v3521 = vpack.c.b16 %v3206, %v3191
    %v3522 = vpack.c.b16 %v3207, %v3192
    %v3523 = vpack.c.b16 %v3208, %v3193
    %v3524 = vpack.c.b16 %v3209, %v3194
    %v3525 = vpack.c.b16 %v3225, %v3210
    %v3526 = vpack.c.b16 %v3226, %v3211
    %v3527 = vpack.c.b16 %v3227, %v3212
    %v3528 = vpack.c.b16 %v3228, %v3213
    %v3529 = vpack.c.b16 %v3229, %v3214
    %v3530 = vpack.c.b16 %v3230, %v3215
    %v3531 = vpack.c.b16 %v3231, %v3216
    %v3532 = vpack.c.b16 %v3232, %v3217
    %v3533 = vpack.c.b16 %v3233, %v3218
    %v3534 = vpack.c.b16 %v3234, %v3219
    %v3535 = vpack.c.b16 %v3235, %v3220
    %v3536 = vpack.c.b16 %v3236, %v3221
    %v3537 = vpack.c.b16 %v3237, %v3222
    %v3538 = vpack.c.b16 %v3238, %v3223
    %v3539 = vpack.c.b16 %v3239, %v3224
    %v3540 = vpack.c.b16 %v3255, %v3240
    %v3541 = vpack.c.b16 %v3256, %v3241
    %v3542 = vpack.c.b16 %v3257, %v3242
    %v3543 = vpack.c.b16 %v3258, %v3243
    %v3544 = vpack.c.b16 %v3259, %v3244
    %v3545 = vpack.c.b16 %v3260, %v3245
    %v3546 = vpack.c.b16 %v3261, %v3246
    %v3547 = vpack.c.b16 %v3262, %v3247
    %v3548 = vpack.c.b16 %v3263, %v3248
    %v3549 = vpack.c.b16 %v3264, %v3249
    %v3550 = vpack.c.b16 %v3265, %v3250
    %v3551 = vpack.c.b16 %v3266, %v3251
    %v3552 = vpack.c.b16 %v3267, %v3252
    %v3553 = vpack.c.b16 %v3268, %v3253
    %v3554 = vpack.c.b16 %v3269, %v3254
    %v3555 = vpack.c.b16 %v3285, %v3270
    %v3556 = vpack.c.b16 %v3286, %v3271
    %v3557 = vpack.c.b16 %v3287, %v3272
    %v3558 = vpack.c.b16 %v3288, %v3273
    %v3559 = vpack.c.b16 %v3289, %v3274
    %v3560 = vpack.c.b16 %v3290, %v3275
    %v3561 = vpack.c.b16 %v3291, %v3276
    %v3562 = vpack.c.b16 %v3292, %v3277
    %v3563 = vpack.c.b16 %v3293, %v3278
    %v3564 = vpack.c.b16 %v3294, %v3279
    %v3565 = vpack.c.b16 %v3295, %v3280
    %v3566 = vpack.c.b16 %v3296, %v3281
    %v3567 = vpack.c.b16 %v3297, %v3282
    %v3568 = vpack.c.b16 %v3298, %v3283
    %v3569 = vpack.c.b16 %v3299, %v3284
    %v3570 = vpack.c.b16 %v3315, %v3300
    %v3571 = vpack.c.b16 %v3316, %v3301
    %v3572 = vpack.c.b16 %v3317, %v3302
    %v3573 = vpack.c.b16 %v3318, %v3303
    %v3574 = vpack.c.b16 %v3319, %v3304
    %v3575 = vpack.c.b16 %v3320, %v3305
    %v3576 = vpack.c.b16 %v3321, %v3306
    %v3577 = vpack.c.b16 %v3322, %v3307
    %v3578 = vpack.c.b16 %v3323, %v3308
    %v3579 = vpack.c.b16 %v3324, %v3309
    %v3580 = vpack.c.b16 %v3325, %v3310
    %v3581 = vpack.c.b16 %v3326, %v3311
    %v3582 = vpack.c.b16 %v3327, %v3312
    %v3583 = vpack.c.b16 %v3328, %v3313
    %v3584 = vpack.c.b16 %v3329, %v3314
    %v3585 = vpack.c.b16 %v3345, %v3330
    %v3586 = vpack.c.b16 %v3346, %v3331
    %v3587 = vpack.c.b16 %v3347, %v3332
    %v3588 = vpack.c.b16 %v3348, %v3333
    %v3589 = vpack.c.b16 %v3349, %v3334
    %v3590 = vpack.c.b16 %v3350, %v3335
    %v3591 = vpack.c.b16 %v3351, %v3336
    %v3592 = vpack.c.b16 %v3352, %v3337
    %v3593 = vpack.c.b16 %v3353, %v3338
    %v3594 = vpack.c.b16 %v3354, %v3339
    %v3595 = vpack.c.b16 %v3355, %v3340
    %v3596 = vpack.c.b16 %v3356, %v3341
    %v3597 = vpack.c.b16 %v3357, %v3342
    %v3598 = vpack.c.b16 %v3358, %v3343
    %v3599 = vpack.c.b16 %v3359, %v3344
    %3840 = vmatprep.subr.bf16.mxu0 %v3466
    %3841 = vmatpush1.bf16.msra.mxu0 %v3465
    %3842 = vmatprep.subr.bf16.mxu0 %v3451
    %3843 = vmatpush1.bf16.msra.mxu0 %v3450
    %3844 = vmatprep.subr.bf16.mxu0 %v3436
    %3845 = vmatpush1.bf16.msra.mxu0 %v3435
    %3846 = vmatprep.subr.bf16.mxu0 %v3421
    %3847 = vmatpush1.bf16.msra.mxu0 %v3420
    %3848 = vmatprep.subr.bf16.mxu0 %v3406
    %3849 = vmatpush1.bf16.msra.mxu0 %v3405
    %3850 = vmatprep.subr.bf16.mxu0 %v3391
    %3851 = vmatpush1.bf16.msra.mxu0 %v3390
    %3852 = vmatprep.subr.bf16.mxu0 %v3376
    %3853 = vmatpush1.bf16.msra.mxu0 %v3375
    %3854 = vmatprep.subr.bf16.mxu0 %v3361
    %3855 = vmatpush1.bf16.msra.mxu0 %v3360
    %3856 = vmatprep.subr.bf16.mxu0 %v3586
    %3857 = vmatpush2.bf16.msra.mxu0 %v3585
    %3858 = vmatprep.subr.bf16.mxu0 %v3571
    %3859 = vmatpush2.bf16.msra.mxu0 %v3570
    %3860 = vmatprep.subr.bf16.mxu0 %v3556
    %3861 = vmatpush2.bf16.msra.mxu0 %v3555
    %3862 = vmatprep.subr.bf16.mxu0 %v3541
    %3863 = vmatpush2.bf16.msra.mxu0 %v3540
    %3864 = vmatprep.subr.bf16.mxu0 %v3526
    %3865 = vmatpush2.bf16.msra.mxu0 %v3525
    %3866 = vmatprep.subr.bf16.mxu0 %v3511
    %3867 = vmatpush2.bf16.msra.mxu0 %v3510
    %3868 = vmatprep.subr.bf16.mxu0 %v3496
    %3869 = vmatpush2.bf16.msra.mxu0 %v3495
    %3870 = vmatprep.subr.bf16.mxu0 %v3481
    %3871 = vmatpush2.bf16.msra.mxu0 %v3480
    %3872 = vmatprep.mubr.bf16.mxu0 %v2288
    %3873 = vmatmul.mubr.bf16.gmra.mxu0 %v2287
    %v3874 = vpop.f32.mrf.mxu0
    %v3875 = vadd.f32 %v2552, %v3874
    %v3876 = vpop.f32.mrf.mxu0
    %v3877 = vadd.f32 %v2556, %v3876
    %v3878 = vpop.f32.mrf.mxu0
    %v3879 = vpop.f32.mrf.mxu0
    %3880 = vdwg.mxu0
    %3881 = vmatprep.subr.bf16.mxu0 %v3468
    %3882 = vmatpush1.bf16.msra.mxu0 %v3467
    %3883 = vmatprep.subr.bf16.mxu0 %v3453
    %3884 = vmatpush1.bf16.msra.mxu0 %v3452
    %3885 = vmatprep.subr.bf16.mxu0 %v3438
    %3886 = vmatpush1.bf16.msra.mxu0 %v3437
    %3887 = vmatprep.subr.bf16.mxu0 %v3423
    %3888 = vmatpush1.bf16.msra.mxu0 %v3422
    %3889 = vmatprep.subr.bf16.mxu0 %v3408
    %3890 = vmatpush1.bf16.msra.mxu0 %v3407
    %3891 = vmatprep.subr.bf16.mxu0 %v3393
    %3892 = vmatpush1.bf16.msra.mxu0 %v3392
    %3893 = vmatprep.subr.bf16.mxu0 %v3378
    %3894 = vmatpush1.bf16.msra.mxu0 %v3377
    %3895 = vmatprep.subr.bf16.mxu0 %v3363
    %3896 = vmatpush1.bf16.msra.mxu0 %v3362
    %3897 = vmatprep.subr.bf16.mxu0 %v3588
    %3898 = vmatpush2.bf16.msra.mxu0 %v3587
    %3899 = vmatprep.subr.bf16.mxu0 %v3573
    %3900 = vmatpush2.bf16.msra.mxu0 %v3572
    %3901 = vmatprep.subr.bf16.mxu0 %v3558
    %3902 = vmatpush2.bf16.msra.mxu0 %v3557
    %3903 = vmatprep.subr.bf16.mxu0 %v3543
    %3904 = vmatpush2.bf16.msra.mxu0 %v3542
    %3905 = vmatprep.subr.bf16.mxu0 %v3528
    %3906 = vmatpush2.bf16.msra.mxu0 %v3527
    %3907 = vmatprep.subr.bf16.mxu0 %v3513
    %3908 = vmatpush2.bf16.msra.mxu0 %v3512
    %3909 = vmatprep.subr.bf16.mxu0 %v3498
    %3910 = vmatpush2.bf16.msra.mxu0 %v3497
    %3911 = vmatprep.subr.bf16.mxu0 %v3483
    %3912 = vmatpush2.bf16.msra.mxu0 %v3482
    %3913 = vmatprep.mubr.bf16.mxu0 %v2288
    %3914 = vmatmul.mubr.bf16.gmra.mxu0 %v2287
    %v3915 = vpop.f32.mrf.mxu0
    %v3916 = vadd.f32 %v2560, %v3915
    %v3917 = vpop.f32.mrf.mxu0
    %v3918 = vadd.f32 %v2564, %v3917
    %v3919 = vpop.f32.mrf.mxu0
    %v3920 = vpop.f32.mrf.mxu0
    %3921 = vdwg.mxu0
    %3922 = vmatprep.subr.bf16.mxu0 %v3470
    %3923 = vmatpush1.bf16.msra.mxu0 %v3469
    %3924 = vmatprep.subr.bf16.mxu0 %v3455
    %3925 = vmatpush1.bf16.msra.mxu0 %v3454
    %3926 = vmatprep.subr.bf16.mxu0 %v3440
    %3927 = vmatpush1.bf16.msra.mxu0 %v3439
    %3928 = vmatprep.subr.bf16.mxu0 %v3425
    %3929 = vmatpush1.bf16.msra.mxu0 %v3424
    %3930 = vmatprep.subr.bf16.mxu0 %v3410
    %3931 = vmatpush1.bf16.msra.mxu0 %v3409
    %3932 = vmatprep.subr.bf16.mxu0 %v3395
    %3933 = vmatpush1.bf16.msra.mxu0 %v3394
    %3934 = vmatprep.subr.bf16.mxu0 %v3380
    %3935 = vmatpush1.bf16.msra.mxu0 %v3379
    %3936 = vmatprep.subr.bf16.mxu0 %v3365
    %3937 = vmatpush1.bf16.msra.mxu0 %v3364
    %3938 = vmatprep.subr.bf16.mxu0 %v3590
    %3939 = vmatpush2.bf16.msra.mxu0 %v3589
    %3940 = vmatprep.subr.bf16.mxu0 %v3575
    %3941 = vmatpush2.bf16.msra.mxu0 %v3574
    %3942 = vmatprep.subr.bf16.mxu0 %v3560
    %3943 = vmatpush2.bf16.msra.mxu0 %v3559
    %3944 = vmatprep.subr.bf16.mxu0 %v3545
    %3945 = vmatpush2.bf16.msra.mxu0 %v3544
    %3946 = vmatprep.subr.bf16.mxu0 %v3530
    %3947 = vmatpush2.bf16.msra.mxu0 %v3529
    %3948 = vmatprep.subr.bf16.mxu0 %v3515
    %3949 = vmatpush2.bf16.msra.mxu0 %v3514
    %3950 = vmatprep.subr.bf16.mxu0 %v3500
    %3951 = vmatpush2.bf16.msra.mxu0 %v3499
    %3952 = vmatprep.subr.bf16.mxu0 %v3485
    %3953 = vmatpush2.bf16.msra.mxu0 %v3484
    %3954 = vmatprep.mubr.bf16.mxu0 %v2288
    %3955 = vmatmul.mubr.bf16.gmra.mxu0 %v2287
    %v3956 = vpop.f32.mrf.mxu0
    %v3957 = vadd.f32 %v2568, %v3956
    %v3958 = vpop.f32.mrf.mxu0
    %v3959 = vadd.f32 %v2572, %v3958
    %v3960 = vpop.f32.mrf.mxu0
    %v3961 = vpop.f32.mrf.mxu0
    %3962 = vdwg.mxu0
    %3963 = vmatprep.subr.bf16.mxu0 %v3472
    %3964 = vmatpush1.bf16.msra.mxu0 %v3471
    %3965 = vmatprep.subr.bf16.mxu0 %v3457
    %3966 = vmatpush1.bf16.msra.mxu0 %v3456
    %3967 = vmatprep.subr.bf16.mxu0 %v3442
    %3968 = vmatpush1.bf16.msra.mxu0 %v3441
    %3969 = vmatprep.subr.bf16.mxu0 %v3427
    %3970 = vmatpush1.bf16.msra.mxu0 %v3426
    %3971 = vmatprep.subr.bf16.mxu0 %v3412
    %3972 = vmatpush1.bf16.msra.mxu0 %v3411
    %3973 = vmatprep.subr.bf16.mxu0 %v3397
    %3974 = vmatpush1.bf16.msra.mxu0 %v3396
    %3975 = vmatprep.subr.bf16.mxu0 %v3382
    %3976 = vmatpush1.bf16.msra.mxu0 %v3381
    %3977 = vmatprep.subr.bf16.mxu0 %v3367
    %3978 = vmatpush1.bf16.msra.mxu0 %v3366
    %3979 = vmatprep.subr.bf16.mxu0 %v3592
    %3980 = vmatpush2.bf16.msra.mxu0 %v3591
    %3981 = vmatprep.subr.bf16.mxu0 %v3577
    %3982 = vmatpush2.bf16.msra.mxu0 %v3576
    %3983 = vmatprep.subr.bf16.mxu0 %v3562
    %3984 = vmatpush2.bf16.msra.mxu0 %v3561
    %3985 = vmatprep.subr.bf16.mxu0 %v3547
    %3986 = vmatpush2.bf16.msra.mxu0 %v3546
    %3987 = vmatprep.subr.bf16.mxu0 %v3532
    %3988 = vmatpush2.bf16.msra.mxu0 %v3531
    %3989 = vmatprep.subr.bf16.mxu0 %v3517
    %3990 = vmatpush2.bf16.msra.mxu0 %v3516
    %3991 = vmatprep.subr.bf16.mxu0 %v3502
    %3992 = vmatpush2.bf16.msra.mxu0 %v3501
    %3993 = vmatprep.subr.bf16.mxu0 %v3487
    %3994 = vmatpush2.bf16.msra.mxu0 %v3486
    %3995 = vmatprep.mubr.bf16.mxu0 %v2288
    %3996 = vmatmul.mubr.bf16.gmra.mxu0 %v2287
    %v3997 = vpop.f32.mrf.mxu0
    %v3998 = vadd.f32 %v2576, %v3997
    %v3999 = vpop.f32.mrf.mxu0
    %v4000 = vadd.f32 %v2580, %v3999
    %v4001 = vpop.f32.mrf.mxu0
    %v4002 = vpop.f32.mrf.mxu0
    %4003 = vdwg.mxu0
    %4004 = vmatprep.subr.bf16.mxu0 %v3474
    %4005 = vmatpush1.bf16.msra.mxu0 %v3473
    %4006 = vmatprep.subr.bf16.mxu0 %v3459
    %4007 = vmatpush1.bf16.msra.mxu0 %v3458
    %4008 = vmatprep.subr.bf16.mxu0 %v3444
    %4009 = vmatpush1.bf16.msra.mxu0 %v3443
    %4010 = vmatprep.subr.bf16.mxu0 %v3429
    %4011 = vmatpush1.bf16.msra.mxu0 %v3428
    %4012 = vmatprep.subr.bf16.mxu0 %v3414
    %4013 = vmatpush1.bf16.msra.mxu0 %v3413
    %4014 = vmatprep.subr.bf16.mxu0 %v3399
    %4015 = vmatpush1.bf16.msra.mxu0 %v3398
    %4016 = vmatprep.subr.bf16.mxu0 %v3384
    %4017 = vmatpush1.bf16.msra.mxu0 %v3383
    %4018 = vmatprep.subr.bf16.mxu0 %v3369
    %4019 = vmatpush1.bf16.msra.mxu0 %v3368
    %4020 = vmatprep.subr.bf16.mxu0 %v3594
    %4021 = vmatpush2.bf16.msra.mxu0 %v3593
    %4022 = vmatprep.subr.bf16.mxu0 %v3579
    %4023 = vmatpush2.bf16.msra.mxu0 %v3578
    %4024 = vmatprep.subr.bf16.mxu0 %v3564
    %4025 = vmatpush2.bf16.msra.mxu0 %v3563
    %4026 = vmatprep.subr.bf16.mxu0 %v3549
    %4027 = vmatpush2.bf16.msra.mxu0 %v3548
    %4028 = vmatprep.subr.bf16.mxu0 %v3534
    %4029 = vmatpush2.bf16.msra.mxu0 %v3533
    %4030 = vmatprep.subr.bf16.mxu0 %v3519
    %4031 = vmatpush2.bf16.msra.mxu0 %v3518
    %4032 = vmatprep.subr.bf16.mxu0 %v3504
    %4033 = vmatpush2.bf16.msra.mxu0 %v3503
    %4034 = vmatprep.subr.bf16.mxu0 %v3489
    %4035 = vmatpush2.bf16.msra.mxu0 %v3488
    %4036 = vmatprep.mubr.bf16.mxu0 %v2288
    %4037 = vmatmul.mubr.bf16.gmra.mxu0 %v2287
    %v4038 = vpop.f32.mrf.mxu0
    %v4039 = vadd.f32 %v2584, %v4038
    %v4040 = vpop.f32.mrf.mxu0
    %v4041 = vadd.f32 %v2588, %v4040
    %v4042 = vpop.f32.mrf.mxu0
    %v4043 = vpop.f32.mrf.mxu0
    %4044 = vdwg.mxu0
    %4045 = vmatprep.subr.bf16.mxu0 %v3476
    %4046 = vmatpush1.bf16.msra.mxu0 %v3475
    %4047 = vmatprep.subr.bf16.mxu0 %v3461
    %4048 = vmatpush1.bf16.msra.mxu0 %v3460
    %4049 = vmatprep.subr.bf16.mxu0 %v3446
    %4050 = vmatpush1.bf16.msra.mxu0 %v3445
    %4051 = vmatprep.subr.bf16.mxu0 %v3431
    %4052 = vmatpush1.bf16.msra.mxu0 %v3430
    %4053 = vmatprep.subr.bf16.mxu0 %v3416
    %4054 = vmatpush1.bf16.msra.mxu0 %v3415
    %4055 = vmatprep.subr.bf16.mxu0 %v3401
    %4056 = vmatpush1.bf16.msra.mxu0 %v3400
    %4057 = vmatprep.subr.bf16.mxu0 %v3386
    %4058 = vmatpush1.bf16.msra.mxu0 %v3385
    %4059 = vmatprep.subr.bf16.mxu0 %v3371
    %4060 = vmatpush1.bf16.msra.mxu0 %v3370
    %4061 = vmatprep.subr.bf16.mxu0 %v3596
    %4062 = vmatpush2.bf16.msra.mxu0 %v3595
    %4063 = vmatprep.subr.bf16.mxu0 %v3581
    %4064 = vmatpush2.bf16.msra.mxu0 %v3580
    %4065 = vmatprep.subr.bf16.mxu0 %v3566
    %4066 = vmatpush2.bf16.msra.mxu0 %v3565
    %4067 = vmatprep.subr.bf16.mxu0 %v3551
    %4068 = vmatpush2.bf16.msra.mxu0 %v3550
    %4069 = vmatprep.subr.bf16.mxu0 %v3536
    %4070 = vmatpush2.bf16.msra.mxu0 %v3535
    %4071 = vmatprep.subr.bf16.mxu0 %v3521
    %4072 = vmatpush2.bf16.msra.mxu0 %v3520
    %4073 = vmatprep.subr.bf16.mxu0 %v3506
    %4074 = vmatpush2.bf16.msra.mxu0 %v3505
    %4075 = vmatprep.subr.bf16.mxu0 %v3491
    %4076 = vmatpush2.bf16.msra.mxu0 %v3490
    %4077 = vmatprep.mubr.bf16.mxu0 %v2288
    %4078 = vmatmul.mubr.bf16.gmra.mxu0 %v2287
    %v4079 = vpop.f32.mrf.mxu0
    %v4080 = vadd.f32 %v2592, %v4079
    %v4081 = vpop.f32.mrf.mxu0
    %v4082 = vadd.f32 %v2596, %v4081
    %v4083 = vpop.f32.mrf.mxu0
    %v4084 = vpop.f32.mrf.mxu0
    %4085 = vdwg.mxu0
    %4086 = vmatprep.subr.bf16.mxu0 %v3478
    %4087 = vmatpush1.bf16.msra.mxu0 %v3477
    %4088 = vmatprep.subr.bf16.mxu0 %v3463
    %4089 = vmatpush1.bf16.msra.mxu0 %v3462
    %4090 = vmatprep.subr.bf16.mxu0 %v3448
    %4091 = vmatpush1.bf16.msra.mxu0 %v3447
    %4092 = vmatprep.subr.bf16.mxu0 %v3433
    %4093 = vmatpush1.bf16.msra.mxu0 %v3432
    %4094 = vmatprep.subr.bf16.mxu0 %v3418
    %4095 = vmatpush1.bf16.msra.mxu0 %v3417
    %4096 = vmatprep.subr.bf16.mxu0 %v3403
    %4097 = vmatpush1.bf16.msra.mxu0 %v3402
    %4098 = vmatprep.subr.bf16.mxu0 %v3388
    %4099 = vmatpush1.bf16.msra.mxu0 %v3387
    %4100 = vmatprep.subr.bf16.mxu0 %v3373
    %4101 = vmatpush1.bf16.msra.mxu0 %v3372
    %4102 = vmatprep.subr.bf16.mxu0 %v3598
    %4103 = vmatpush2.bf16.msra.mxu0 %v3597
    %4104 = vmatprep.subr.bf16.mxu0 %v3583
    %4105 = vmatpush2.bf16.msra.mxu0 %v3582
    %4106 = vmatprep.subr.bf16.mxu0 %v3568
    %4107 = vmatpush2.bf16.msra.mxu0 %v3567
    %4108 = vmatprep.subr.bf16.mxu0 %v3553
    %4109 = vmatpush2.bf16.msra.mxu0 %v3552
    %4110 = vmatprep.subr.bf16.mxu0 %v3538
    %4111 = vmatpush2.bf16.msra.mxu0 %v3537
    %4112 = vmatprep.subr.bf16.mxu0 %v3523
    %4113 = vmatpush2.bf16.msra.mxu0 %v3522
    %4114 = vmatprep.subr.bf16.mxu0 %v3508
    %4115 = vmatpush2.bf16.msra.mxu0 %v3507
    %4116 = vmatprep.subr.bf16.mxu0 %v3493
    %4117 = vmatpush2.bf16.msra.mxu0 %v3492
    %4118 = vmatprep.mubr.bf16.mxu0 %v2288
    %4119 = vmatmul.mubr.bf16.gmra.mxu0 %v2287
    %v4120 = vpop.f32.mrf.mxu0
    %v4121 = vadd.f32 %v2600, %v4120
    %v4122 = vpop.f32.mrf.mxu0
    %v4123 = vadd.f32 %v2604, %v4122
    %v4124 = vpop.f32.mrf.mxu0
    %v4125 = vpop.f32.mrf.mxu0
    %4126 = vdwg.mxu0
    %4127 = vmatprep.subr.bf16.mxu0 0
    %4128 = vmatpush1.bf16.msra.mxu0 %v3479
    %4129 = vmatprep.subr.bf16.mxu0 0
    %4130 = vmatpush1.bf16.msra.mxu0 %v3464
    %4131 = vmatprep.subr.bf16.mxu0 0
    %4132 = vmatpush1.bf16.msra.mxu0 %v3449
    %4133 = vmatprep.subr.bf16.mxu0 0
    %4134 = vmatpush1.bf16.msra.mxu0 %v3434
    %4135 = vmatprep.subr.bf16.mxu0 0
    %4136 = vmatpush1.bf16.msra.mxu0 %v3419
    %4137 = vmatprep.subr.bf16.mxu0 0
    %4138 = vmatpush1.bf16.msra.mxu0 %v3404
    %4139 = vmatprep.subr.bf16.mxu0 0
    %4140 = vmatpush1.bf16.msra.mxu0 %v3389
    %4141 = vmatprep.subr.bf16.mxu0 0
    %4142 = vmatpush1.bf16.msra.mxu0 %v3374
    %4143 = vmatprep.subr.bf16.mxu0 0
    %4144 = vmatpush2.bf16.msra.mxu0 %v3599
    %4145 = vmatprep.subr.bf16.mxu0 0
    %4146 = vmatpush2.bf16.msra.mxu0 %v3584
    %4147 = vmatprep.subr.bf16.mxu0 0
    %4148 = vmatpush2.bf16.msra.mxu0 %v3569
    %4149 = vmatprep.subr.bf16.mxu0 0
    %4150 = vmatpush2.bf16.msra.mxu0 %v3554
    %4151 = vmatprep.subr.bf16.mxu0 0
    %4152 = vmatpush2.bf16.msra.mxu0 %v3539
    %4153 = vmatprep.subr.bf16.mxu0 0
    %4154 = vmatpush2.bf16.msra.mxu0 %v3524
    %4155 = vmatprep.subr.bf16.mxu0 0
    %4156 = vmatpush2.bf16.msra.mxu0 %v3509
    %4157 = vmatprep.subr.bf16.mxu0 0
    %4158 = vmatpush2.bf16.msra.mxu0 %v3494
    %4159 = vmatprep.mubr.bf16.mxu0 %v2288
    %4160 = vmatmul.mubr.bf16.gmra.mxu0 %v2287
    %v4161 = vpop.f32.mrf.mxu0
    %v4162 = vadd.f32 %v2608, %v4161
    %v4163 = vpop.f32.mrf.mxu0
    %v4164 = vpop.f32.mrf.mxu0
    %v4165 = vpop.f32.mrf.mxu0
    %4166 = vdwg.mxu0
    %4167 = vst [vmem:[#allocation7] sm:$0xff] %v3875
    %4168 = vst [vmem:[#allocation7 + $0x8] sm:$0xff] %v3877
    %4169 = vst [vmem:[#allocation7 + $0x10] sm:$0xff] %v3916
    %4170 = vst [vmem:[#allocation7 + $0x18] sm:$0xff] %v3918
    %4171 = vst [vmem:[#allocation7 + $0x20] sm:$0xff] %v3957
    %4172 = vst [vmem:[#allocation7 + $0x28] sm:$0xff] %v3959
    %4173 = vst [vmem:[#allocation7 + $0x30] sm:$0xff] %v3998
    %4174 = vst [vmem:[#allocation7 + $0x38] sm:$0xff] %v4000
    %4175 = vst [vmem:[#allocation7 + $0x40] sm:$0xff] %v4039
    %4176 = vst [vmem:[#allocation7 + $0x48] sm:$0xff] %v4041
    %4177 = vst [vmem:[#allocation7 + $0x50] sm:$0xff] %v4080
    %4178 = vst [vmem:[#allocation7 + $0x58] sm:$0xff] %v4082
    %4179 = vst [vmem:[#allocation7 + $0x60] sm:$0xff] %v4121
    %4180 = vst [vmem:[#allocation7 + $0x68] sm:$0xff] %v4123
    %4181 = vst [vmem:[#allocation7 + $0x70] sm:$0xff] %v4162
    // Predicated region
    $region62: #{tpu_custom_call.1} parent=1 // pred_check
      _
    $region63: #{tpu_custom_call.1} parent=1 // pred_check_branch
      %4183 = sbr.rel (0) target = $region65
    $region64: #{tpu_custom_call.1} parent=1 // pred_region
      _
    $region65: #{tpu_custom_call.1} parent=1 // pred_fallthru
      _
    // Predicated region
    $region66: #{tpu_custom_call.1} parent=1 // pred_check
      _
    $region67: #{tpu_custom_call.1} parent=1 // pred_check_branch
      %4185 = sbr.rel (0) target = $region69
    $region68: #{tpu_custom_call.1} parent=1 // pred_region
      %s4187 = ssub.s32 1920, 1920
      %4188 = vsyncadd [#allocation4], %s4187
      %s4190 = sshll.u32 [#allocation7], 4
      %s4191 = int_to_ptr.vmem [resolvable:$true] %s4190
      %4193 = dma.vmem_to_hbm [thread:$0]  %s4191, 1920, %s14, [#allocation4]
    $region69: #{tpu_custom_call.1} parent=1 // pred_fallthru
      _
    // Predicated region
    $region70: #{tpu_custom_call.1} parent=1 // pred_check
      _
    $region71: #{tpu_custom_call.1} parent=1 // pred_check_branch
      %4195 = sbr.rel (0) target = $region73
    $region72: #{tpu_custom_call.1} parent=1 // pred_region
      _
    $region73: #{tpu_custom_call.1} parent=1 // pred_fallthru
      _
    // Predicated region
    $region74: #{tpu_custom_call.1} parent=1 // pred_check
      _
    $region75: #{tpu_custom_call.1} parent=1 // pred_check_branch
      %4197 = sbr.rel (0) target = $region77
    $region76: #{tpu_custom_call.1} parent=1 // pred_region
      %4198 = dma.done [#allocation4], 1920
    $region77: #{tpu_custom_call.1} parent=1 // pred_fallthru
      _
    %4199 = vsyncpa [#allocation3], 1
    %4200 = vsyncpa [#allocation6], 1
    %4201 = vsyncpa [#allocation4], 1

</llo_original>
